<compile_context>
chip_gen: v6e
topology: v6e:2x2x1
jax: 0.10.0
libtpu: 0.0.40
codegen_flags: <defaults>
</compile_context>

<pallas_src>
import numpy as np
import jax
import jax.numpy as jnp
from jax import lax
from jax.experimental import pallas as pl
from jax.experimental.pallas import tpu as pltpu  # noqa: F401  (TPU backend)

# ---------------- configuration (small, consistent with the module) ----------
B = 2              # batch
H = W = 8          # input_resolution
C = 32             # dim
WS = 4             # window_size  (H, W divisible by WS -> pad_size=None)
NH = 4             # num_heads
HD = C // NH       # head_dim = 8
N = WS * WS        # tokens per window = 16
NBLK = B * (H // WS) * (W // WS)   # total number of windows = 8
T = NBLK * N                       # total tokens = B*H*W = 128
HID = int(C * 4.0)                 # mlp hidden dim (mlp_ratio=4.0) = 128
EPS = 1e-5
SCALE = HD ** -0.5
SQRT2 = np.float32(np.sqrt(2.0))
NEG_BIG = 1e9

assert T == 128 and HID == 128 and HD == 8  # lane-width / bit-trick assumptions


def _ln(x, g, b):
    """LayerNorm with affine (used only by the pure-JAX reference)."""
    mu = jnp.mean(x, axis=-1, keepdims=True)
    var = jnp.mean((x - mu) ** 2, axis=-1, keepdims=True)
    return (x - mu) / jnp.sqrt(var + EPS) * g + b


# --------------------------- fused kernel ------------------------------------
def fused_block_kernel(x_ref, wqkvp_ref, w1_ref, w2_ref, bvec_ref, biasq_ref, o_ref):
    x = x_ref[...]                                     # (T, C) natural token order

    # ---- LN1 (gamma/beta folded into wq/wk/wv + their biases in the wrapper) ----
    mu = jnp.mean(x, axis=-1, keepdims=True)
    xc = x - mu
    var = jnp.mean(xc * xc, axis=-1, keepdims=True)
    xn = xc / jnp.sqrt(var + EPS)

    # ---- packed parameter slabs (static, sublane-aligned slices) ----
    wq = wqkvp_ref[0:C, :]
    wk = wqkvp_ref[C:2 * C, :]
    wv = wqkvp_ref[2 * C:3 * C, :]
    wproj = wqkvp_ref[3 * C:4 * C, :]
    bb1 = bvec_ref[0:1, :]                             # (1, HID)
    bq = bvec_ref[1:2, 0:C]
    bk = bvec_ref[2:3, 0:C]
    bv = bvec_ref[3:4, 0:C]
    bproj = bvec_ref[4:5, 0:C]
    bb2 = bvec_ref[5:6, 0:C]

    # ---- Q/K/V projections (attention scale already folded into wq/bq) ----
    q = jnp.dot(xn, wq, preferred_element_type=jnp.float32) + bq      # (T, C)
    k = jnp.dot(xn, wk, preferred_element_type=jnp.float32) + bk
    v = jnp.dot(xn, wv, preferred_element_type=jnp.float32) + bv
    kt = k.T                                           # (C, T): one XLU transpose total

    # ---- window (block) mask from iota bit arithmetic, natural token order ----
    # token i: batch = i>>6, row = (i>>3)&7, col = i&7
    # window id = batch*4 + (row//4)*2 + (col//4) = ((i & 96) >> 4) | ((i & 4) >> 2)
    ri = lax.broadcasted_iota(jnp.int32, (T, T), 0)
    ci = lax.broadcasted_iota(jnp.int32, (T, T), 1)
    wid_r = ((ri & 96) >> 4) | ((ri & 4) >> 2)
    wid_c = ((ci & 96) >> 4) | ((ci & 4) >> 2)
    neg = jnp.where(wid_r == wid_c, 0.0, -NEG_BIG).astype(jnp.float32)  # (T, T)

    # ---- per-head channel masks (exact zeros; no 8-lane slicing / concat of heads) --
    ch = lax.broadcasted_iota(jnp.int32, (1, C), 1) >> 3               # head of channel
    rh = lax.broadcasted_iota(jnp.int32, (C, 1), 0) >> 3
    cmf = [(ch == h).astype(jnp.float32) for h in range(NH)]           # (1, C)
    rmf = [(rh == h).astype(jnp.float32) for h in range(NH)]           # (C, 1)

    # ---- collapsed attention: 2 wide matmuls instead of 8 small ones ----
    k_big = jnp.concatenate([kt * rmf[h] for h in range(NH)], axis=1)  # (C, NH*T)
    v_big = jnp.concatenate([v * cmf[h] for h in range(NH)], axis=0)   # (NH*T, C)
    s_big = jnp.dot(q, k_big, preferred_element_type=jnp.float32)      # (T, NH*T)

    # Per-head softmax (unnormalized); normalization deferred to the (T, C) output.
    p_parts = []
    scale = jnp.zeros((T, C), jnp.float32)
    for h in range(NH):
        # Rel-pos bias: 32-row query period, pre-expanded along keys in the wrapper.
        blk = biasq_ref[h * 32:(h + 1) * 32, :]                        # (32, T)
        bias_h = jnp.concatenate([blk, blk, blk, blk], axis=0)         # (T, T)
        sh = s_big[:, h * T:(h + 1) * T] + bias_h + neg
        sh = sh - jnp.max(sh, axis=-1, keepdims=True)
        ph = jnp.exp(sh)                     # off-window entries underflow to exactly 0
        # exact reciprocal (approx=False is NOT the approximate EUP vrcp path)
        inv = pl.reciprocal(jnp.sum(ph, axis=-1, keepdims=True), approx=False)
        p_parts.append(ph)
        scale = scale + inv * cmf[h]                                   # (T, C)
    p_big = jnp.concatenate(p_parts, axis=1)                           # (T, NH*T)

    attn = jnp.dot(p_big, v_big, preferred_element_type=jnp.float32) * scale  # (T, C)

    # ---- output projection + residual 1 (drop_path = Identity) ----
    y = x + jnp.dot(attn, wproj, preferred_element_type=jnp.float32) + bproj

    # ---- LN2 (affine folded into w1/bb1) + MLP (fc1 -> exact GELU -> fc2) + res 2 ----
    mu2 = jnp.mean(y, axis=-1, keepdims=True)
    yc = y - mu2
    var2 = jnp.mean(yc * yc, axis=-1, keepdims=True)
    yn = yc / jnp.sqrt(var2 + EPS)
    hdn = jnp.dot(yn, w1_ref[...], preferred_element_type=jnp.float32) + bb1
    hdn = 0.5 * hdn * (1.0 + lax.erf(hdn / SQRT2))
    o_ref[...] = y + jnp.dot(hdn, w2_ref[...], preferred_element_type=jnp.float32) + bb2


# --------------------------- wrapper ------------------------------------------
def make_kernel_params(p, rel_bias):
    """One-time parameter transform: fold LN affines + softmax scale, pack operands."""
    g1 = p["g1"][0]
    b1 = p["b1"][0]
    g2 = p["g2"][0]
    b2 = p["b2"][0]
    wq = p["wqkv"][:, 0 * C:1 * C]
    wk = p["wqkv"][:, 1 * C:2 * C]
    wv = p["wqkv"][:, 2 * C:3 * C]
    bq = p["bqkv"][0, 0 * C:1 * C]
    bk = p["bqkv"][0, 1 * C:2 * C]
    bv = p["bqkv"][0, 2 * C:3 * C]

    # Fold LN1 gamma/beta and the attention scale into the q/k/v projections.
    wq_f = (wq * g1[:, None]) * SCALE
    bq_f = (b1 @ wq + bq) * SCALE
    wk_f = wk * g1[:, None]
    bk_f = b1 @ wk + bk
    wv_f = wv * g1[:, None]
    bv_f = b1 @ wv + bv
    # Fold LN2 gamma/beta into fc1.
    w1_f = p["w1"] * g2[:, None]
    bb1_f = b2 @ p["w1"] + p["bb1"][0]

    # Slab 1: stacked projection weights (4C, C).
    wqkvp = jnp.concatenate([wq_f, wk_f, wv_f, p["wproj"]], axis=0)

    # Slab 2: all bias vectors packed into one (8, 128) array (row-indexed in kernel).
    bvec = jnp.zeros((8, 128), jnp.float32)
    bvec = bvec.at[0, :HID].set(bb1_f)
    bvec = bvec.at[1, :C].set(bq_f)
    bvec = bvec.at[2, :C].set(bk_f)
    bvec = bvec.at[3, :C].set(bv_f)
    bvec = bvec.at[4, :C].set(p["bproj"][0])
    bvec = bvec.at[5, :C].set(p["bb2"][0])

    # Slab 3: rel-pos bias in natural token order, (NH*32, T) = 64 KiB (vs 256 KiB dense).
    # In natural order, in-window index of token i is n(i) = ((i>>3)&3)*4 + (i&3),
    # which has period 32; expand keys fully and queries over one 32-row period.
    idx32 = np.arange(32)
    n32 = ((idx32 >> 3) & 3) * 4 + (idx32 & 3)
    idxT = np.arange(T)
    nT = ((idxT >> 3) & 3) * 4 + (idxT & 3)
    bias_q = rel_bias[:, n32, :][:, :, nT]              # (NH, 32, T)
    bias_q = bias_q.reshape(NH * 32, T).astype(jnp.float32)

    return {"wqkvp": wqkvp, "w1": w1_f, "w2": p["w2"], "bvec": bvec, "bias_q": bias_q}


@jax.jit
def basic_layer_up_forward(x, kp):
    """x: (B, L, C) tokens (L = H*W, row-major natural order)."""
    Bb, L, Cc = x.shape
    out = pl.pallas_call(
        fused_block_kernel,
        out_shape=jax.ShapeDtypeStruct((T, Cc), jnp.float32),
        cost_estimate=pl.CostEstimate(
            flops=11_534_336, transcendentals=81_920, bytes_accessed=151_552),
    )(x.reshape(Bb * L, Cc), kp["wqkvp"], kp["w1"], kp["w2"], kp["bvec"], kp["bias_q"])
    return out.reshape(Bb, L, Cc)


# --------------------------- pure-JAX reference -------------------------------
def reference(x, p, rel_bias):
    shortcut = x
    xn = _ln(x, p["g1"][0], p["b1"][0])
    x4 = xn.reshape(B, H, W, C)
    xw = (x4.reshape(B, H // WS, WS, W // WS, WS, C)
            .transpose(0, 1, 3, 2, 4, 5).reshape(-1, N, C))
    qkv = xw @ p["wqkv"] + p["bqkv"][0]
    qkv = qkv.reshape(-1, N, 3, NH, HD).transpose(2, 0, 3, 1, 4)
    q, k, v = qkv[0] * SCALE, qkv[1], qkv[2]
    attn = jnp.einsum("bhnd,bhmd->bhnm", q, k) + rel_bias[None]
    attn = jax.nn.softmax(attn, axis=-1)
    out = jnp.einsum("bhnm,bhmd->bhnd", attn, v).transpose(0, 2, 1, 3).reshape(-1, N, C)
    out = out @ p["wproj"] + p["bproj"][0]
    xr = (out.reshape(B, H // WS, W // WS, WS, WS, C)
             .transpose(0, 1, 3, 2, 4, 5).reshape(B, H * W, C))
    y = shortcut + xr
    yn = _ln(y, p["g2"][0], p["b2"][0])
    hdn = yn @ p["w1"] + p["bb1"][0]
    hdn = 0.5 * hdn * (1.0 + lax.erf(hdn / SQRT2))
    return y + hdn @ p["w2"] + p["bb2"][0]


# --------------------------- params & rel-pos bias ----------------------------
def make_params(key):
    ks = jax.random.split(key, 12)
    s = 0.02
    return {
        # non-trivial LN affines so the wrapper-side folding is actually exercised
        "g1": 1.0 + 0.1 * jax.random.normal(ks[8], (1, C), jnp.float32),
        "b1": 0.1 * jax.random.normal(ks[9], (1, C), jnp.float32),
        "g2": 1.0 + 0.1 * jax.random.normal(ks[10], (1, C), jnp.float32),
        "b2": 0.1 * jax.random.normal(ks[11], (1, C), jnp.float32),
        "wqkv": s * jax.random.normal(ks[0], (C, 3 * C), jnp.float32),
        "bqkv": s * jax.random.normal(ks[1], (1, 3 * C), jnp.float32),
        "wproj": s * jax.random.normal(ks[2], (C, C), jnp.float32),
        "bproj": s * jax.random.normal(ks[3], (1, C), jnp.float32),
        "w1": s * jax.random.normal(ks[4], (C, HID), jnp.float32),
        "bb1": s * jax.random.normal(ks[5], (1, HID), jnp.float32),
        "w2": s * jax.random.normal(ks[6], (HID, C), jnp.float32),
        "bb2": s * jax.random.normal(ks[7], (1, C), jnp.float32),
    }


def make_rel_bias(key):
    # relative_position_bias_table: ((2*WS-1)^2, NH); gathered exactly as PyTorch does.
    table = 0.02 * jax.random.normal(key, ((2 * WS - 1) ** 2, NH), jnp.float32)
    coords = np.stack(np.meshgrid(np.arange(WS), np.arange(WS), indexing="ij"))
    cf = coords.reshape(2, -1)
    rel = cf[:, :, None] - cf[:, None, :]
    rel = rel.transpose(1, 2, 0).astype(np.int64)
    rel[:, :, 0] += WS - 1
    rel[:, :, 1] += WS - 1
    rel[:, :, 0] *= 2 * WS - 1
    idx = rel.sum(-1).reshape(-1)
    bias = table[jnp.asarray(idx)].reshape(N, N, NH).transpose(2, 0, 1)   # (NH, N, N)
    return bias


if __name__ == "__main__":
    key = jax.random.PRNGKey(0)
    kx, kp_key, kb = jax.random.split(key, 3)
    x = jax.random.normal(kx, (B, H * W, C), jnp.float32)    # tokens (B, L, C)
    params = make_params(kp_key)
    rel_bias = make_rel_bias(kb)
    kparams = make_kernel_params(params, rel_bias)

    out = basic_layer_up_forward(x, kparams)
    out = jax.block_until_ready(out)

    ref = reference(x, params, rel_bias)
    np.testing.assert_allclose(np.asarray(out), np.asarray(ref), rtol=1e-4, atol=1e-4)

    print("KERNEL_OK")
</pallas_src>

<mosaic_0001>
module attributes {stable_mosaic.version = 11 : i64} {
  func.func @fused_block_kernel(%arg0: memref<128x32xf32, #tpu.memory_space<vmem>>, %arg1: memref<128x32xf32, #tpu.memory_space<vmem>>, %arg2: memref<32x128xf32, #tpu.memory_space<vmem>>, %arg3: memref<128x32xf32, #tpu.memory_space<vmem>>, %arg4: memref<8x128xf32, #tpu.memory_space<vmem>>, %arg5: memref<128x128xf32, #tpu.memory_space<vmem>>, %arg6: memref<128x32xf32, #tpu.memory_space<vmem>>) attributes {dimension_semantics = [], scalar_prefetch = 0 : i64, scratch_operands = 0 : i64, tpu.core_type = #tpu.core_type<tc>} {
    %c0 = arith.constant 0 : index
    %c0_0 = arith.constant 0 : index
    %0 = vector.load %arg0[%c0, %c0_0] : memref<128x32xf32, #tpu.memory_space<vmem>>, vector<128x32xf32>
    %cst = arith.constant dense<0.000000e+00> : vector<128xf32>
    %1 = vector.multi_reduction <add>, %0, %cst [1] : vector<128x32xf32> to vector<128xf32>
    %2 = vector.shape_cast %1 : vector<128xf32> to vector<128x1xf32>
    %cst_1 = arith.constant 3.200000e+01 : f32
    %3 = vector.broadcast %cst_1 : f32 to vector<128x1xf32>
    %4 = arith.divf %2, %3 : vector<128x1xf32>
    %5 = vector.broadcast %4 : vector<128x1xf32> to vector<128x32xf32>
    %6 = arith.subf %0, %5 : vector<128x32xf32>
    %7 = arith.mulf %6, %6 : vector<128x32xf32>
    %cst_2 = arith.constant dense<0.000000e+00> : vector<128xf32>
    %8 = vector.multi_reduction <add>, %7, %cst_2 [1] : vector<128x32xf32> to vector<128xf32>
    %9 = vector.shape_cast %8 : vector<128xf32> to vector<128x1xf32>
    %cst_3 = arith.constant 3.200000e+01 : f32
    %10 = vector.broadcast %cst_3 : f32 to vector<128x1xf32>
    %11 = arith.divf %9, %10 : vector<128x1xf32>
    %cst_4 = arith.constant 9.99999974E-6 : f32
    %12 = vector.broadcast %cst_4 : f32 to vector<128x1xf32>
    %13 = arith.addf %11, %12 : vector<128x1xf32>
    %14 = math.sqrt %13 : vector<128x1xf32>
    %15 = vector.broadcast %14 : vector<128x1xf32> to vector<128x32xf32>
    %16 = arith.divf %6, %15 : vector<128x32xf32>
    %c0_5 = arith.constant 0 : index
    %c0_6 = arith.constant 0 : index
    %17 = vector.load %arg1[%c0_5, %c0_6] : memref<128x32xf32, #tpu.memory_space<vmem>>, vector<32x32xf32>
    %c32 = arith.constant 32 : index
    %c0_7 = arith.constant 0 : index
    %18 = vector.load %arg1[%c32, %c0_7] : memref<128x32xf32, #tpu.memory_space<vmem>>, vector<32x32xf32>
    %c64 = arith.constant 64 : index
    %c0_8 = arith.constant 0 : index
    %19 = vector.load %arg1[%c64, %c0_8] : memref<128x32xf32, #tpu.memory_space<vmem>>, vector<32x32xf32>
    %c96 = arith.constant 96 : index
    %c0_9 = arith.constant 0 : index
    %20 = vector.load %arg1[%c96, %c0_9] : memref<128x32xf32, #tpu.memory_space<vmem>>, vector<32x32xf32>
    %c0_10 = arith.constant 0 : index
    %c0_11 = arith.constant 0 : index
    %21 = vector.load %arg4[%c0_10, %c0_11] : memref<8x128xf32, #tpu.memory_space<vmem>>, vector<1x128xf32>
    %c1 = arith.constant 1 : index
    %c0_12 = arith.constant 0 : index
    %22 = vector.load %arg4[%c1, %c0_12] : memref<8x128xf32, #tpu.memory_space<vmem>>, vector<1x32xf32>
    %c2 = arith.constant 2 : index
    %c0_13 = arith.constant 0 : index
    %23 = vector.load %arg4[%c2, %c0_13] : memref<8x128xf32, #tpu.memory_space<vmem>>, vector<1x32xf32>
    %c3 = arith.constant 3 : index
    %c0_14 = arith.constant 0 : index
    %24 = vector.load %arg4[%c3, %c0_14] : memref<8x128xf32, #tpu.memory_space<vmem>>, vector<1x32xf32>
    %c4 = arith.constant 4 : index
    %c0_15 = arith.constant 0 : index
    %25 = vector.load %arg4[%c4, %c0_15] : memref<8x128xf32, #tpu.memory_space<vmem>>, vector<1x32xf32>
    %c5 = arith.constant 5 : index
    %c0_16 = arith.constant 0 : index
    %26 = vector.load %arg4[%c5, %c0_16] : memref<8x128xf32, #tpu.memory_space<vmem>>, vector<1x32xf32>
    %cst_17 = arith.constant dense<0.000000e+00> : vector<128x32xf32>
    %27 = tpu.matmul %16, %17, %cst_17 {dimension_numbers = #tpu.dot_dimension_numbers<[1], [0], [0], [1], [0, 0, 1, 1], [], []>} : vector<128x32xf32>, vector<32x32xf32>, vector<128x32xf32> -> vector<128x32xf32>
    %28 = vector.broadcast %22 : vector<1x32xf32> to vector<128x32xf32>
    %29 = arith.addf %27, %28 : vector<128x32xf32>
    %cst_18 = arith.constant dense<0.000000e+00> : vector<128x32xf32>
    %30 = tpu.matmul %16, %18, %cst_18 {dimension_numbers = #tpu.dot_dimension_numbers<[1], [0], [0], [1], [0, 0, 1, 1], [], []>} : vector<128x32xf32>, vector<32x32xf32>, vector<128x32xf32> -> vector<128x32xf32>
    %31 = vector.broadcast %23 : vector<1x32xf32> to vector<128x32xf32>
    %32 = arith.addf %30, %31 : vector<128x32xf32>
    %cst_19 = arith.constant dense<0.000000e+00> : vector<128x32xf32>
    %33 = tpu.matmul %16, %19, %cst_19 {dimension_numbers = #tpu.dot_dimension_numbers<[1], [0], [0], [1], [0, 0, 1, 1], [], []>} : vector<128x32xf32>, vector<32x32xf32>, vector<128x32xf32> -> vector<128x32xf32>
    %34 = vector.broadcast %24 : vector<1x32xf32> to vector<128x32xf32>
    %35 = arith.addf %33, %34 : vector<128x32xf32>
    %36 = tpu.transpose %32, [1, 0] : vector<128x32xf32> -> vector<32x128xf32>
    %37 = tpu.iota {dimensions = array<i32: 0>} : vector<128x128xi32>
    %38 = tpu.iota {dimensions = array<i32: 1>} : vector<128x128xi32>
    %c96_i32 = arith.constant 96 : i32
    %39 = vector.broadcast %c96_i32 : i32 to vector<128x128xi32>
    %40 = arith.andi %37, %39 : vector<128x128xi32>
    %c4_i32 = arith.constant 4 : i32
    %41 = vector.broadcast %c4_i32 : i32 to vector<128x128xi32>
    %42 = arith.shrsi %40, %41 : vector<128x128xi32>
    %c4_i32_20 = arith.constant 4 : i32
    %43 = vector.broadcast %c4_i32_20 : i32 to vector<128x128xi32>
    %44 = arith.andi %37, %43 : vector<128x128xi32>
    %c2_i32 = arith.constant 2 : i32
    %45 = vector.broadcast %c2_i32 : i32 to vector<128x128xi32>
    %46 = arith.shrsi %44, %45 : vector<128x128xi32>
    %47 = arith.ori %42, %46 : vector<128x128xi32>
    %c96_i32_21 = arith.constant 96 : i32
    %48 = vector.broadcast %c96_i32_21 : i32 to vector<128x128xi32>
    %49 = arith.andi %38, %48 : vector<128x128xi32>
    %c4_i32_22 = arith.constant 4 : i32
    %50 = vector.broadcast %c4_i32_22 : i32 to vector<128x128xi32>
    %51 = arith.shrsi %49, %50 : vector<128x128xi32>
    %c4_i32_23 = arith.constant 4 : i32
    %52 = vector.broadcast %c4_i32_23 : i32 to vector<128x128xi32>
    %53 = arith.andi %38, %52 : vector<128x128xi32>
    %c2_i32_24 = arith.constant 2 : i32
    %54 = vector.broadcast %c2_i32_24 : i32 to vector<128x128xi32>
    %55 = arith.shrsi %53, %54 : vector<128x128xi32>
    %56 = arith.ori %51, %55 : vector<128x128xi32>
    %57 = arith.cmpi eq, %47, %56 : vector<128x128xi32>
    %cst_25 = arith.constant 0.000000e+00 : f32
    %cst_26 = arith.constant -1.000000e+09 : f32
    %58 = vector.broadcast %cst_25 : f32 to vector<128x128xf32>
    %59 = vector.broadcast %cst_26 : f32 to vector<128x128xf32>
    %60 = arith.select %57, %58, %59 : vector<128x128xi1>, vector<128x128xf32>
    %61 = tpu.iota {dimensions = array<i32: 1>} : vector<1x32xi32>
    %c3_i32 = arith.constant 3 : i32
    %62 = vector.broadcast %c3_i32 : i32 to vector<1x32xi32>
    %63 = arith.shrsi %61, %62 : vector<1x32xi32>
    %64 = tpu.iota {dimensions = array<i32: 0>} : vector<32x1xi32>
    %c3_i32_27 = arith.constant 3 : i32
    %65 = vector.broadcast %c3_i32_27 : i32 to vector<32x1xi32>
    %66 = arith.shrsi %64, %65 : vector<32x1xi32>
    %c0_i32 = arith.constant 0 : i32
    %67 = vector.broadcast %c0_i32 : i32 to vector<1x32xi32>
    %68 = arith.cmpi eq, %63, %67 : vector<1x32xi32>
    %69 = arith.extui %68 : vector<1x32xi1> to vector<1x32xi32>
    %70 = arith.sitofp %69 : vector<1x32xi32> to vector<1x32xf32>
    %c1_i32 = arith.constant 1 : i32
    %71 = vector.broadcast %c1_i32 : i32 to vector<1x32xi32>
    %72 = arith.cmpi eq, %63, %71 : vector<1x32xi32>
    %73 = arith.extui %72 : vector<1x32xi1> to vector<1x32xi32>
    %74 = arith.sitofp %73 : vector<1x32xi32> to vector<1x32xf32>
    %c2_i32_28 = arith.constant 2 : i32
    %75 = vector.broadcast %c2_i32_28 : i32 to vector<1x32xi32>
    %76 = arith.cmpi eq, %63, %75 : vector<1x32xi32>
    %77 = arith.extui %76 : vector<1x32xi1> to vector<1x32xi32>
    %78 = arith.sitofp %77 : vector<1x32xi32> to vector<1x32xf32>
    %c3_i32_29 = arith.constant 3 : i32
    %79 = vector.broadcast %c3_i32_29 : i32 to vector<1x32xi32>
    %80 = arith.cmpi eq, %63, %79 : vector<1x32xi32>
    %81 = arith.extui %80 : vector<1x32xi1> to vector<1x32xi32>
    %82 = arith.sitofp %81 : vector<1x32xi32> to vector<1x32xf32>
    %c0_i32_30 = arith.constant 0 : i32
    %83 = vector.broadcast %c0_i32_30 : i32 to vector<32x1xi32>
    %84 = arith.cmpi eq, %66, %83 : vector<32x1xi32>
    %85 = arith.extui %84 : vector<32x1xi1> to vector<32x1xi32>
    %86 = arith.sitofp %85 : vector<32x1xi32> to vector<32x1xf32>
    %c1_i32_31 = arith.constant 1 : i32
    %87 = vector.broadcast %c1_i32_31 : i32 to vector<32x1xi32>
    %88 = arith.cmpi eq, %66, %87 : vector<32x1xi32>
    %89 = arith.extui %88 : vector<32x1xi1> to vector<32x1xi32>
    %90 = arith.sitofp %89 : vector<32x1xi32> to vector<32x1xf32>
    %c2_i32_32 = arith.constant 2 : i32
    %91 = vector.broadcast %c2_i32_32 : i32 to vector<32x1xi32>
    %92 = arith.cmpi eq, %66, %91 : vector<32x1xi32>
    %93 = arith.extui %92 : vector<32x1xi1> to vector<32x1xi32>
    %94 = arith.sitofp %93 : vector<32x1xi32> to vector<32x1xf32>
    %c3_i32_33 = arith.constant 3 : i32
    %95 = vector.broadcast %c3_i32_33 : i32 to vector<32x1xi32>
    %96 = arith.cmpi eq, %66, %95 : vector<32x1xi32>
    %97 = arith.extui %96 : vector<32x1xi1> to vector<32x1xi32>
    %98 = arith.sitofp %97 : vector<32x1xi32> to vector<32x1xf32>
    %99 = vector.broadcast %86 : vector<32x1xf32> to vector<32x128xf32>
    %100 = arith.mulf %36, %99 : vector<32x128xf32>
    %101 = vector.broadcast %90 : vector<32x1xf32> to vector<32x128xf32>
    %102 = arith.mulf %36, %101 : vector<32x128xf32>
    %103 = vector.broadcast %94 : vector<32x1xf32> to vector<32x128xf32>
    %104 = arith.mulf %36, %103 : vector<32x128xf32>
    %105 = vector.broadcast %98 : vector<32x1xf32> to vector<32x128xf32>
    %106 = arith.mulf %36, %105 : vector<32x128xf32>
    %107 = tpu.concatenate %100, %102, %104, %106 in 1 : vector<32x128xf32>, vector<32x128xf32>, vector<32x128xf32>, vector<32x128xf32> -> vector<32x512xf32>
    %108 = vector.broadcast %70 : vector<1x32xf32> to vector<128x32xf32>
    %109 = arith.mulf %35, %108 : vector<128x32xf32>
    %110 = vector.broadcast %74 : vector<1x32xf32> to vector<128x32xf32>
    %111 = arith.mulf %35, %110 : vector<128x32xf32>
    %112 = vector.broadcast %78 : vector<1x32xf32> to vector<128x32xf32>
    %113 = arith.mulf %35, %112 : vector<128x32xf32>
    %114 = vector.broadcast %82 : vector<1x32xf32> to vector<128x32xf32>
    %115 = arith.mulf %35, %114 : vector<128x32xf32>
    %116 = tpu.concatenate %109, %111, %113, %115 in 0 : vector<128x32xf32>, vector<128x32xf32>, vector<128x32xf32>, vector<128x32xf32> -> vector<512x32xf32>
    %cst_34 = arith.constant dense<0.000000e+00> : vector<128x512xf32>
    %117 = tpu.matmul %29, %107, %cst_34 {dimension_numbers = #tpu.dot_dimension_numbers<[1], [0], [0], [1], [0, 0, 1, 1], [], []>} : vector<128x32xf32>, vector<32x512xf32>, vector<128x512xf32> -> vector<128x512xf32>
    %cst_35 = arith.constant 0.000000e+00 : f32
    %118 = vector.broadcast %cst_35 : f32 to vector<128x32xf32>
    %c0_36 = arith.constant 0 : index
    %c0_37 = arith.constant 0 : index
    %119 = vector.load %arg5[%c0_36, %c0_37] : memref<128x128xf32, #tpu.memory_space<vmem>>, vector<32x128xf32>
    %120 = tpu.concatenate %119, %119, %119, %119 in 0 : vector<32x128xf32>, vector<32x128xf32>, vector<32x128xf32>, vector<32x128xf32> -> vector<128x128xf32>
    %121 = vector.extract_strided_slice %117 {offsets = [0, 0], sizes = [128, 128], strides = [1, 1]} : vector<128x512xf32> to vector<128x128xf32>
    %122 = arith.addf %121, %120 : vector<128x128xf32>
    %123 = arith.addf %122, %60 : vector<128x128xf32>
    %cst_38 = arith.constant dense<0xFF800000> : vector<128xf32>
    %124 = vector.multi_reduction <maximumf>, %123, %cst_38 [1] : vector<128x128xf32> to vector<128xf32>
    %125 = vector.shape_cast %124 : vector<128xf32> to vector<128x1xf32>
    %126 = vector.broadcast %125 : vector<128x1xf32> to vector<128x128xf32>
    %127 = arith.subf %123, %126 : vector<128x128xf32>
    %128 = math.exp %127 : vector<128x128xf32>
    %cst_39 = arith.constant dense<0.000000e+00> : vector<128xf32>
    %129 = vector.multi_reduction <add>, %128, %cst_39 [1] : vector<128x128xf32> to vector<128xf32>
    %130 = vector.shape_cast %129 : vector<128xf32> to vector<128x1xf32>
    %131 = tpu.reciprocal %130 : vector<128x1xf32> -> vector<128x1xf32>
    %132 = vector.broadcast %131 : vector<128x1xf32> to vector<128x32xf32>
    %133 = vector.broadcast %70 : vector<1x32xf32> to vector<128x32xf32>
    %134 = arith.mulf %132, %133 : vector<128x32xf32>
    %135 = arith.addf %118, %134 : vector<128x32xf32>
    %c32_40 = arith.constant 32 : index
    %c0_41 = arith.constant 0 : index
    %136 = vector.load %arg5[%c32_40, %c0_41] : memref<128x128xf32, #tpu.memory_space<vmem>>, vector<32x128xf32>
    %137 = tpu.concatenate %136, %136, %136, %136 in 0 : vector<32x128xf32>, vector<32x128xf32>, vector<32x128xf32>, vector<32x128xf32> -> vector<128x128xf32>
    %138 = vector.extract_strided_slice %117 {offsets = [0, 128], sizes = [128, 128], strides = [1, 1]} : vector<128x512xf32> to vector<128x128xf32>
    %139 = arith.addf %138, %137 : vector<128x128xf32>
    %140 = arith.addf %139, %60 : vector<128x128xf32>
    %cst_42 = arith.constant dense<0xFF800000> : vector<128xf32>
    %141 = vector.multi_reduction <maximumf>, %140, %cst_42 [1] : vector<128x128xf32> to vector<128xf32>
    %142 = vector.shape_cast %141 : vector<128xf32> to vector<128x1xf32>
    %143 = vector.broadcast %142 : vector<128x1xf32> to vector<128x128xf32>
    %144 = arith.subf %140, %143 : vector<128x128xf32>
    %145 = math.exp %144 : vector<128x128xf32>
    %cst_43 = arith.constant dense<0.000000e+00> : vector<128xf32>
    %146 = vector.multi_reduction <add>, %145, %cst_43 [1] : vector<128x128xf32> to vector<128xf32>
    %147 = vector.shape_cast %146 : vector<128xf32> to vector<128x1xf32>
    %148 = tpu.reciprocal %147 : vector<128x1xf32> -> vector<128x1xf32>
    %149 = vector.broadcast %148 : vector<128x1xf32> to vector<128x32xf32>
    %150 = vector.broadcast %74 : vector<1x32xf32> to vector<128x32xf32>
    %151 = arith.mulf %149, %150 : vector<128x32xf32>
    %152 = arith.addf %135, %151 : vector<128x32xf32>
    %c64_44 = arith.constant 64 : index
    %c0_45 = arith.constant 0 : index
    %153 = vector.load %arg5[%c64_44, %c0_45] : memref<128x128xf32, #tpu.memory_space<vmem>>, vector<32x128xf32>
    %154 = tpu.concatenate %153, %153, %153, %153 in 0 : vector<32x128xf32>, vector<32x128xf32>, vector<32x128xf32>, vector<32x128xf32> -> vector<128x128xf32>
    %155 = vector.extract_strided_slice %117 {offsets = [0, 256], sizes = [128, 128], strides = [1, 1]} : vector<128x512xf32> to vector<128x128xf32>
    %156 = arith.addf %155, %154 : vector<128x128xf32>
    %157 = arith.addf %156, %60 : vector<128x128xf32>
    %cst_46 = arith.constant dense<0xFF800000> : vector<128xf32>
    %158 = vector.multi_reduction <maximumf>, %157, %cst_46 [1] : vector<128x128xf32> to vector<128xf32>
    %159 = vector.shape_cast %158 : vector<128xf32> to vector<128x1xf32>
    %160 = vector.broadcast %159 : vector<128x1xf32> to vector<128x128xf32>
    %161 = arith.subf %157, %160 : vector<128x128xf32>
    %162 = math.exp %161 : vector<128x128xf32>
    %cst_47 = arith.constant dense<0.000000e+00> : vector<128xf32>
    %163 = vector.multi_reduction <add>, %162, %cst_47 [1] : vector<128x128xf32> to vector<128xf32>
    %164 = vector.shape_cast %163 : vector<128xf32> to vector<128x1xf32>
    %165 = tpu.reciprocal %164 : vector<128x1xf32> -> vector<128x1xf32>
    %166 = vector.broadcast %165 : vector<128x1xf32> to vector<128x32xf32>
    %167 = vector.broadcast %78 : vector<1x32xf32> to vector<128x32xf32>
    %168 = arith.mulf %166, %167 : vector<128x32xf32>
    %169 = arith.addf %152, %168 : vector<128x32xf32>
    %c96_48 = arith.constant 96 : index
    %c0_49 = arith.constant 0 : index
    %170 = vector.load %arg5[%c96_48, %c0_49] : memref<128x128xf32, #tpu.memory_space<vmem>>, vector<32x128xf32>
    %171 = tpu.concatenate %170, %170, %170, %170 in 0 : vector<32x128xf32>, vector<32x128xf32>, vector<32x128xf32>, vector<32x128xf32> -> vector<128x128xf32>
    %172 = vector.extract_strided_slice %117 {offsets = [0, 384], sizes = [128, 128], strides = [1, 1]} : vector<128x512xf32> to vector<128x128xf32>
    %173 = arith.addf %172, %171 : vector<128x128xf32>
    %174 = arith.addf %173, %60 : vector<128x128xf32>
    %cst_50 = arith.constant dense<0xFF800000> : vector<128xf32>
    %175 = vector.multi_reduction <maximumf>, %174, %cst_50 [1] : vector<128x128xf32> to vector<128xf32>
    %176 = vector.shape_cast %175 : vector<128xf32> to vector<128x1xf32>
    %177 = vector.broadcast %176 : vector<128x1xf32> to vector<128x128xf32>
    %178 = arith.subf %174, %177 : vector<128x128xf32>
    %179 = math.exp %178 : vector<128x128xf32>
    %cst_51 = arith.constant dense<0.000000e+00> : vector<128xf32>
    %180 = vector.multi_reduction <add>, %179, %cst_51 [1] : vector<128x128xf32> to vector<128xf32>
    %181 = vector.shape_cast %180 : vector<128xf32> to vector<128x1xf32>
    %182 = tpu.reciprocal %181 : vector<128x1xf32> -> vector<128x1xf32>
    %183 = vector.broadcast %182 : vector<128x1xf32> to vector<128x32xf32>
    %184 = vector.broadcast %82 : vector<1x32xf32> to vector<128x32xf32>
    %185 = arith.mulf %183, %184 : vector<128x32xf32>
    %186 = arith.addf %169, %185 : vector<128x32xf32>
    %187 = tpu.concatenate %128, %145, %162, %179 in 1 : vector<128x128xf32>, vector<128x128xf32>, vector<128x128xf32>, vector<128x128xf32> -> vector<128x512xf32>
    %cst_52 = arith.constant dense<0.000000e+00> : vector<128x32xf32>
    %188 = tpu.matmul %187, %116, %cst_52 {dimension_numbers = #tpu.dot_dimension_numbers<[1], [0], [0], [1], [0, 0, 1, 1], [], []>} : vector<128x512xf32>, vector<512x32xf32>, vector<128x32xf32> -> vector<128x32xf32>
    %189 = arith.mulf %188, %186 : vector<128x32xf32>
    %cst_53 = arith.constant dense<0.000000e+00> : vector<128x32xf32>
    %190 = tpu.matmul %189, %20, %cst_53 {dimension_numbers = #tpu.dot_dimension_numbers<[1], [0], [0], [1], [0, 0, 1, 1], [], []>} : vector<128x32xf32>, vector<32x32xf32>, vector<128x32xf32> -> vector<128x32xf32>
    %191 = arith.addf %0, %190 : vector<128x32xf32>
    %192 = vector.broadcast %25 : vector<1x32xf32> to vector<128x32xf32>
    %193 = arith.addf %191, %192 : vector<128x32xf32>
    %cst_54 = arith.constant dense<0.000000e+00> : vector<128xf32>
    %194 = vector.multi_reduction <add>, %193, %cst_54 [1] : vector<128x32xf32> to vector<128xf32>
    %195 = vector.shape_cast %194 : vector<128xf32> to vector<128x1xf32>
    %cst_55 = arith.constant 3.200000e+01 : f32
    %196 = vector.broadcast %cst_55 : f32 to vector<128x1xf32>
    %197 = arith.divf %195, %196 : vector<128x1xf32>
    %198 = vector.broadcast %197 : vector<128x1xf32> to vector<128x32xf32>
    %199 = arith.subf %193, %198 : vector<128x32xf32>
    %200 = arith.mulf %199, %199 : vector<128x32xf32>
    %cst_56 = arith.constant dense<0.000000e+00> : vector<128xf32>
    %201 = vector.multi_reduction <add>, %200, %cst_56 [1] : vector<128x32xf32> to vector<128xf32>
    %202 = vector.shape_cast %201 : vector<128xf32> to vector<128x1xf32>
    %cst_57 = arith.constant 3.200000e+01 : f32
    %203 = vector.broadcast %cst_57 : f32 to vector<128x1xf32>
    %204 = arith.divf %202, %203 : vector<128x1xf32>
    %cst_58 = arith.constant 9.99999974E-6 : f32
    %205 = vector.broadcast %cst_58 : f32 to vector<128x1xf32>
    %206 = arith.addf %204, %205 : vector<128x1xf32>
    %207 = math.sqrt %206 : vector<128x1xf32>
    %208 = vector.broadcast %207 : vector<128x1xf32> to vector<128x32xf32>
    %209 = arith.divf %199, %208 : vector<128x32xf32>
    %c0_59 = arith.constant 0 : index
    %c0_60 = arith.constant 0 : index
    %210 = vector.load %arg2[%c0_59, %c0_60] : memref<32x128xf32, #tpu.memory_space<vmem>>, vector<32x128xf32>
    %cst_61 = arith.constant dense<0.000000e+00> : vector<128x128xf32>
    %211 = tpu.matmul %209, %210, %cst_61 {dimension_numbers = #tpu.dot_dimension_numbers<[1], [0], [0], [1], [0, 0, 1, 1], [], []>} : vector<128x32xf32>, vector<32x128xf32>, vector<128x128xf32> -> vector<128x128xf32>
    %212 = vector.broadcast %21 : vector<1x128xf32> to vector<128x128xf32>
    %213 = arith.addf %211, %212 : vector<128x128xf32>
    %cst_62 = arith.constant 5.000000e-01 : f32
    %214 = vector.broadcast %cst_62 : f32 to vector<128x128xf32>
    %215 = arith.mulf %214, %213 : vector<128x128xf32>
    %cst_63 = arith.constant 1.41421354 : f32
    %216 = vector.broadcast %cst_63 : f32 to vector<128x128xf32>
    %217 = arith.divf %213, %216 : vector<128x128xf32>
    %218 = math.erf %217 : vector<128x128xf32>
    %cst_64 = arith.constant 1.000000e+00 : f32
    %219 = vector.broadcast %cst_64 : f32 to vector<128x128xf32>
    %220 = arith.addf %219, %218 : vector<128x128xf32>
    %221 = arith.mulf %215, %220 : vector<128x128xf32>
    %c0_65 = arith.constant 0 : index
    %c0_66 = arith.constant 0 : index
    %222 = vector.load %arg3[%c0_65, %c0_66] : memref<128x32xf32, #tpu.memory_space<vmem>>, vector<128x32xf32>
    %cst_67 = arith.constant dense<0.000000e+00> : vector<128x32xf32>
    %223 = tpu.matmul %221, %222, %cst_67 {dimension_numbers = #tpu.dot_dimension_numbers<[1], [0], [0], [1], [0, 0, 1, 1], [], []>} : vector<128x128xf32>, vector<128x32xf32>, vector<128x32xf32> -> vector<128x32xf32>
    %224 = arith.addf %193, %223 : vector<128x32xf32>
    %225 = vector.broadcast %26 : vector<1x32xf32> to vector<128x32xf32>
    %226 = arith.addf %224, %225 : vector<128x32xf32>
    %c0_68 = arith.constant 0 : index
    %c0_69 = arith.constant 0 : index
    %227 = vector.load %arg6[%c0_68, %c0_69] : memref<128x32xf32, #tpu.memory_space<vmem>>, vector<128x32xf32>
    tpu.vector_store %arg6[%c0_68, %c0_69], %226 {strides = array<i32>} : memref<128x32xf32, #tpu.memory_space<vmem>>, vector<128x32xf32>,
    return
  }
}

</mosaic_0001>

<llo_original>
// kernel: basic_layer_up_forward.1
$region0: #{basic_layer_up_forward.1}
  #allocation0 [shape = 'u32[]', space=smem, size = 0x4, offset = 0x4, fixed_abs, tag = 'smem constant byte address 0x4 - core index']
  #allocation1 [shape = 'u32[144,128]{1,0:T(1,128)}', space=vmem, size = 0x12000, scoped, tag = 'internal scratch']
  %s0 = inlined_call_operand.vmem [shape: f32[128,32], index: 0, kind: input, shape index: {}]
  %s1 = inlined_call_operand.vmem [shape: f32[128,32], index: 1, kind: input, shape index: {}]
  %s2 = inlined_call_operand.vmem [shape: f32[32,128], index: 2, kind: input, shape index: {}]
  %s3 = inlined_call_operand.vmem [shape: f32[128,32], index: 3, kind: input, shape index: {}]
  %s4 = inlined_call_operand.vmem [shape: f32[8,128], index: 4, kind: input, shape index: {}]
  %s5 = inlined_call_operand.vmem [shape: f32[128,128], index: 5, kind: input, shape index: {}]
  %s6 = inlined_call_operand.vmem [shape: f32[128,32], index: 6, kind: output, shape index: {}]
  %s7 = sld [smem:[#allocation0]]
  $region34: #{basic_layer_up_forward.1} parent=0
    _
  %s9 = ssub.s32 1, %s7
  %s10 = scalar_select 0, %s9, %s7
  // Predicated region
  $region2: #{basic_layer_up_forward.1} parent=0 // pred_check
    _
  $region3: #{basic_layer_up_forward.1} parent=0 // pred_check_branch
    %12 = sbr.rel (0) target = $region5
  $region4: #{basic_layer_up_forward.1} parent=0 // pred_region
    _
  $region5: #{basic_layer_up_forward.1} parent=0 // pred_fallthru
    _
  // Predicated region
  $region6: #{basic_layer_up_forward.1} parent=0 // pred_check
    _
  $region7: #{basic_layer_up_forward.1} parent=0 // pred_check_branch
    %14 = sbr.rel (0) target = $region9
  $region8: #{basic_layer_up_forward.1} parent=0 // pred_region
    _
  $region9: #{basic_layer_up_forward.1} parent=0 // pred_fallthru
    _
  // Predicated region
  $region10: #{basic_layer_up_forward.1} parent=0 // pred_check
    _
  $region11: #{basic_layer_up_forward.1} parent=0 // pred_check_branch
    %16 = sbr.rel (0) target = $region13
  $region12: #{basic_layer_up_forward.1} parent=0 // pred_region
    _
  $region13: #{basic_layer_up_forward.1} parent=0 // pred_fallthru
    _
  // Predicated region
  $region14: #{basic_layer_up_forward.1} parent=0 // pred_check
    _
  $region15: #{basic_layer_up_forward.1} parent=0 // pred_check_branch
    %18 = sbr.rel (0) target = $region17
  $region16: #{basic_layer_up_forward.1} parent=0 // pred_region
    _
  $region17: #{basic_layer_up_forward.1} parent=0 // pred_fallthru
    _
  // Predicated region
  $region18: #{basic_layer_up_forward.1} parent=0 // pred_check
    _
  $region19: #{basic_layer_up_forward.1} parent=0 // pred_check_branch
    %20 = sbr.rel (0) target = $region21
  $region20: #{basic_layer_up_forward.1} parent=0 // pred_region
    _
  $region21: #{basic_layer_up_forward.1} parent=0 // pred_fallthru
    _
  // Predicated region
  $region22: #{basic_layer_up_forward.1} parent=0 // pred_check
    _
  $region23: #{basic_layer_up_forward.1} parent=0 // pred_check_branch
    %22 = sbr.rel (0) target = $region25
  $region24: #{basic_layer_up_forward.1} parent=0 // pred_region
    _
  $region25: #{basic_layer_up_forward.1} parent=0 // pred_fallthru
    _
  %v23 = vld [vmem:[%s0] sm:$0xff]
  %v24 = vld [vmem:[%s0 + $0x8] sm:$0xff]
  %v25 = vld [vmem:[%s0 + $0x10] sm:$0xff]
  %v26 = vld [vmem:[%s0 + $0x18] sm:$0xff]
  %v27 = vld [vmem:[%s0 + $0x20] sm:$0xff]
  %v28 = vld [vmem:[%s0 + $0x28] sm:$0xff]
  %v29 = vld [vmem:[%s0 + $0x30] sm:$0xff]
  %v30 = vld [vmem:[%s0 + $0x38] sm:$0xff]
  %v31 = vld [vmem:[%s0 + $0x40] sm:$0xff]
  %v32 = vld [vmem:[%s0 + $0x48] sm:$0xff]
  %v33 = vld [vmem:[%s0 + $0x50] sm:$0xff]
  %v34 = vld [vmem:[%s0 + $0x58] sm:$0xff]
  %v35 = vld [vmem:[%s0 + $0x60] sm:$0xff]
  %v36 = vld [vmem:[%s0 + $0x68] sm:$0xff]
  %v37 = vld [vmem:[%s0 + $0x70] sm:$0xff]
  %v38 = vld [vmem:[%s0 + $0x78] sm:$0xff]
  %vm39 = vcmask 261120
  %v40 = vsel %vm39, %v23, 0.0
  %41 = vadd.xlane.f32.xlu0 %v40
  %v42 = vpop.xlane.xlu0 %41
  %v43 = vsel %vm39, %v24, 0.0
  %44 = vadd.xlane.f32.xlu0 %v43
  %v45 = vpop.xlane.xlu0 %44
  %v46 = vsel %vm39, %v25, 0.0
  %47 = vadd.xlane.f32.xlu0 %v46
  %v48 = vpop.xlane.xlu0 %47
  %v49 = vsel %vm39, %v26, 0.0
  %50 = vadd.xlane.f32.xlu0 %v49
  %v51 = vpop.xlane.xlu0 %50
  %v52 = vsel %vm39, %v27, 0.0
  %53 = vadd.xlane.f32.xlu0 %v52
  %v54 = vpop.xlane.xlu0 %53
  %v55 = vsel %vm39, %v28, 0.0
  %56 = vadd.xlane.f32.xlu0 %v55
  %v57 = vpop.xlane.xlu0 %56
  %v58 = vsel %vm39, %v29, 0.0
  %59 = vadd.xlane.f32.xlu0 %v58
  %v60 = vpop.xlane.xlu0 %59
  %v61 = vsel %vm39, %v30, 0.0
  %62 = vadd.xlane.f32.xlu0 %v61
  %v63 = vpop.xlane.xlu0 %62
  %v64 = vsel %vm39, %v31, 0.0
  %65 = vadd.xlane.f32.xlu0 %v64
  %v66 = vpop.xlane.xlu0 %65
  %v67 = vsel %vm39, %v32, 0.0
  %68 = vadd.xlane.f32.xlu0 %v67
  %v69 = vpop.xlane.xlu0 %68
  %v70 = vsel %vm39, %v33, 0.0
  %71 = vadd.xlane.f32.xlu0 %v70
  %v72 = vpop.xlane.xlu0 %71
  %v73 = vsel %vm39, %v34, 0.0
  %74 = vadd.xlane.f32.xlu0 %v73
  %v75 = vpop.xlane.xlu0 %74
  %v76 = vsel %vm39, %v35, 0.0
  %77 = vadd.xlane.f32.xlu0 %v76
  %v78 = vpop.xlane.xlu0 %77
  %v79 = vsel %vm39, %v36, 0.0
  %80 = vadd.xlane.f32.xlu0 %v79
  %v81 = vpop.xlane.xlu0 %80
  %v82 = vsel %vm39, %v37, 0.0
  %83 = vadd.xlane.f32.xlu0 %v82
  %v84 = vpop.xlane.xlu0 %83
  %v85 = vsel %vm39, %v38, 0.0
  %86 = vadd.xlane.f32.xlu0 %v85
  %v87 = vpop.xlane.xlu0 %86
  %v88 = vrcp.pop 32.0
  %v89 = vmul.f32 %v42, %v88
  %v90 = vmul.f32 %v45, %v88
  %v91 = vmul.f32 %v48, %v88
  %v92 = vmul.f32 %v51, %v88
  %v93 = vmul.f32 %v54, %v88
  %v94 = vmul.f32 %v57, %v88
  %v95 = vmul.f32 %v60, %v88
  %v96 = vmul.f32 %v63, %v88
  %v97 = vmul.f32 %v66, %v88
  %v98 = vmul.f32 %v69, %v88
  %v99 = vmul.f32 %v72, %v88
  %v100 = vmul.f32 %v75, %v88
  %v101 = vmul.f32 %v78, %v88
  %v102 = vmul.f32 %v81, %v88
  %v103 = vmul.f32 %v84, %v88
  %v104 = vmul.f32 %v87, %v88
  %v105 = vsub.f32 %v23, %v89
  %v106 = vsub.f32 %v24, %v90
  %v107 = vsub.f32 %v25, %v91
  %v108 = vsub.f32 %v26, %v92
  %v109 = vsub.f32 %v27, %v93
  %v110 = vsub.f32 %v28, %v94
  %v111 = vsub.f32 %v29, %v95
  %v112 = vsub.f32 %v30, %v96
  %v113 = vsub.f32 %v31, %v97
  %v114 = vsub.f32 %v32, %v98
  %v115 = vsub.f32 %v33, %v99
  %v116 = vsub.f32 %v34, %v100
  %v117 = vsub.f32 %v35, %v101
  %v118 = vsub.f32 %v36, %v102
  %v119 = vsub.f32 %v37, %v103
  %v120 = vsub.f32 %v38, %v104
  %v121 = vmul.f32 %v105, %v105
  %v122 = vmul.f32 %v106, %v106
  %v123 = vmul.f32 %v107, %v107
  %v124 = vmul.f32 %v108, %v108
  %v125 = vmul.f32 %v109, %v109
  %v126 = vmul.f32 %v110, %v110
  %v127 = vmul.f32 %v111, %v111
  %v128 = vmul.f32 %v112, %v112
  %v129 = vmul.f32 %v113, %v113
  %v130 = vmul.f32 %v114, %v114
  %v131 = vmul.f32 %v115, %v115
  %v132 = vmul.f32 %v116, %v116
  %v133 = vmul.f32 %v117, %v117
  %v134 = vmul.f32 %v118, %v118
  %v135 = vmul.f32 %v119, %v119
  %v136 = vmul.f32 %v120, %v120
  %v137 = vsel %vm39, %v121, 0.0
  %138 = vadd.xlane.f32.xlu0 %v137
  %v139 = vpop.xlane.xlu0 %138
  %v140 = vsel %vm39, %v122, 0.0
  %141 = vadd.xlane.f32.xlu0 %v140
  %v142 = vpop.xlane.xlu0 %141
  %v143 = vsel %vm39, %v123, 0.0
  %144 = vadd.xlane.f32.xlu0 %v143
  %v145 = vpop.xlane.xlu0 %144
  %v146 = vsel %vm39, %v124, 0.0
  %147 = vadd.xlane.f32.xlu0 %v146
  %v148 = vpop.xlane.xlu0 %147
  %v149 = vsel %vm39, %v125, 0.0
  %150 = vadd.xlane.f32.xlu0 %v149
  %v151 = vpop.xlane.xlu0 %150
  %v152 = vsel %vm39, %v126, 0.0
  %153 = vadd.xlane.f32.xlu0 %v152
  %v154 = vpop.xlane.xlu0 %153
  %v155 = vsel %vm39, %v127, 0.0
  %156 = vadd.xlane.f32.xlu0 %v155
  %v157 = vpop.xlane.xlu0 %156
  %v158 = vsel %vm39, %v128, 0.0
  %159 = vadd.xlane.f32.xlu0 %v158
  %v160 = vpop.xlane.xlu0 %159
  %v161 = vsel %vm39, %v129, 0.0
  %162 = vadd.xlane.f32.xlu0 %v161
  %v163 = vpop.xlane.xlu0 %162
  %v164 = vsel %vm39, %v130, 0.0
  %165 = vadd.xlane.f32.xlu0 %v164
  %v166 = vpop.xlane.xlu0 %165
  %v167 = vsel %vm39, %v131, 0.0
  %168 = vadd.xlane.f32.xlu0 %v167
  %v169 = vpop.xlane.xlu0 %168
  %v170 = vsel %vm39, %v132, 0.0
  %171 = vadd.xlane.f32.xlu0 %v170
  %v172 = vpop.xlane.xlu0 %171
  %v173 = vsel %vm39, %v133, 0.0
  %174 = vadd.xlane.f32.xlu0 %v173
  %v175 = vpop.xlane.xlu0 %174
  %v176 = vsel %vm39, %v134, 0.0
  %177 = vadd.xlane.f32.xlu0 %v176
  %v178 = vpop.xlane.xlu0 %177
  %v179 = vsel %vm39, %v135, 0.0
  %180 = vadd.xlane.f32.xlu0 %v179
  %v181 = vpop.xlane.xlu0 %180
  %v182 = vsel %vm39, %v136, 0.0
  %183 = vadd.xlane.f32.xlu0 %v182
  %v184 = vpop.xlane.xlu0 %183
  %v185 = vmul.f32 %v139, %v88
  %v186 = vmul.f32 %v142, %v88
  %v187 = vmul.f32 %v145, %v88
  %v188 = vmul.f32 %v148, %v88
  %v189 = vmul.f32 %v151, %v88
  %v190 = vmul.f32 %v154, %v88
  %v191 = vmul.f32 %v157, %v88
  %v192 = vmul.f32 %v160, %v88
  %v193 = vmul.f32 %v163, %v88
  %v194 = vmul.f32 %v166, %v88
  %v195 = vmul.f32 %v169, %v88
  %v196 = vmul.f32 %v172, %v88
  %v197 = vmul.f32 %v175, %v88
  %v198 = vmul.f32 %v178, %v88
  %v199 = vmul.f32 %v181, %v88
  %v200 = vmul.f32 %v184, %v88
  %v201 = vadd.f32 %v185, 1e-05
  %v202 = vadd.f32 %v186, 1e-05
  %v203 = vadd.f32 %v187, 1e-05
  %v204 = vadd.f32 %v188, 1e-05
  %v205 = vadd.f32 %v189, 1e-05
  %v206 = vadd.f32 %v190, 1e-05
  %v207 = vadd.f32 %v191, 1e-05
  %v208 = vadd.f32 %v192, 1e-05
  %v209 = vadd.f32 %v193, 1e-05
  %v210 = vadd.f32 %v194, 1e-05
  %v211 = vadd.f32 %v195, 1e-05
  %v212 = vadd.f32 %v196, 1e-05
  %v213 = vadd.f32 %v197, 1e-05
  %v214 = vadd.f32 %v198, 1e-05
  %v215 = vadd.f32 %v199, 1e-05
  %v216 = vadd.f32 %v200, 1e-05
  %v217 = vrsqrt.pop %v201
  %v218 = vmul.f32 %v201, %v217
  %vm219 = vcmp.eq.f32.partialorder %v201, inf
  %v220 = vsel %vm219, %v201, %v218
  %vm221 = vcmp.eq.f32.partialorder %v201, 0.0
  %v222 = vand.u32 %v201, 2147483648
  %v223 = vsel %vm221, %v222, %v220
  %v224 = vrsqrt.pop %v202
  %v225 = vmul.f32 %v202, %v224
  %vm226 = vcmp.eq.f32.partialorder %v202, inf
  %v227 = vsel %vm226, %v202, %v225
  %vm228 = vcmp.eq.f32.partialorder %v202, 0.0
  %v229 = vand.u32 %v202, 2147483648
  %v230 = vsel %vm228, %v229, %v227
  %v231 = vrsqrt.pop %v203
  %v232 = vmul.f32 %v203, %v231
  %vm233 = vcmp.eq.f32.partialorder %v203, inf
  %v234 = vsel %vm233, %v203, %v232
  %vm235 = vcmp.eq.f32.partialorder %v203, 0.0
  %v236 = vand.u32 %v203, 2147483648
  %v237 = vsel %vm235, %v236, %v234
  %v238 = vrsqrt.pop %v204
  %v239 = vmul.f32 %v204, %v238
  %vm240 = vcmp.eq.f32.partialorder %v204, inf
  %v241 = vsel %vm240, %v204, %v239
  %vm242 = vcmp.eq.f32.partialorder %v204, 0.0
  %v243 = vand.u32 %v204, 2147483648
  %v244 = vsel %vm242, %v243, %v241
  %v245 = vrsqrt.pop %v205
  %v246 = vmul.f32 %v205, %v245
  %vm247 = vcmp.eq.f32.partialorder %v205, inf
  %v248 = vsel %vm247, %v205, %v246
  %vm249 = vcmp.eq.f32.partialorder %v205, 0.0
  %v250 = vand.u32 %v205, 2147483648
  %v251 = vsel %vm249, %v250, %v248
  %v252 = vrsqrt.pop %v206
  %v253 = vmul.f32 %v206, %v252
  %vm254 = vcmp.eq.f32.partialorder %v206, inf
  %v255 = vsel %vm254, %v206, %v253
  %vm256 = vcmp.eq.f32.partialorder %v206, 0.0
  %v257 = vand.u32 %v206, 2147483648
  %v258 = vsel %vm256, %v257, %v255
  %v259 = vrsqrt.pop %v207
  %v260 = vmul.f32 %v207, %v259
  %vm261 = vcmp.eq.f32.partialorder %v207, inf
  %v262 = vsel %vm261, %v207, %v260
  %vm263 = vcmp.eq.f32.partialorder %v207, 0.0
  %v264 = vand.u32 %v207, 2147483648
  %v265 = vsel %vm263, %v264, %v262
  %v266 = vrsqrt.pop %v208
  %v267 = vmul.f32 %v208, %v266
  %vm268 = vcmp.eq.f32.partialorder %v208, inf
  %v269 = vsel %vm268, %v208, %v267
  %vm270 = vcmp.eq.f32.partialorder %v208, 0.0
  %v271 = vand.u32 %v208, 2147483648
  %v272 = vsel %vm270, %v271, %v269
  %v273 = vrsqrt.pop %v209
  %v274 = vmul.f32 %v209, %v273
  %vm275 = vcmp.eq.f32.partialorder %v209, inf
  %v276 = vsel %vm275, %v209, %v274
  %vm277 = vcmp.eq.f32.partialorder %v209, 0.0
  %v278 = vand.u32 %v209, 2147483648
  %v279 = vsel %vm277, %v278, %v276
  %v280 = vrsqrt.pop %v210
  %v281 = vmul.f32 %v210, %v280
  %vm282 = vcmp.eq.f32.partialorder %v210, inf
  %v283 = vsel %vm282, %v210, %v281
  %vm284 = vcmp.eq.f32.partialorder %v210, 0.0
  %v285 = vand.u32 %v210, 2147483648
  %v286 = vsel %vm284, %v285, %v283
  %v287 = vrsqrt.pop %v211
  %v288 = vmul.f32 %v211, %v287
  %vm289 = vcmp.eq.f32.partialorder %v211, inf
  %v290 = vsel %vm289, %v211, %v288
  %vm291 = vcmp.eq.f32.partialorder %v211, 0.0
  %v292 = vand.u32 %v211, 2147483648
  %v293 = vsel %vm291, %v292, %v290
  %v294 = vrsqrt.pop %v212
  %v295 = vmul.f32 %v212, %v294
  %vm296 = vcmp.eq.f32.partialorder %v212, inf
  %v297 = vsel %vm296, %v212, %v295
  %vm298 = vcmp.eq.f32.partialorder %v212, 0.0
  %v299 = vand.u32 %v212, 2147483648
  %v300 = vsel %vm298, %v299, %v297
  %v301 = vrsqrt.pop %v213
  %v302 = vmul.f32 %v213, %v301
  %vm303 = vcmp.eq.f32.partialorder %v213, inf
  %v304 = vsel %vm303, %v213, %v302
  %vm305 = vcmp.eq.f32.partialorder %v213, 0.0
  %v306 = vand.u32 %v213, 2147483648
  %v307 = vsel %vm305, %v306, %v304
  %v308 = vrsqrt.pop %v214
  %v309 = vmul.f32 %v214, %v308
  %vm310 = vcmp.eq.f32.partialorder %v214, inf
  %v311 = vsel %vm310, %v214, %v309
  %vm312 = vcmp.eq.f32.partialorder %v214, 0.0
  %v313 = vand.u32 %v214, 2147483648
  %v314 = vsel %vm312, %v313, %v311
  %v315 = vrsqrt.pop %v215
  %v316 = vmul.f32 %v215, %v315
  %vm317 = vcmp.eq.f32.partialorder %v215, inf
  %v318 = vsel %vm317, %v215, %v316
  %vm319 = vcmp.eq.f32.partialorder %v215, 0.0
  %v320 = vand.u32 %v215, 2147483648
  %v321 = vsel %vm319, %v320, %v318
  %v322 = vrsqrt.pop %v216
  %v323 = vmul.f32 %v216, %v322
  %vm324 = vcmp.eq.f32.partialorder %v216, inf
  %v325 = vsel %vm324, %v216, %v323
  %vm326 = vcmp.eq.f32.partialorder %v216, 0.0
  %v327 = vand.u32 %v216, 2147483648
  %v328 = vsel %vm326, %v327, %v325
  %v329 = vrcp.pop %v223
  %v330 = vmul.f32 %v105, %v329
  %v331 = vrcp.pop %v230
  %v332 = vmul.f32 %v106, %v331
  %v333 = vrcp.pop %v237
  %v334 = vmul.f32 %v107, %v333
  %v335 = vrcp.pop %v244
  %v336 = vmul.f32 %v108, %v335
  %v337 = vrcp.pop %v251
  %v338 = vmul.f32 %v109, %v337
  %v339 = vrcp.pop %v258
  %v340 = vmul.f32 %v110, %v339
  %v341 = vrcp.pop %v265
  %v342 = vmul.f32 %v111, %v341
  %v343 = vrcp.pop %v272
  %v344 = vmul.f32 %v112, %v343
  %v345 = vrcp.pop %v279
  %v346 = vmul.f32 %v113, %v345
  %v347 = vrcp.pop %v286
  %v348 = vmul.f32 %v114, %v347
  %v349 = vrcp.pop %v293
  %v350 = vmul.f32 %v115, %v349
  %v351 = vrcp.pop %v300
  %v352 = vmul.f32 %v116, %v351
  %v353 = vrcp.pop %v307
  %v354 = vmul.f32 %v117, %v353
  %v355 = vrcp.pop %v314
  %v356 = vmul.f32 %v118, %v355
  %v357 = vrcp.pop %v321
  %v358 = vmul.f32 %v119, %v357
  %v359 = vrcp.pop %v328
  %v360 = vmul.f32 %v120, %v359
  %v361 = vld [vmem:[%s1] sm:$0xff]
  %v362 = vld [vmem:[%s1 + $0x8] sm:$0xff]
  %v363 = vld [vmem:[%s1 + $0x10] sm:$0xff]
  %v364 = vld [vmem:[%s1 + $0x18] sm:$0xff]
  %v365 = vld [vmem:[%s1 + $0x20] sm:$0xff]
  %v366 = vld [vmem:[%s1 + $0x28] sm:$0xff]
  %v367 = vld [vmem:[%s1 + $0x30] sm:$0xff]
  %v368 = vld [vmem:[%s1 + $0x38] sm:$0xff]
  %v369 = vld [vmem:[%s1 + $0x40] sm:$0xff]
  %v370 = vld [vmem:[%s1 + $0x48] sm:$0xff]
  %v371 = vld [vmem:[%s1 + $0x50] sm:$0xff]
  %v372 = vld [vmem:[%s1 + $0x58] sm:$0xff]
  %v373 = vld [vmem:[%s1 + $0x60] sm:$0xff]
  %v374 = vld [vmem:[%s1 + $0x68] sm:$0xff]
  %v375 = vld [vmem:[%s1 + $0x70] sm:$0xff]
  %v376 = vld [vmem:[%s1 + $0x78] sm:$0xff]
  %v377 = vld [vmem:[%s4] sm:$0x1]
  %v378 = vld [vmem:[%s4 + $0x1] sm:$0x1]
  %v379 = vld [vmem:[%s4 + $0x2] sm:$0x1]
  %v380 = vld [vmem:[%s4 + $0x3] sm:$0x1]
  %v381 = vld [vmem:[%s4 + $0x4] sm:$0x1]
  %v382 = vld [vmem:[%s4 + $0x5] sm:$0x1]
  %v383 = vlaneseq
  %v384 = vshrl.u32 %v383, 7
  %v385 = vsub.s32 0, %v384
  %v386 = vrot.slane %v378, %v385
  %v388 = vsel %vm39, %v330, 0
  %v391 = vsel %vm39, %v332, 0
  %v394 = vsel %vm39, %v334, 0
  %v397 = vsel %vm39, %v336, 0
  %v400 = vsel %vm39, %v338, 0
  %v403 = vsel %vm39, %v340, 0
  %v406 = vsel %vm39, %v342, 0
  %v409 = vsel %vm39, %v344, 0
  %v412 = vsel %vm39, %v346, 0
  %v415 = vsel %vm39, %v348, 0
  %v418 = vsel %vm39, %v350, 0
  %v421 = vsel %vm39, %v352, 0
  %v424 = vsel %vm39, %v354, 0
  %v427 = vsel %vm39, %v356, 0
  %v430 = vsel %vm39, %v358, 0
  %v433 = vsel %vm39, %v360, 0
  %435 = vmatprep.subr.mxu0 0.0
  %436 = vmatpush1.msra.mxu0 0.0
  %437 = vmatprep.subr.mxu0 0.0
  %438 = vmatpush1.msra.mxu0 0.0
  %439 = vmatprep.subr.mxu0 0.0
  %440 = vmatpush1.msra.mxu0 0.0
  %441 = vmatprep.subr.mxu0 0.0
  %442 = vmatpush1.msra.mxu0 0.0
  %443 = vmatprep.subr.mxu0 0.0
  %444 = vmatpush1.msra.mxu0 0.0
  %445 = vmatprep.subr.mxu0 0.0
  %446 = vmatpush1.msra.mxu0 0.0
  %447 = vmatprep.subr.mxu0 0.0
  %448 = vmatpush1.msra.mxu0 0.0
  %449 = vmatprep.subr.mxu0 0.0
  %450 = vmatpush1.msra.mxu0 0.0
  %451 = vmatprep.subr.mxu0 0.0
  %452 = vmatpush1.msra.mxu0 0.0
  %453 = vmatprep.subr.mxu0 0.0
  %454 = vmatpush1.msra.mxu0 0.0
  %455 = vmatprep.subr.mxu0 0.0
  %456 = vmatpush1.msra.mxu0 0.0
  %457 = vmatprep.subr.mxu0 0.0
  %458 = vmatpush1.msra.mxu0 0.0
  %459 = vmatprep.subr.mxu0 0.0
  %460 = vmatpush1.msra.mxu0 %v364
  %461 = vmatprep.subr.mxu0 0.0
  %462 = vmatpush1.msra.mxu0 %v363
  %463 = vmatprep.subr.mxu0 0.0
  %464 = vmatpush1.msra.mxu0 %v362
  %465 = vmatprep.subr.mxu0 0.0
  %466 = vmatpush1.msra.mxu0 %v361
  %467 = vmatprep.subr.mxu0 0.0
  %468 = vmatpush2.msra.mxu0 0.0
  %469 = vmatprep.subr.mxu0 0.0
  %470 = vmatpush2.msra.mxu0 0.0
  %471 = vmatprep.subr.mxu0 0.0
  %472 = vmatpush2.msra.mxu0 0.0
  %473 = vmatprep.subr.mxu0 0.0
  %474 = vmatpush2.msra.mxu0 0.0
  %475 = vmatprep.subr.mxu0 0.0
  %476 = vmatpush2.msra.mxu0 0.0
  %477 = vmatprep.subr.mxu0 0.0
  %478 = vmatpush2.msra.mxu0 0.0
  %479 = vmatprep.subr.mxu0 0.0
  %480 = vmatpush2.msra.mxu0 0.0
  %481 = vmatprep.subr.mxu0 0.0
  %482 = vmatpush2.msra.mxu0 0.0
  %483 = vmatprep.subr.mxu0 0.0
  %484 = vmatpush2.msra.mxu0 0.0
  %485 = vmatprep.subr.mxu0 0.0
  %486 = vmatpush2.msra.mxu0 0.0
  %487 = vmatprep.subr.mxu0 0.0
  %488 = vmatpush2.msra.mxu0 0.0
  %489 = vmatprep.subr.mxu0 0.0
  %490 = vmatpush2.msra.mxu0 0.0
  %491 = vmatprep.subr.mxu0 0.0
  %492 = vmatpush2.msra.mxu0 0.0
  %493 = vmatprep.subr.mxu0 0.0
  %494 = vmatpush2.msra.mxu0 0.0
  %495 = vmatprep.subr.mxu0 0.0
  %496 = vmatpush2.msra.mxu0 0.0
  %497 = vmatprep.subr.mxu0 0.0
  %498 = vmatpush2.msra.mxu0 0.0
  %499 = vmatprep.mubr.f32.mxu0 0.0
  %500 = vmatmul.mubr.f32.gmra.mxu0 %v388
  %v501 = vpop.f32.mrf.mxu0
  %v502 = vadd.f32 %v386, %v501
  %v503 = vpop.f32.mrf.mxu0
  %504 = vmatprep.mubr.f32.mxu0 0.0
  %505 = vmatmul.mubr.f32.gmra.mxu0 %v391
  %v506 = vpop.f32.mrf.mxu0
  %v507 = vadd.f32 %v386, %v506
  %v508 = vpop.f32.mrf.mxu0
  %509 = vmatprep.mubr.f32.mxu0 0.0
  %510 = vmatmul.mubr.f32.gmra.mxu0 %v394
  %v511 = vpop.f32.mrf.mxu0
  %v512 = vadd.f32 %v386, %v511
  %v513 = vpop.f32.mrf.mxu0
  %514 = vmatprep.mubr.f32.mxu0 0.0
  %515 = vmatmul.mubr.f32.gmra.mxu0 %v397
  %v516 = vpop.f32.mrf.mxu0
  %v517 = vadd.f32 %v386, %v516
  %v518 = vpop.f32.mrf.mxu0
  %519 = vmatprep.mubr.f32.mxu0 0.0
  %520 = vmatmul.mubr.f32.gmra.mxu0 %v400
  %v521 = vpop.f32.mrf.mxu0
  %v522 = vadd.f32 %v386, %v521
  %v523 = vpop.f32.mrf.mxu0
  %524 = vmatprep.mubr.f32.mxu0 0.0
  %525 = vmatmul.mubr.f32.gmra.mxu0 %v403
  %v526 = vpop.f32.mrf.mxu0
  %v527 = vadd.f32 %v386, %v526
  %v528 = vpop.f32.mrf.mxu0
  %529 = vmatprep.mubr.f32.mxu0 0.0
  %530 = vmatmul.mubr.f32.gmra.mxu0 %v406
  %v531 = vpop.f32.mrf.mxu0
  %v532 = vadd.f32 %v386, %v531
  %v533 = vpop.f32.mrf.mxu0
  %534 = vmatprep.mubr.f32.mxu0 0.0
  %535 = vmatmul.mubr.f32.gmra.mxu0 %v409
  %v536 = vpop.f32.mrf.mxu0
  %v537 = vadd.f32 %v386, %v536
  %v538 = vpop.f32.mrf.mxu0
  %539 = vmatprep.mubr.f32.mxu0 0.0
  %540 = vmatmul.mubr.f32.gmra.mxu0 %v412
  %v541 = vpop.f32.mrf.mxu0
  %v542 = vadd.f32 %v386, %v541
  %v543 = vpop.f32.mrf.mxu0
  %544 = vmatprep.mubr.f32.mxu0 0.0
  %545 = vmatmul.mubr.f32.gmra.mxu0 %v415
  %v546 = vpop.f32.mrf.mxu0
  %v547 = vadd.f32 %v386, %v546
  %v548 = vpop.f32.mrf.mxu0
  %549 = vmatprep.mubr.f32.mxu0 0.0
  %550 = vmatmul.mubr.f32.gmra.mxu0 %v418
  %v551 = vpop.f32.mrf.mxu0
  %v552 = vadd.f32 %v386, %v551
  %v553 = vpop.f32.mrf.mxu0
  %554 = vmatprep.mubr.f32.mxu0 0.0
  %555 = vmatmul.mubr.f32.gmra.mxu0 %v421
  %v556 = vpop.f32.mrf.mxu0
  %v557 = vadd.f32 %v386, %v556
  %v558 = vpop.f32.mrf.mxu0
  %559 = vmatprep.mubr.f32.mxu0 0.0
  %560 = vmatmul.mubr.f32.gmra.mxu0 %v424
  %v561 = vpop.f32.mrf.mxu0
  %v562 = vadd.f32 %v386, %v561
  %v563 = vpop.f32.mrf.mxu0
  %564 = vmatprep.mubr.f32.mxu0 0.0
  %565 = vmatmul.mubr.f32.gmra.mxu0 %v427
  %v566 = vpop.f32.mrf.mxu0
  %v567 = vadd.f32 %v386, %v566
  %v568 = vpop.f32.mrf.mxu0
  %569 = vmatprep.mubr.f32.mxu0 0.0
  %570 = vmatmul.mubr.f32.gmra.mxu0 %v430
  %v571 = vpop.f32.mrf.mxu0
  %v572 = vadd.f32 %v386, %v571
  %v573 = vpop.f32.mrf.mxu0
  %574 = vmatprep.mubr.f32.mxu0 0.0
  %575 = vmatmul.mubr.f32.gmra.mxu0 %v433
  %v576 = vpop.f32.mrf.mxu0
  %v577 = vadd.f32 %v386, %v576
  %v578 = vpop.f32.mrf.mxu0
  %579 = vdwg.mxu0
  %v580 = vlaneseq
  %v581 = vshrl.u32 %v580, 7
  %v582 = vsub.s32 0, %v581
  %v583 = vrot.slane %v379, %v582
  %584 = vmatprep.subr.mxu0 0.0
  %585 = vmatpush1.msra.mxu0 0.0
  %586 = vmatprep.subr.mxu0 0.0
  %587 = vmatpush1.msra.mxu0 0.0
  %588 = vmatprep.subr.mxu0 0.0
  %589 = vmatpush1.msra.mxu0 0.0
  %590 = vmatprep.subr.mxu0 0.0
  %591 = vmatpush1.msra.mxu0 0.0
  %592 = vmatprep.subr.mxu0 0.0
  %593 = vmatpush1.msra.mxu0 0.0
  %594 = vmatprep.subr.mxu0 0.0
  %595 = vmatpush1.msra.mxu0 0.0
  %596 = vmatprep.subr.mxu0 0.0
  %597 = vmatpush1.msra.mxu0 0.0
  %598 = vmatprep.subr.mxu0 0.0
  %599 = vmatpush1.msra.mxu0 0.0
  %600 = vmatprep.subr.mxu0 0.0
  %601 = vmatpush1.msra.mxu0 0.0
  %602 = vmatprep.subr.mxu0 0.0
  %603 = vmatpush1.msra.mxu0 0.0
  %604 = vmatprep.subr.mxu0 0.0
  %605 = vmatpush1.msra.mxu0 0.0
  %606 = vmatprep.subr.mxu0 0.0
  %607 = vmatpush1.msra.mxu0 0.0
  %608 = vmatprep.subr.mxu0 0.0
  %609 = vmatpush1.msra.mxu0 %v368
  %610 = vmatprep.subr.mxu0 0.0
  %611 = vmatpush1.msra.mxu0 %v367
  %612 = vmatprep.subr.mxu0 0.0
  %613 = vmatpush1.msra.mxu0 %v366
  %614 = vmatprep.subr.mxu0 0.0
  %615 = vmatpush1.msra.mxu0 %v365
  %616 = vmatprep.subr.mxu0 0.0
  %617 = vmatpush2.msra.mxu0 0.0
  %618 = vmatprep.subr.mxu0 0.0
  %619 = vmatpush2.msra.mxu0 0.0
  %620 = vmatprep.subr.mxu0 0.0
  %621 = vmatpush2.msra.mxu0 0.0
  %622 = vmatprep.subr.mxu0 0.0
  %623 = vmatpush2.msra.mxu0 0.0
  %624 = vmatprep.subr.mxu0 0.0
  %625 = vmatpush2.msra.mxu0 0.0
  %626 = vmatprep.subr.mxu0 0.0
  %627 = vmatpush2.msra.mxu0 0.0
  %628 = vmatprep.subr.mxu0 0.0
  %629 = vmatpush2.msra.mxu0 0.0
  %630 = vmatprep.subr.mxu0 0.0
  %631 = vmatpush2.msra.mxu0 0.0
  %632 = vmatprep.subr.mxu0 0.0
  %633 = vmatpush2.msra.mxu0 0.0
  %634 = vmatprep.subr.mxu0 0.0
  %635 = vmatpush2.msra.mxu0 0.0
  %636 = vmatprep.subr.mxu0 0.0
  %637 = vmatpush2.msra.mxu0 0.0
  %638 = vmatprep.subr.mxu0 0.0
  %639 = vmatpush2.msra.mxu0 0.0
  %640 = vmatprep.subr.mxu0 0.0
  %641 = vmatpush2.msra.mxu0 0.0
  %642 = vmatprep.subr.mxu0 0.0
  %643 = vmatpush2.msra.mxu0 0.0
  %644 = vmatprep.subr.mxu0 0.0
  %645 = vmatpush2.msra.mxu0 0.0
  %646 = vmatprep.subr.mxu0 0.0
  %647 = vmatpush2.msra.mxu0 0.0
  %648 = vmatprep.mubr.f32.mxu0 0.0
  %649 = vmatmul.mubr.f32.gmra.mxu0 %v388
  %v650 = vpop.f32.mrf.mxu0
  %v651 = vadd.f32 %v583, %v650
  %v652 = vpop.f32.mrf.mxu0
  %653 = vmatprep.mubr.f32.mxu0 0.0
  %654 = vmatmul.mubr.f32.gmra.mxu0 %v391
  %v655 = vpop.f32.mrf.mxu0
  %v656 = vadd.f32 %v583, %v655
  %v657 = vpop.f32.mrf.mxu0
  %658 = vmatprep.mubr.f32.mxu0 0.0
  %659 = vmatmul.mubr.f32.gmra.mxu0 %v394
  %v660 = vpop.f32.mrf.mxu0
  %v661 = vadd.f32 %v583, %v660
  %v662 = vpop.f32.mrf.mxu0
  %663 = vmatprep.mubr.f32.mxu0 0.0
  %664 = vmatmul.mubr.f32.gmra.mxu0 %v397
  %v665 = vpop.f32.mrf.mxu0
  %v666 = vadd.f32 %v583, %v665
  %v667 = vpop.f32.mrf.mxu0
  %668 = vmatprep.mubr.f32.mxu0 0.0
  %669 = vmatmul.mubr.f32.gmra.mxu0 %v400
  %v670 = vpop.f32.mrf.mxu0
  %v671 = vadd.f32 %v583, %v670
  %v672 = vpop.f32.mrf.mxu0
  %673 = vmatprep.mubr.f32.mxu0 0.0
  %674 = vmatmul.mubr.f32.gmra.mxu0 %v403
  %v675 = vpop.f32.mrf.mxu0
  %v676 = vadd.f32 %v583, %v675
  %v677 = vpop.f32.mrf.mxu0
  %678 = vmatprep.mubr.f32.mxu0 0.0
  %679 = vmatmul.mubr.f32.gmra.mxu0 %v406
  %v680 = vpop.f32.mrf.mxu0
  %v681 = vadd.f32 %v583, %v680
  %v682 = vpop.f32.mrf.mxu0
  %683 = vmatprep.mubr.f32.mxu0 0.0
  %684 = vmatmul.mubr.f32.gmra.mxu0 %v409
  %v685 = vpop.f32.mrf.mxu0
  %v686 = vadd.f32 %v583, %v685
  %v687 = vpop.f32.mrf.mxu0
  %688 = vmatprep.mubr.f32.mxu0 0.0
  %689 = vmatmul.mubr.f32.gmra.mxu0 %v412
  %v690 = vpop.f32.mrf.mxu0
  %v691 = vadd.f32 %v583, %v690
  %v692 = vpop.f32.mrf.mxu0
  %693 = vmatprep.mubr.f32.mxu0 0.0
  %694 = vmatmul.mubr.f32.gmra.mxu0 %v415
  %v695 = vpop.f32.mrf.mxu0
  %v696 = vadd.f32 %v583, %v695
  %v697 = vpop.f32.mrf.mxu0
  %698 = vmatprep.mubr.f32.mxu0 0.0
  %699 = vmatmul.mubr.f32.gmra.mxu0 %v418
  %v700 = vpop.f32.mrf.mxu0
  %v701 = vadd.f32 %v583, %v700
  %v702 = vpop.f32.mrf.mxu0
  %703 = vmatprep.mubr.f32.mxu0 0.0
  %704 = vmatmul.mubr.f32.gmra.mxu0 %v421
  %v705 = vpop.f32.mrf.mxu0
  %v706 = vadd.f32 %v583, %v705
  %v707 = vpop.f32.mrf.mxu0
  %708 = vmatprep.mubr.f32.mxu0 0.0
  %709 = vmatmul.mubr.f32.gmra.mxu0 %v424
  %v710 = vpop.f32.mrf.mxu0
  %v711 = vadd.f32 %v583, %v710
  %v712 = vpop.f32.mrf.mxu0
  %713 = vmatprep.mubr.f32.mxu0 0.0
  %714 = vmatmul.mubr.f32.gmra.mxu0 %v427
  %v715 = vpop.f32.mrf.mxu0
  %v716 = vadd.f32 %v583, %v715
  %v717 = vpop.f32.mrf.mxu0
  %718 = vmatprep.mubr.f32.mxu0 0.0
  %719 = vmatmul.mubr.f32.gmra.mxu0 %v430
  %v720 = vpop.f32.mrf.mxu0
  %v721 = vadd.f32 %v583, %v720
  %v722 = vpop.f32.mrf.mxu0
  %723 = vmatprep.mubr.f32.mxu0 0.0
  %724 = vmatmul.mubr.f32.gmra.mxu0 %v433
  %v725 = vpop.f32.mrf.mxu0
  %v726 = vadd.f32 %v583, %v725
  %v727 = vpop.f32.mrf.mxu0
  %728 = vdwg.mxu0
  %v729 = vlaneseq
  %v730 = vshrl.u32 %v729, 7
  %v731 = vsub.s32 0, %v730
  %v732 = vrot.slane %v380, %v731
  %733 = vmatprep.subr.mxu0 0.0
  %734 = vmatpush1.msra.mxu0 0.0
  %735 = vmatprep.subr.mxu0 0.0
  %736 = vmatpush1.msra.mxu0 0.0
  %737 = vmatprep.subr.mxu0 0.0
  %738 = vmatpush1.msra.mxu0 0.0
  %739 = vmatprep.subr.mxu0 0.0
  %740 = vmatpush1.msra.mxu0 0.0
  %741 = vmatprep.subr.mxu0 0.0
  %742 = vmatpush1.msra.mxu0 0.0
  %743 = vmatprep.subr.mxu0 0.0
  %744 = vmatpush1.msra.mxu0 0.0
  %745 = vmatprep.subr.mxu0 0.0
  %746 = vmatpush1.msra.mxu0 0.0
  %747 = vmatprep.subr.mxu0 0.0
  %748 = vmatpush1.msra.mxu0 0.0
  %749 = vmatprep.subr.mxu0 0.0
  %750 = vmatpush1.msra.mxu0 0.0
  %751 = vmatprep.subr.mxu0 0.0
  %752 = vmatpush1.msra.mxu0 0.0
  %753 = vmatprep.subr.mxu0 0.0
  %754 = vmatpush1.msra.mxu0 0.0
  %755 = vmatprep.subr.mxu0 0.0
  %756 = vmatpush1.msra.mxu0 0.0
  %757 = vmatprep.subr.mxu0 0.0
  %758 = vmatpush1.msra.mxu0 %v372
  %759 = vmatprep.subr.mxu0 0.0
  %760 = vmatpush1.msra.mxu0 %v371
  %761 = vmatprep.subr.mxu0 0.0
  %762 = vmatpush1.msra.mxu0 %v370
  %763 = vmatprep.subr.mxu0 0.0
  %764 = vmatpush1.msra.mxu0 %v369
  %765 = vmatprep.subr.mxu0 0.0
  %766 = vmatpush2.msra.mxu0 0.0
  %767 = vmatprep.subr.mxu0 0.0
  %768 = vmatpush2.msra.mxu0 0.0
  %769 = vmatprep.subr.mxu0 0.0
  %770 = vmatpush2.msra.mxu0 0.0
  %771 = vmatprep.subr.mxu0 0.0
  %772 = vmatpush2.msra.mxu0 0.0
  %773 = vmatprep.subr.mxu0 0.0
  %774 = vmatpush2.msra.mxu0 0.0
  %775 = vmatprep.subr.mxu0 0.0
  %776 = vmatpush2.msra.mxu0 0.0
  %777 = vmatprep.subr.mxu0 0.0
  %778 = vmatpush2.msra.mxu0 0.0
  %779 = vmatprep.subr.mxu0 0.0
  %780 = vmatpush2.msra.mxu0 0.0
  %781 = vmatprep.subr.mxu0 0.0
  %782 = vmatpush2.msra.mxu0 0.0
  %783 = vmatprep.subr.mxu0 0.0
  %784 = vmatpush2.msra.mxu0 0.0
  %785 = vmatprep.subr.mxu0 0.0
  %786 = vmatpush2.msra.mxu0 0.0
  %787 = vmatprep.subr.mxu0 0.0
  %788 = vmatpush2.msra.mxu0 0.0
  %789 = vmatprep.subr.mxu0 0.0
  %790 = vmatpush2.msra.mxu0 0.0
  %791 = vmatprep.subr.mxu0 0.0
  %792 = vmatpush2.msra.mxu0 0.0
  %793 = vmatprep.subr.mxu0 0.0
  %794 = vmatpush2.msra.mxu0 0.0
  %795 = vmatprep.subr.mxu0 0.0
  %796 = vmatpush2.msra.mxu0 0.0
  %797 = vmatprep.mubr.f32.mxu0 0.0
  %798 = vmatmul.mubr.f32.gmra.mxu0 %v388
  %v799 = vpop.f32.mrf.mxu0
  %v800 = vadd.f32 %v732, %v799
  %v801 = vpop.f32.mrf.mxu0
  %802 = vmatprep.mubr.f32.mxu0 0.0
  %803 = vmatmul.mubr.f32.gmra.mxu0 %v391
  %v804 = vpop.f32.mrf.mxu0
  %v805 = vadd.f32 %v732, %v804
  %v806 = vpop.f32.mrf.mxu0
  %807 = vmatprep.mubr.f32.mxu0 0.0
  %808 = vmatmul.mubr.f32.gmra.mxu0 %v394
  %v809 = vpop.f32.mrf.mxu0
  %v810 = vadd.f32 %v732, %v809
  %v811 = vpop.f32.mrf.mxu0
  %812 = vmatprep.mubr.f32.mxu0 0.0
  %813 = vmatmul.mubr.f32.gmra.mxu0 %v397
  %v814 = vpop.f32.mrf.mxu0
  %v815 = vadd.f32 %v732, %v814
  %v816 = vpop.f32.mrf.mxu0
  %817 = vmatprep.mubr.f32.mxu0 0.0
  %818 = vmatmul.mubr.f32.gmra.mxu0 %v400
  %v819 = vpop.f32.mrf.mxu0
  %v820 = vadd.f32 %v732, %v819
  %v821 = vpop.f32.mrf.mxu0
  %822 = vmatprep.mubr.f32.mxu0 0.0
  %823 = vmatmul.mubr.f32.gmra.mxu0 %v403
  %v824 = vpop.f32.mrf.mxu0
  %v825 = vadd.f32 %v732, %v824
  %v826 = vpop.f32.mrf.mxu0
  %827 = vmatprep.mubr.f32.mxu0 0.0
  %828 = vmatmul.mubr.f32.gmra.mxu0 %v406
  %v829 = vpop.f32.mrf.mxu0
  %v830 = vadd.f32 %v732, %v829
  %v831 = vpop.f32.mrf.mxu0
  %832 = vmatprep.mubr.f32.mxu0 0.0
  %833 = vmatmul.mubr.f32.gmra.mxu0 %v409
  %v834 = vpop.f32.mrf.mxu0
  %v835 = vadd.f32 %v732, %v834
  %v836 = vpop.f32.mrf.mxu0
  %837 = vmatprep.mubr.f32.mxu0 0.0
  %838 = vmatmul.mubr.f32.gmra.mxu0 %v412
  %v839 = vpop.f32.mrf.mxu0
  %v840 = vadd.f32 %v732, %v839
  %v841 = vpop.f32.mrf.mxu0
  %842 = vmatprep.mubr.f32.mxu0 0.0
  %843 = vmatmul.mubr.f32.gmra.mxu0 %v415
  %v844 = vpop.f32.mrf.mxu0
  %v845 = vadd.f32 %v732, %v844
  %v846 = vpop.f32.mrf.mxu0
  %847 = vmatprep.mubr.f32.mxu0 0.0
  %848 = vmatmul.mubr.f32.gmra.mxu0 %v418
  %v849 = vpop.f32.mrf.mxu0
  %v850 = vadd.f32 %v732, %v849
  %v851 = vpop.f32.mrf.mxu0
  %852 = vmatprep.mubr.f32.mxu0 0.0
  %853 = vmatmul.mubr.f32.gmra.mxu0 %v421
  %v854 = vpop.f32.mrf.mxu0
  %v855 = vadd.f32 %v732, %v854
  %v856 = vpop.f32.mrf.mxu0
  %857 = vmatprep.mubr.f32.mxu0 0.0
  %858 = vmatmul.mubr.f32.gmra.mxu0 %v424
  %v859 = vpop.f32.mrf.mxu0
  %v860 = vadd.f32 %v732, %v859
  %v861 = vpop.f32.mrf.mxu0
  %862 = vmatprep.mubr.f32.mxu0 0.0
  %863 = vmatmul.mubr.f32.gmra.mxu0 %v427
  %v864 = vpop.f32.mrf.mxu0
  %v865 = vadd.f32 %v732, %v864
  %v866 = vpop.f32.mrf.mxu0
  %867 = vmatprep.mubr.f32.mxu0 0.0
  %868 = vmatmul.mubr.f32.gmra.mxu0 %v430
  %v869 = vpop.f32.mrf.mxu0
  %v870 = vadd.f32 %v732, %v869
  %v871 = vpop.f32.mrf.mxu0
  %872 = vmatprep.mubr.f32.mxu0 0.0
  %873 = vmatmul.mubr.f32.gmra.mxu0 %v433
  %v874 = vpop.f32.mrf.mxu0
  %v875 = vadd.f32 %v732, %v874
  %v876 = vpop.f32.mrf.mxu0
  %877 = vdwg.mxu0
  %878 = vxpose.xlu0.b32.start [1/16] %v651, 128
  %879 = vxpose.xlu0.b32.cont [2/16] %v656, 128
  %880 = vxpose.xlu0.b32.cont [3/16] %v661, 128
  %881 = vxpose.xlu0.b32.cont [4/16] %v666, 128
  %882 = vxpose.xlu0.b32.cont [5/16] %v671, 128
  %883 = vxpose.xlu0.b32.cont [6/16] %v676, 128
  %884 = vxpose.xlu0.b32.cont [7/16] %v681, 128
  %885 = vxpose.xlu0.b32.cont [8/16] %v686, 128
  %886 = vxpose.xlu0.b32.cont [9/16] %v691, 128
  %887 = vxpose.xlu0.b32.cont [10/16] %v696, 128
  %888 = vxpose.xlu0.b32.cont [11/16] %v701, 128
  %889 = vxpose.xlu0.b32.cont [12/16] %v706, 128
  %890 = vxpose.xlu0.b32.cont [13/16] %v711, 128
  %891 = vxpose.xlu0.b32.cont [14/16] %v716, 128
  %892 = vxpose.xlu0.b32.cont [15/16] %v721, 128
  %893 = vxpose.xlu0.b32.end [16/16] %v726, 128
  %v894 = vpop.trf.xlu0
  %v895 = vpop.trf.xlu0
  %v896 = vpop.trf.xlu0
  %v897 = vpop.trf.xlu0
  %v898 = vpop.trf.xlu0
  %v899 = vpop.trf.xlu0
  %v900 = vpop.trf.xlu0
  %v901 = vpop.trf.xlu0
  %v902 = vpop.trf.xlu0
  %v903 = vpop.trf.xlu0
  %v904 = vpop.trf.xlu0
  %v905 = vpop.trf.xlu0
  %v906 = vpop.trf.xlu0
  %v907 = vpop.trf.xlu0
  %v908 = vpop.trf.xlu0
  %v909 = vpop.trf.xlu0
  %v910 = vlaneseq
  %v911 = vshrl.u32 %v910, 7
  %v912 = vadd.s32 %v911, 8
  %v913 = vadd.s32 %v911, 16
  %v914 = vadd.s32 %v911, 24
  %v915 = vadd.s32 %v911, 32
  %v916 = vadd.s32 %v911, 40
  %v917 = vadd.s32 %v911, 48
  %v918 = vadd.s32 %v911, 56
  %v919 = vadd.s32 %v911, 64
  %v920 = vadd.s32 %v911, 72
  %v921 = vadd.s32 %v911, 80
  %v922 = vadd.s32 %v911, 88
  %v923 = vadd.s32 %v911, 96
  %v924 = vadd.s32 %v911, 104
  %v925 = vadd.s32 %v911, 112
  %v926 = vadd.s32 %v911, 120
  %v927 = vlaneseq
  %v928 = vand.u32 %v927, 127
  %v929 = vand.u32 %v911, 96
  %v930 = vand.u32 %v912, 96
  %v931 = vand.u32 %v913, 96
  %v932 = vand.u32 %v914, 96
  %v933 = vand.u32 %v915, 96
  %v934 = vand.u32 %v916, 96
  %v935 = vand.u32 %v917, 96
  %v936 = vand.u32 %v918, 96
  %v937 = vand.u32 %v919, 96
  %v938 = vand.u32 %v920, 96
  %v939 = vand.u32 %v921, 96
  %v940 = vand.u32 %v922, 96
  %v941 = vand.u32 %v923, 96
  %v942 = vand.u32 %v924, 96
  %v943 = vand.u32 %v925, 96
  %v944 = vand.u32 %v926, 96
  %v945 = vshra.s32 %v929, 4
  %v946 = vshra.s32 %v930, 4
  %v947 = vshra.s32 %v931, 4
  %v948 = vshra.s32 %v932, 4
  %v949 = vshra.s32 %v933, 4
  %v950 = vshra.s32 %v934, 4
  %v951 = vshra.s32 %v935, 4
  %v952 = vshra.s32 %v936, 4
  %v953 = vshra.s32 %v937, 4
  %v954 = vshra.s32 %v938, 4
  %v955 = vshra.s32 %v939, 4
  %v956 = vshra.s32 %v940, 4
  %v957 = vshra.s32 %v941, 4
  %v958 = vshra.s32 %v942, 4
  %v959 = vshra.s32 %v943, 4
  %v960 = vshra.s32 %v944, 4
  %v961 = vand.u32 %v911, 4
  %v962 = vand.u32 %v912, 4
  %v963 = vand.u32 %v913, 4
  %v964 = vand.u32 %v914, 4
  %v965 = vand.u32 %v915, 4
  %v966 = vand.u32 %v916, 4
  %v967 = vand.u32 %v917, 4
  %v968 = vand.u32 %v918, 4
  %v969 = vand.u32 %v919, 4
  %v970 = vand.u32 %v920, 4
  %v971 = vand.u32 %v921, 4
  %v972 = vand.u32 %v922, 4
  %v973 = vand.u32 %v923, 4
  %v974 = vand.u32 %v924, 4
  %v975 = vand.u32 %v925, 4
  %v976 = vand.u32 %v926, 4
  %v977 = vshra.s32 %v961, 2
  %v978 = vshra.s32 %v962, 2
  %v979 = vshra.s32 %v963, 2
  %v980 = vshra.s32 %v964, 2
  %v981 = vshra.s32 %v965, 2
  %v982 = vshra.s32 %v966, 2
  %v983 = vshra.s32 %v967, 2
  %v984 = vshra.s32 %v968, 2
  %v985 = vshra.s32 %v969, 2
  %v986 = vshra.s32 %v970, 2
  %v987 = vshra.s32 %v971, 2
  %v988 = vshra.s32 %v972, 2
  %v989 = vshra.s32 %v973, 2
  %v990 = vshra.s32 %v974, 2
  %v991 = vshra.s32 %v975, 2
  %v992 = vshra.s32 %v976, 2
  %v993 = vor.u32 %v945, %v977
  %v994 = vor.u32 %v946, %v978
  %v995 = vor.u32 %v947, %v979
  %v996 = vor.u32 %v948, %v980
  %v997 = vor.u32 %v949, %v981
  %v998 = vor.u32 %v950, %v982
  %v999 = vor.u32 %v951, %v983
  %v1000 = vor.u32 %v952, %v984
  %v1001 = vor.u32 %v953, %v985
  %v1002 = vor.u32 %v954, %v986
  %v1003 = vor.u32 %v955, %v987
  %v1004 = vor.u32 %v956, %v988
  %v1005 = vor.u32 %v957, %v989
  %v1006 = vor.u32 %v958, %v990
  %v1007 = vor.u32 %v959, %v991
  %v1008 = vor.u32 %v960, %v992
  %v1009 = vand.u32 %v928, 96
  %v1010 = vshra.s32 %v1009, 4
  %v1011 = vand.u32 %v928, 4
  %v1012 = vshra.s32 %v1011, 2
  %v1013 = vor.u32 %v1010, %v1012
  %vm1014 = vcmp.eq.s32.totalorder %v993, %v1013
  %vm1015 = vcmp.eq.s32.totalorder %v994, %v1013
  %vm1016 = vcmp.eq.s32.totalorder %v995, %v1013
  %vm1017 = vcmp.eq.s32.totalorder %v996, %v1013
  %vm1018 = vcmp.eq.s32.totalorder %v997, %v1013
  %vm1019 = vcmp.eq.s32.totalorder %v998, %v1013
  %vm1020 = vcmp.eq.s32.totalorder %v999, %v1013
  %vm1021 = vcmp.eq.s32.totalorder %v1000, %v1013
  %vm1022 = vcmp.eq.s32.totalorder %v1001, %v1013
  %vm1023 = vcmp.eq.s32.totalorder %v1002, %v1013
  %vm1024 = vcmp.eq.s32.totalorder %v1003, %v1013
  %vm1025 = vcmp.eq.s32.totalorder %v1004, %v1013
  %vm1026 = vcmp.eq.s32.totalorder %v1005, %v1013
  %vm1027 = vcmp.eq.s32.totalorder %v1006, %v1013
  %vm1028 = vcmp.eq.s32.totalorder %v1007, %v1013
  %vm1029 = vcmp.eq.s32.totalorder %v1008, %v1013
  %v1030 = vsel %vm1014, 0.0, -1e+09
  %v1031 = vsel %vm1015, 0.0, -1e+09
  %v1032 = vsel %vm1016, 0.0, -1e+09
  %v1033 = vsel %vm1017, 0.0, -1e+09
  %v1034 = vsel %vm1018, 0.0, -1e+09
  %v1035 = vsel %vm1019, 0.0, -1e+09
  %v1036 = vsel %vm1020, 0.0, -1e+09
  %v1037 = vsel %vm1021, 0.0, -1e+09
  %v1038 = vsel %vm1022, 0.0, -1e+09
  %v1039 = vsel %vm1023, 0.0, -1e+09
  %v1040 = vsel %vm1024, 0.0, -1e+09
  %v1041 = vsel %vm1025, 0.0, -1e+09
  %v1042 = vsel %vm1026, 0.0, -1e+09
  %v1043 = vsel %vm1027, 0.0, -1e+09
  %v1044 = vsel %vm1028, 0.0, -1e+09
  %v1045 = vsel %vm1029, 0.0, -1e+09
  %v1046 = vshra.s32 %v928, 3
  %v1047 = vshra.s32 %v911, 3
  %v1048 = vshra.s32 %v912, 3
  %v1049 = vshra.s32 %v913, 3
  %v1050 = vshra.s32 %v914, 3
  %vm1051 = vcmp.eq.s32.totalorder %v1046, 0
  %v1052 = vsel %vm1051, 1, 0
  %v1053 = vcvt.s32.f32 %v1052
  %vm1054 = vcmp.eq.s32.totalorder %v1046, 1
  %v1055 = vsel %vm1054, 1, 0
  %v1056 = vcvt.s32.f32 %v1055
  %vm1057 = vcmp.eq.s32.totalorder %v1046, 2
  %v1058 = vsel %vm1057, 1, 0
  %v1059 = vcvt.s32.f32 %v1058
  %vm1060 = vcmp.eq.s32.totalorder %v1046, 3
  %v1061 = vsel %vm1060, 1, 0
  %v1062 = vcvt.s32.f32 %v1061
  %vm1063 = vcmp.eq.s32.totalorder %v1047, 0
  %vm1064 = vcmp.eq.s32.totalorder %v1048, 0
  %vm1065 = vcmp.eq.s32.totalorder %v1049, 0
  %vm1066 = vcmp.eq.s32.totalorder %v1050, 0
  %v1067 = vsel %vm1063, 1, 0
  %v1068 = vsel %vm1064, 1, 0
  %v1069 = vsel %vm1065, 1, 0
  %v1070 = vsel %vm1066, 1, 0
  %v1071 = vcvt.s32.f32 %v1067
  %v1072 = vcvt.s32.f32 %v1068
  %v1073 = vcvt.s32.f32 %v1069
  %v1074 = vcvt.s32.f32 %v1070
  %vm1075 = vcmp.eq.s32.totalorder %v1047, 1
  %vm1076 = vcmp.eq.s32.totalorder %v1048, 1
  %vm1077 = vcmp.eq.s32.totalorder %v1049, 1
  %vm1078 = vcmp.eq.s32.totalorder %v1050, 1
  %v1079 = vsel %vm1075, 1, 0
  %v1080 = vsel %vm1076, 1, 0
  %v1081 = vsel %vm1077, 1, 0
  %v1082 = vsel %vm1078, 1, 0
  %v1083 = vcvt.s32.f32 %v1079
  %v1084 = vcvt.s32.f32 %v1080
  %v1085 = vcvt.s32.f32 %v1081
  %v1086 = vcvt.s32.f32 %v1082
  %vm1087 = vcmp.eq.s32.totalorder %v1047, 2
  %vm1088 = vcmp.eq.s32.totalorder %v1048, 2
  %vm1089 = vcmp.eq.s32.totalorder %v1049, 2
  %vm1090 = vcmp.eq.s32.totalorder %v1050, 2
  %v1091 = vsel %vm1087, 1, 0
  %v1092 = vsel %vm1088, 1, 0
  %v1093 = vsel %vm1089, 1, 0
  %v1094 = vsel %vm1090, 1, 0
  %v1095 = vcvt.s32.f32 %v1091
  %v1096 = vcvt.s32.f32 %v1092
  %v1097 = vcvt.s32.f32 %v1093
  %v1098 = vcvt.s32.f32 %v1094
  %vm1099 = vcmp.eq.s32.totalorder %v1047, 3
  %vm1100 = vcmp.eq.s32.totalorder %v1048, 3
  %vm1101 = vcmp.eq.s32.totalorder %v1049, 3
  %vm1102 = vcmp.eq.s32.totalorder %v1050, 3
  %v1103 = vsel %vm1099, 1, 0
  %v1104 = vsel %vm1100, 1, 0
  %v1105 = vsel %vm1101, 1, 0
  %v1106 = vsel %vm1102, 1, 0
  %v1107 = vcvt.s32.f32 %v1103
  %v1108 = vcvt.s32.f32 %v1104
  %v1109 = vcvt.s32.f32 %v1105
  %v1110 = vcvt.s32.f32 %v1106
  %v1111 = vmul.f32 %v894, %v1071
  %v1112 = vmul.f32 %v895, %v1072
  %v1113 = vmul.f32 %v896, %v1073
  %v1114 = vmul.f32 %v897, %v1074
  %v1115 = vmul.f32 %v894, %v1083
  %v1116 = vmul.f32 %v895, %v1084
  %v1117 = vmul.f32 %v896, %v1085
  %v1118 = vmul.f32 %v897, %v1086
  %v1119 = vmul.f32 %v894, %v1095
  %v1120 = vmul.f32 %v895, %v1096
  %v1121 = vmul.f32 %v896, %v1097
  %v1122 = vmul.f32 %v897, %v1098
  %v1123 = vmul.f32 %v894, %v1107
  %v1124 = vmul.f32 %v895, %v1108
  %v1125 = vmul.f32 %v896, %v1109
  %v1126 = vmul.f32 %v897, %v1110
  %v1127 = vmul.f32 %v800, %v1053
  %v1128 = vmul.f32 %v805, %v1053
  %v1129 = vmul.f32 %v810, %v1053
  %v1130 = vmul.f32 %v815, %v1053
  %v1131 = vmul.f32 %v820, %v1053
  %v1132 = vmul.f32 %v825, %v1053
  %v1133 = vmul.f32 %v830, %v1053
  %v1134 = vmul.f32 %v835, %v1053
  %v1135 = vmul.f32 %v840, %v1053
  %v1136 = vmul.f32 %v845, %v1053
  %v1137 = vmul.f32 %v850, %v1053
  %v1138 = vmul.f32 %v855, %v1053
  %v1139 = vmul.f32 %v860, %v1053
  %v1140 = vmul.f32 %v865, %v1053
  %v1141 = vmul.f32 %v870, %v1053
  %v1142 = vmul.f32 %v875, %v1053
  %v1143 = vmul.f32 %v800, %v1056
  %v1144 = vmul.f32 %v805, %v1056
  %v1145 = vmul.f32 %v810, %v1056
  %v1146 = vmul.f32 %v815, %v1056
  %v1147 = vmul.f32 %v820, %v1056
  %v1148 = vmul.f32 %v825, %v1056
  %v1149 = vmul.f32 %v830, %v1056
  %v1150 = vmul.f32 %v835, %v1056
  %v1151 = vmul.f32 %v840, %v1056
  %v1152 = vmul.f32 %v845, %v1056
  %v1153 = vmul.f32 %v850, %v1056
  %v1154 = vmul.f32 %v855, %v1056
  %v1155 = vmul.f32 %v860, %v1056
  %v1156 = vmul.f32 %v865, %v1056
  %v1157 = vmul.f32 %v870, %v1056
  %v1158 = vmul.f32 %v875, %v1056
  %v1159 = vmul.f32 %v800, %v1059
  %v1160 = vmul.f32 %v805, %v1059
  %v1161 = vmul.f32 %v810, %v1059
  %v1162 = vmul.f32 %v815, %v1059
  %v1163 = vmul.f32 %v820, %v1059
  %v1164 = vmul.f32 %v825, %v1059
  %v1165 = vmul.f32 %v830, %v1059
  %v1166 = vmul.f32 %v835, %v1059
  %v1167 = vmul.f32 %v840, %v1059
  %v1168 = vmul.f32 %v845, %v1059
  %v1169 = vmul.f32 %v850, %v1059
  %v1170 = vmul.f32 %v855, %v1059
  %v1171 = vmul.f32 %v860, %v1059
  %v1172 = vmul.f32 %v865, %v1059
  %v1173 = vmul.f32 %v870, %v1059
  %v1174 = vmul.f32 %v875, %v1059
  %v1175 = vmul.f32 %v800, %v1062
  %v1176 = vmul.f32 %v805, %v1062
  %v1177 = vmul.f32 %v810, %v1062
  %v1178 = vmul.f32 %v815, %v1062
  %v1179 = vmul.f32 %v820, %v1062
  %v1180 = vmul.f32 %v825, %v1062
  %v1181 = vmul.f32 %v830, %v1062
  %v1182 = vmul.f32 %v835, %v1062
  %v1183 = vmul.f32 %v840, %v1062
  %v1184 = vmul.f32 %v845, %v1062
  %v1185 = vmul.f32 %v850, %v1062
  %v1186 = vmul.f32 %v855, %v1062
  %v1187 = vmul.f32 %v860, %v1062
  %v1188 = vmul.f32 %v865, %v1062
  %v1189 = vmul.f32 %v870, %v1062
  %v1190 = vmul.f32 %v875, %v1062
  %v1192 = vsel %vm39, %v502, 0
  %v1195 = vsel %vm39, %v507, 0
  %v1198 = vsel %vm39, %v512, 0
  %v1201 = vsel %vm39, %v517, 0
  %v1204 = vsel %vm39, %v522, 0
  %v1207 = vsel %vm39, %v527, 0
  %v1210 = vsel %vm39, %v532, 0
  %v1213 = vsel %vm39, %v537, 0
  %v1216 = vsel %vm39, %v542, 0
  %v1219 = vsel %vm39, %v547, 0
  %v1222 = vsel %vm39, %v552, 0
  %v1225 = vsel %vm39, %v557, 0
  %v1228 = vsel %vm39, %v562, 0
  %v1231 = vsel %vm39, %v567, 0
  %v1234 = vsel %vm39, %v572, 0
  %v1237 = vsel %vm39, %v577, 0
  %1239 = vmatprep.subr.mxu0 0.0
  %1240 = vmatpush1.msra.mxu0 0.0
  %1241 = vmatprep.subr.mxu0 0.0
  %1242 = vmatpush1.msra.mxu0 0.0
  %1243 = vmatprep.subr.mxu0 0.0
  %1244 = vmatpush1.msra.mxu0 0.0
  %1245 = vmatprep.subr.mxu0 0.0
  %1246 = vmatpush1.msra.mxu0 0.0
  %1247 = vmatprep.subr.mxu0 0.0
  %1248 = vmatpush1.msra.mxu0 0.0
  %1249 = vmatprep.subr.mxu0 0.0
  %1250 = vmatpush1.msra.mxu0 0.0
  %1251 = vmatprep.subr.mxu0 0.0
  %1252 = vmatpush1.msra.mxu0 0.0
  %1253 = vmatprep.subr.mxu0 0.0
  %1254 = vmatpush1.msra.mxu0 0.0
  %1255 = vmatprep.subr.mxu0 0.0
  %1256 = vmatpush1.msra.mxu0 0.0
  %1257 = vmatprep.subr.mxu0 0.0
  %1258 = vmatpush1.msra.mxu0 0.0
  %1259 = vmatprep.subr.mxu0 0.0
  %1260 = vmatpush1.msra.mxu0 0.0
  %1261 = vmatprep.subr.mxu0 0.0
  %1262 = vmatpush1.msra.mxu0 0.0
  %1263 = vmatprep.subr.mxu0 %v1118
  %1264 = vmatpush1.msra.mxu0 %v1114
  %1265 = vmatprep.subr.mxu0 %v1117
  %1266 = vmatpush1.msra.mxu0 %v1113
  %1267 = vmatprep.subr.mxu0 %v1116
  %1268 = vmatpush1.msra.mxu0 %v1112
  %1269 = vmatprep.subr.mxu0 %v1115
  %1270 = vmatpush1.msra.mxu0 %v1111
  %1271 = vmatprep.subr.mxu0 0.0
  %1272 = vmatpush2.msra.mxu0 0.0
  %1273 = vmatprep.subr.mxu0 0.0
  %1274 = vmatpush2.msra.mxu0 0.0
  %1275 = vmatprep.subr.mxu0 0.0
  %1276 = vmatpush2.msra.mxu0 0.0
  %1277 = vmatprep.subr.mxu0 0.0
  %1278 = vmatpush2.msra.mxu0 0.0
  %1279 = vmatprep.subr.mxu0 0.0
  %1280 = vmatpush2.msra.mxu0 0.0
  %1281 = vmatprep.subr.mxu0 0.0
  %1282 = vmatpush2.msra.mxu0 0.0
  %1283 = vmatprep.subr.mxu0 0.0
  %1284 = vmatpush2.msra.mxu0 0.0
  %1285 = vmatprep.subr.mxu0 0.0
  %1286 = vmatpush2.msra.mxu0 0.0
  %1287 = vmatprep.subr.mxu0 0.0
  %1288 = vmatpush2.msra.mxu0 0.0
  %1289 = vmatprep.subr.mxu0 0.0
  %1290 = vmatpush2.msra.mxu0 0.0
  %1291 = vmatprep.subr.mxu0 0.0
  %1292 = vmatpush2.msra.mxu0 0.0
  %1293 = vmatprep.subr.mxu0 0.0
  %1294 = vmatpush2.msra.mxu0 0.0
  %1295 = vmatprep.subr.mxu0 0.0
  %1296 = vmatpush2.msra.mxu0 0.0
  %1297 = vmatprep.subr.mxu0 0.0
  %1298 = vmatpush2.msra.mxu0 0.0
  %1299 = vmatprep.subr.mxu0 0.0
  %1300 = vmatpush2.msra.mxu0 0.0
  %1301 = vmatprep.subr.mxu0 0.0
  %1302 = vmatpush2.msra.mxu0 0.0
  %1303 = vmatprep.mubr.f32.mxu0 0.0
  %1304 = vmatmul.mubr.f32.gmra.mxu0 %v1192
  %v1305 = vpop.f32.mrf.mxu0
  %v1306 = vadd.f32 0.0, %v1305
  %v1307 = vpop.f32.mrf.mxu0
  %v1308 = vadd.f32 0.0, %v1307
  %1309 = vmatprep.mubr.f32.mxu0 0.0
  %1310 = vmatmul.mubr.f32.gmra.mxu0 %v1195
  %v1311 = vpop.f32.mrf.mxu0
  %v1312 = vadd.f32 0.0, %v1311
  %v1313 = vpop.f32.mrf.mxu0
  %v1314 = vadd.f32 0.0, %v1313
  %1315 = vmatprep.mubr.f32.mxu0 0.0
  %1316 = vmatmul.mubr.f32.gmra.mxu0 %v1198
  %v1317 = vpop.f32.mrf.mxu0
  %v1318 = vadd.f32 0.0, %v1317
  %v1319 = vpop.f32.mrf.mxu0
  %v1320 = vadd.f32 0.0, %v1319
  %1321 = vmatprep.mubr.f32.mxu0 0.0
  %1322 = vmatmul.mubr.f32.gmra.mxu0 %v1201
  %v1323 = vpop.f32.mrf.mxu0
  %v1324 = vadd.f32 0.0, %v1323
  %v1325 = vpop.f32.mrf.mxu0
  %v1326 = vadd.f32 0.0, %v1325
  %1327 = vmatprep.mubr.f32.mxu0 0.0
  %1328 = vmatmul.mubr.f32.gmra.mxu0 %v1204
  %v1329 = vpop.f32.mrf.mxu0
  %v1330 = vadd.f32 0.0, %v1329
  %v1331 = vpop.f32.mrf.mxu0
  %v1332 = vadd.f32 0.0, %v1331
  %1333 = vmatprep.mubr.f32.mxu0 0.0
  %1334 = vmatmul.mubr.f32.gmra.mxu0 %v1207
  %v1335 = vpop.f32.mrf.mxu0
  %v1336 = vadd.f32 0.0, %v1335
  %v1337 = vpop.f32.mrf.mxu0
  %v1338 = vadd.f32 0.0, %v1337
  %1339 = vmatprep.mubr.f32.mxu0 0.0
  %1340 = vmatmul.mubr.f32.gmra.mxu0 %v1210
  %v1341 = vpop.f32.mrf.mxu0
  %v1342 = vadd.f32 0.0, %v1341
  %v1343 = vpop.f32.mrf.mxu0
  %v1344 = vadd.f32 0.0, %v1343
  %1345 = vmatprep.mubr.f32.mxu0 0.0
  %1346 = vmatmul.mubr.f32.gmra.mxu0 %v1213
  %v1347 = vpop.f32.mrf.mxu0
  %v1348 = vadd.f32 0.0, %v1347
  %v1349 = vpop.f32.mrf.mxu0
  %v1350 = vadd.f32 0.0, %v1349
  %1351 = vmatprep.mubr.f32.mxu0 0.0
  %1352 = vmatmul.mubr.f32.gmra.mxu0 %v1216
  %v1353 = vpop.f32.mrf.mxu0
  %v1354 = vadd.f32 0.0, %v1353
  %v1355 = vpop.f32.mrf.mxu0
  %v1356 = vadd.f32 0.0, %v1355
  %1357 = vmatprep.mubr.f32.mxu0 0.0
  %1358 = vmatmul.mubr.f32.gmra.mxu0 %v1219
  %v1359 = vpop.f32.mrf.mxu0
  %v1360 = vadd.f32 0.0, %v1359
  %v1361 = vpop.f32.mrf.mxu0
  %v1362 = vadd.f32 0.0, %v1361
  %1363 = vmatprep.mubr.f32.mxu0 0.0
  %1364 = vmatmul.mubr.f32.gmra.mxu0 %v1222
  %v1365 = vpop.f32.mrf.mxu0
  %v1366 = vadd.f32 0.0, %v1365
  %v1367 = vpop.f32.mrf.mxu0
  %v1368 = vadd.f32 0.0, %v1367
  %1369 = vmatprep.mubr.f32.mxu0 0.0
  %1370 = vmatmul.mubr.f32.gmra.mxu0 %v1225
  %v1371 = vpop.f32.mrf.mxu0
  %v1372 = vadd.f32 0.0, %v1371
  %v1373 = vpop.f32.mrf.mxu0
  %v1374 = vadd.f32 0.0, %v1373
  %1375 = vmatprep.mubr.f32.mxu0 0.0
  %1376 = vmatmul.mubr.f32.gmra.mxu0 %v1228
  %v1377 = vpop.f32.mrf.mxu0
  %v1378 = vadd.f32 0.0, %v1377
  %v1379 = vpop.f32.mrf.mxu0
  %v1380 = vadd.f32 0.0, %v1379
  %1381 = vmatprep.mubr.f32.mxu0 0.0
  %1382 = vmatmul.mubr.f32.gmra.mxu0 %v1231
  %v1383 = vpop.f32.mrf.mxu0
  %v1384 = vadd.f32 0.0, %v1383
  %v1385 = vpop.f32.mrf.mxu0
  %v1386 = vadd.f32 0.0, %v1385
  %1387 = vmatprep.mubr.f32.mxu0 0.0
  %1388 = vmatmul.mubr.f32.gmra.mxu0 %v1234
  %v1389 = vpop.f32.mrf.mxu0
  %v1390 = vadd.f32 0.0, %v1389
  %v1391 = vpop.f32.mrf.mxu0
  %v1392 = vadd.f32 0.0, %v1391
  %1393 = vmatprep.mubr.f32.mxu0 0.0
  %1394 = vmatmul.mubr.f32.gmra.mxu0 %v1237
  %v1395 = vpop.f32.mrf.mxu0
  %v1396 = vadd.f32 0.0, %v1395
  %v1397 = vpop.f32.mrf.mxu0
  %v1398 = vadd.f32 0.0, %v1397
  %1399 = vdwg.mxu0
  %1400 = vmatprep.subr.mxu0 0.0
  %1401 = vmatpush1.msra.mxu0 0.0
  %1402 = vmatprep.subr.mxu0 0.0
  %1403 = vmatpush1.msra.mxu0 0.0
  %1404 = vmatprep.subr.mxu0 0.0
  %1405 = vmatpush1.msra.mxu0 0.0
  %1406 = vmatprep.subr.mxu0 0.0
  %1407 = vmatpush1.msra.mxu0 0.0
  %1408 = vmatprep.subr.mxu0 0.0
  %1409 = vmatpush1.msra.mxu0 0.0
  %1410 = vmatprep.subr.mxu0 0.0
  %1411 = vmatpush1.msra.mxu0 0.0
  %1412 = vmatprep.subr.mxu0 0.0
  %1413 = vmatpush1.msra.mxu0 0.0
  %1414 = vmatprep.subr.mxu0 0.0
  %1415 = vmatpush1.msra.mxu0 0.0
  %1416 = vmatprep.subr.mxu0 0.0
  %1417 = vmatpush1.msra.mxu0 0.0
  %1418 = vmatprep.subr.mxu0 0.0
  %1419 = vmatpush1.msra.mxu0 0.0
  %1420 = vmatprep.subr.mxu0 0.0
  %1421 = vmatpush1.msra.mxu0 0.0
  %1422 = vmatprep.subr.mxu0 0.0
  %1423 = vmatpush1.msra.mxu0 0.0
  %1424 = vmatprep.subr.mxu0 %v1126
  %1425 = vmatpush1.msra.mxu0 %v1122
  %1426 = vmatprep.subr.mxu0 %v1125
  %1427 = vmatpush1.msra.mxu0 %v1121
  %1428 = vmatprep.subr.mxu0 %v1124
  %1429 = vmatpush1.msra.mxu0 %v1120
  %1430 = vmatprep.subr.mxu0 %v1123
  %1431 = vmatpush1.msra.mxu0 %v1119
  %1432 = vmatprep.subr.mxu0 0.0
  %1433 = vmatpush2.msra.mxu0 0.0
  %1434 = vmatprep.subr.mxu0 0.0
  %1435 = vmatpush2.msra.mxu0 0.0
  %1436 = vmatprep.subr.mxu0 0.0
  %1437 = vmatpush2.msra.mxu0 0.0
  %1438 = vmatprep.subr.mxu0 0.0
  %1439 = vmatpush2.msra.mxu0 0.0
  %1440 = vmatprep.subr.mxu0 0.0
  %1441 = vmatpush2.msra.mxu0 0.0
  %1442 = vmatprep.subr.mxu0 0.0
  %1443 = vmatpush2.msra.mxu0 0.0
  %1444 = vmatprep.subr.mxu0 0.0
  %1445 = vmatpush2.msra.mxu0 0.0
  %1446 = vmatprep.subr.mxu0 0.0
  %1447 = vmatpush2.msra.mxu0 0.0
  %1448 = vmatprep.subr.mxu0 0.0
  %1449 = vmatpush2.msra.mxu0 0.0
  %1450 = vmatprep.subr.mxu0 0.0
  %1451 = vmatpush2.msra.mxu0 0.0
  %1452 = vmatprep.subr.mxu0 0.0
  %1453 = vmatpush2.msra.mxu0 0.0
  %1454 = vmatprep.subr.mxu0 0.0
  %1455 = vmatpush2.msra.mxu0 0.0
  %1456 = vmatprep.subr.mxu0 0.0
  %1457 = vmatpush2.msra.mxu0 0.0
  %1458 = vmatprep.subr.mxu0 0.0
  %1459 = vmatpush2.msra.mxu0 0.0
  %1460 = vmatprep.subr.mxu0 0.0
  %1461 = vmatpush2.msra.mxu0 0.0
  %1462 = vmatprep.subr.mxu0 0.0
  %1463 = vmatpush2.msra.mxu0 0.0
  %1464 = vmatprep.mubr.f32.mxu0 0.0
  %1465 = vmatmul.mubr.f32.gmra.mxu0 %v1192
  %v1466 = vpop.f32.mrf.mxu0
  %v1467 = vadd.f32 0.0, %v1466
  %v1468 = vpop.f32.mrf.mxu0
  %v1469 = vadd.f32 0.0, %v1468
  %1470 = vmatprep.mubr.f32.mxu0 0.0
  %1471 = vmatmul.mubr.f32.gmra.mxu0 %v1195
  %v1472 = vpop.f32.mrf.mxu0
  %v1473 = vadd.f32 0.0, %v1472
  %v1474 = vpop.f32.mrf.mxu0
  %v1475 = vadd.f32 0.0, %v1474
  %1476 = vmatprep.mubr.f32.mxu0 0.0
  %1477 = vmatmul.mubr.f32.gmra.mxu0 %v1198
  %v1478 = vpop.f32.mrf.mxu0
  %v1479 = vadd.f32 0.0, %v1478
  %v1480 = vpop.f32.mrf.mxu0
  %v1481 = vadd.f32 0.0, %v1480
  %1482 = vmatprep.mubr.f32.mxu0 0.0
  %1483 = vmatmul.mubr.f32.gmra.mxu0 %v1201
  %v1484 = vpop.f32.mrf.mxu0
  %v1485 = vadd.f32 0.0, %v1484
  %v1486 = vpop.f32.mrf.mxu0
  %v1487 = vadd.f32 0.0, %v1486
  %1488 = vmatprep.mubr.f32.mxu0 0.0
  %1489 = vmatmul.mubr.f32.gmra.mxu0 %v1204
  %v1490 = vpop.f32.mrf.mxu0
  %v1491 = vadd.f32 0.0, %v1490
  %v1492 = vpop.f32.mrf.mxu0
  %v1493 = vadd.f32 0.0, %v1492
  %1494 = vmatprep.mubr.f32.mxu0 0.0
  %1495 = vmatmul.mubr.f32.gmra.mxu0 %v1207
  %v1496 = vpop.f32.mrf.mxu0
  %v1497 = vadd.f32 0.0, %v1496
  %v1498 = vpop.f32.mrf.mxu0
  %v1499 = vadd.f32 0.0, %v1498
  %1500 = vmatprep.mubr.f32.mxu0 0.0
  %1501 = vmatmul.mubr.f32.gmra.mxu0 %v1210
  %v1502 = vpop.f32.mrf.mxu0
  %v1503 = vadd.f32 0.0, %v1502
  %v1504 = vpop.f32.mrf.mxu0
  %v1505 = vadd.f32 0.0, %v1504
  %1506 = vmatprep.mubr.f32.mxu0 0.0
  %1507 = vmatmul.mubr.f32.gmra.mxu0 %v1213
  %v1508 = vpop.f32.mrf.mxu0
  %v1509 = vadd.f32 0.0, %v1508
  %v1510 = vpop.f32.mrf.mxu0
  %v1511 = vadd.f32 0.0, %v1510
  %1512 = vmatprep.mubr.f32.mxu0 0.0
  %1513 = vmatmul.mubr.f32.gmra.mxu0 %v1216
  %v1514 = vpop.f32.mrf.mxu0
  %v1515 = vadd.f32 0.0, %v1514
  %v1516 = vpop.f32.mrf.mxu0
  %v1517 = vadd.f32 0.0, %v1516
  %1518 = vmatprep.mubr.f32.mxu0 0.0
  %1519 = vmatmul.mubr.f32.gmra.mxu0 %v1219
  %v1520 = vpop.f32.mrf.mxu0
  %v1521 = vadd.f32 0.0, %v1520
  %v1522 = vpop.f32.mrf.mxu0
  %v1523 = vadd.f32 0.0, %v1522
  %1524 = vmatprep.mubr.f32.mxu0 0.0
  %1525 = vmatmul.mubr.f32.gmra.mxu0 %v1222
  %v1526 = vpop.f32.mrf.mxu0
  %v1527 = vadd.f32 0.0, %v1526
  %v1528 = vpop.f32.mrf.mxu0
  %v1529 = vadd.f32 0.0, %v1528
  %1530 = vmatprep.mubr.f32.mxu0 0.0
  %1531 = vmatmul.mubr.f32.gmra.mxu0 %v1225
  %v1532 = vpop.f32.mrf.mxu0
  %v1533 = vadd.f32 0.0, %v1532
  %v1534 = vpop.f32.mrf.mxu0
  %v1535 = vadd.f32 0.0, %v1534
  %1536 = vmatprep.mubr.f32.mxu0 0.0
  %1537 = vmatmul.mubr.f32.gmra.mxu0 %v1228
  %v1538 = vpop.f32.mrf.mxu0
  %v1539 = vadd.f32 0.0, %v1538
  %v1540 = vpop.f32.mrf.mxu0
  %v1541 = vadd.f32 0.0, %v1540
  %1542 = vmatprep.mubr.f32.mxu0 0.0
  %1543 = vmatmul.mubr.f32.gmra.mxu0 %v1231
  %v1544 = vpop.f32.mrf.mxu0
  %v1545 = vadd.f32 0.0, %v1544
  %v1546 = vpop.f32.mrf.mxu0
  %v1547 = vadd.f32 0.0, %v1546
  %1548 = vmatprep.mubr.f32.mxu0 0.0
  %1549 = vmatmul.mubr.f32.gmra.mxu0 %v1234
  %v1550 = vpop.f32.mrf.mxu0
  %v1551 = vadd.f32 0.0, %v1550
  %v1552 = vpop.f32.mrf.mxu0
  %v1553 = vadd.f32 0.0, %v1552
  %1554 = vmatprep.mubr.f32.mxu0 0.0
  %1555 = vmatmul.mubr.f32.gmra.mxu0 %v1237
  %v1556 = vpop.f32.mrf.mxu0
  %v1557 = vadd.f32 0.0, %v1556
  %v1558 = vpop.f32.mrf.mxu0
  %v1559 = vadd.f32 0.0, %v1558
  %1560 = vdwg.mxu0
  %v1561 = vld [vmem:[%s5] sm:$0xff]
  %v1562 = vld [vmem:[%s5 + $0x8] sm:$0xff]
  %v1563 = vld [vmem:[%s5 + $0x10] sm:$0xff]
  %v1564 = vld [vmem:[%s5 + $0x18] sm:$0xff]
  %v1565 = vadd.f32 %v1306, %v1561
  %v1566 = vadd.f32 %v1312, %v1562
  %v1567 = vadd.f32 %v1318, %v1563
  %v1568 = vadd.f32 %v1324, %v1564
  %v1569 = vadd.f32 %v1330, %v1561
  %v1570 = vadd.f32 %v1336, %v1562
  %v1571 = vadd.f32 %v1342, %v1563
  %v1572 = vadd.f32 %v1348, %v1564
  %v1573 = vadd.f32 %v1354, %v1561
  %v1574 = vadd.f32 %v1360, %v1562
  %v1575 = vadd.f32 %v1366, %v1563
  %v1576 = vadd.f32 %v1372, %v1564
  %v1577 = vadd.f32 %v1378, %v1561
  %v1578 = vadd.f32 %v1384, %v1562
  %v1579 = vadd.f32 %v1390, %v1563
  %v1580 = vadd.f32 %v1396, %v1564
  %v1581 = vadd.f32 %v1565, %v1030
  %v1582 = vadd.f32 %v1566, %v1031
  %v1583 = vadd.f32 %v1567, %v1032
  %v1584 = vadd.f32 %v1568, %v1033
  %v1585 = vadd.f32 %v1569, %v1034
  %v1586 = vadd.f32 %v1570, %v1035
  %v1587 = vadd.f32 %v1571, %v1036
  %v1588 = vadd.f32 %v1572, %v1037
  %v1589 = vadd.f32 %v1573, %v1038
  %v1590 = vadd.f32 %v1574, %v1039
  %v1591 = vadd.f32 %v1575, %v1040
  %v1592 = vadd.f32 %v1576, %v1041
  %v1593 = vadd.f32 %v1577, %v1042
  %v1594 = vadd.f32 %v1578, %v1043
  %v1595 = vadd.f32 %v1579, %v1044
  %v1596 = vadd.f32 %v1580, %v1045
  %1597 = vmax.xlane.f32.xlu0 %v1581
  %v1598 = vpop.xlane.xlu0 %1597
  %1599 = vmax.xlane.f32.xlu0 %v1582
  %v1600 = vpop.xlane.xlu0 %1599
  %1601 = vmax.xlane.f32.xlu0 %v1583
  %v1602 = vpop.xlane.xlu0 %1601
  %1603 = vmax.xlane.f32.xlu0 %v1584
  %v1604 = vpop.xlane.xlu0 %1603
  %1605 = vmax.xlane.f32.xlu0 %v1585
  %v1606 = vpop.xlane.xlu0 %1605
  %1607 = vmax.xlane.f32.xlu0 %v1586
  %v1608 = vpop.xlane.xlu0 %1607
  %1609 = vmax.xlane.f32.xlu0 %v1587
  %v1610 = vpop.xlane.xlu0 %1609
  %1611 = vmax.xlane.f32.xlu0 %v1588
  %v1612 = vpop.xlane.xlu0 %1611
  %1613 = vmax.xlane.f32.xlu0 %v1589
  %v1614 = vpop.xlane.xlu0 %1613
  %1615 = vmax.xlane.f32.xlu0 %v1590
  %v1616 = vpop.xlane.xlu0 %1615
  %1617 = vmax.xlane.f32.xlu0 %v1591
  %v1618 = vpop.xlane.xlu0 %1617
  %1619 = vmax.xlane.f32.xlu0 %v1592
  %v1620 = vpop.xlane.xlu0 %1619
  %1621 = vmax.xlane.f32.xlu0 %v1593
  %v1622 = vpop.xlane.xlu0 %1621
  %1623 = vmax.xlane.f32.xlu0 %v1594
  %v1624 = vpop.xlane.xlu0 %1623
  %1625 = vmax.xlane.f32.xlu0 %v1595
  %v1626 = vpop.xlane.xlu0 %1625
  %1627 = vmax.xlane.f32.xlu0 %v1596
  %v1628 = vpop.xlane.xlu0 %1627
  %v1629 = vsub.f32 %v1581, %v1598
  %v1630 = vsub.f32 %v1582, %v1600
  %v1631 = vsub.f32 %v1583, %v1602
  %v1632 = vsub.f32 %v1584, %v1604
  %v1633 = vsub.f32 %v1585, %v1606
  %v1634 = vsub.f32 %v1586, %v1608
  %v1635 = vsub.f32 %v1587, %v1610
  %v1636 = vsub.f32 %v1588, %v1612
  %v1637 = vsub.f32 %v1589, %v1614
  %v1638 = vsub.f32 %v1590, %v1616
  %v1639 = vsub.f32 %v1591, %v1618
  %v1640 = vsub.f32 %v1592, %v1620
  %v1641 = vsub.f32 %v1593, %v1622
  %v1642 = vsub.f32 %v1594, %v1624
  %v1643 = vsub.f32 %v1595, %v1626
  %v1644 = vsub.f32 %v1596, %v1628
  %v1645 = vmul.f32 %v1629, 1.442695
  %v1646 = vpow.pop %v1645
  %v1647 = vmul.f32 %v1630, 1.442695
  %v1648 = vpow.pop %v1647
  %v1649 = vmul.f32 %v1631, 1.442695
  %v1650 = vpow.pop %v1649
  %v1651 = vmul.f32 %v1632, 1.442695
  %v1652 = vpow.pop %v1651
  %v1653 = vmul.f32 %v1633, 1.442695
  %v1654 = vpow.pop %v1653
  %v1655 = vmul.f32 %v1634, 1.442695
  %v1656 = vpow.pop %v1655
  %v1657 = vmul.f32 %v1635, 1.442695
  %v1658 = vpow.pop %v1657
  %v1659 = vmul.f32 %v1636, 1.442695
  %v1660 = vpow.pop %v1659
  %v1661 = vmul.f32 %v1637, 1.442695
  %v1662 = vpow.pop %v1661
  %v1663 = vmul.f32 %v1638, 1.442695
  %v1664 = vpow.pop %v1663
  %v1665 = vmul.f32 %v1639, 1.442695
  %v1666 = vpow.pop %v1665
  %v1667 = vmul.f32 %v1640, 1.442695
  %v1668 = vpow.pop %v1667
  %v1669 = vmul.f32 %v1641, 1.442695
  %v1670 = vpow.pop %v1669
  %v1671 = vmul.f32 %v1642, 1.442695
  %v1672 = vpow.pop %v1671
  %v1673 = vmul.f32 %v1643, 1.442695
  %v1674 = vpow.pop %v1673
  %v1675 = vmul.f32 %v1644, 1.442695
  %v1676 = vpow.pop %v1675
  %1677 = vadd.xlane.f32.xlu0 %v1646
  %v1678 = vpop.xlane.xlu0 %1677
  %1679 = vadd.xlane.f32.xlu0 %v1648
  %v1680 = vpop.xlane.xlu0 %1679
  %1681 = vadd.xlane.f32.xlu0 %v1650
  %v1682 = vpop.xlane.xlu0 %1681
  %1683 = vadd.xlane.f32.xlu0 %v1652
  %v1684 = vpop.xlane.xlu0 %1683
  %1685 = vadd.xlane.f32.xlu0 %v1654
  %v1686 = vpop.xlane.xlu0 %1685
  %1687 = vadd.xlane.f32.xlu0 %v1656
  %v1688 = vpop.xlane.xlu0 %1687
  %1689 = vadd.xlane.f32.xlu0 %v1658
  %v1690 = vpop.xlane.xlu0 %1689
  %1691 = vadd.xlane.f32.xlu0 %v1660
  %v1692 = vpop.xlane.xlu0 %1691
  %1693 = vadd.xlane.f32.xlu0 %v1662
  %v1694 = vpop.xlane.xlu0 %1693
  %1695 = vadd.xlane.f32.xlu0 %v1664
  %v1696 = vpop.xlane.xlu0 %1695
  %1697 = vadd.xlane.f32.xlu0 %v1666
  %v1698 = vpop.xlane.xlu0 %1697
  %1699 = vadd.xlane.f32.xlu0 %v1668
  %v1700 = vpop.xlane.xlu0 %1699
  %1701 = vadd.xlane.f32.xlu0 %v1670
  %v1702 = vpop.xlane.xlu0 %1701
  %1703 = vadd.xlane.f32.xlu0 %v1672
  %v1704 = vpop.xlane.xlu0 %1703
  %1705 = vadd.xlane.f32.xlu0 %v1674
  %v1706 = vpop.xlane.xlu0 %1705
  %1707 = vadd.xlane.f32.xlu0 %v1676
  %v1708 = vpop.xlane.xlu0 %1707
  %v1709 = vrcp.pop %v1678
  %v1710 = vrcp.pop %v1680
  %v1711 = vrcp.pop %v1682
  %v1712 = vrcp.pop %v1684
  %v1713 = vrcp.pop %v1686
  %v1714 = vrcp.pop %v1688
  %v1715 = vrcp.pop %v1690
  %v1716 = vrcp.pop %v1692
  %v1717 = vrcp.pop %v1694
  %v1718 = vrcp.pop %v1696
  %v1719 = vrcp.pop %v1698
  %v1720 = vrcp.pop %v1700
  %v1721 = vrcp.pop %v1702
  %v1722 = vrcp.pop %v1704
  %v1723 = vrcp.pop %v1706
  %v1724 = vrcp.pop %v1708
  %v1725 = vmul.f32 %v1709, %v1053
  %v1726 = vmul.f32 %v1710, %v1053
  %v1727 = vmul.f32 %v1711, %v1053
  %v1728 = vmul.f32 %v1712, %v1053
  %v1729 = vmul.f32 %v1713, %v1053
  %v1730 = vmul.f32 %v1714, %v1053
  %v1731 = vmul.f32 %v1715, %v1053
  %v1732 = vmul.f32 %v1716, %v1053
  %v1733 = vmul.f32 %v1717, %v1053
  %v1734 = vmul.f32 %v1718, %v1053
  %v1735 = vmul.f32 %v1719, %v1053
  %v1736 = vmul.f32 %v1720, %v1053
  %v1737 = vmul.f32 %v1721, %v1053
  %v1738 = vmul.f32 %v1722, %v1053
  %v1739 = vmul.f32 %v1723, %v1053
  %v1740 = vmul.f32 %v1724, %v1053
  %v1741 = vadd.f32 %v1725, 0.0
  %v1742 = vadd.f32 %v1726, 0.0
  %v1743 = vadd.f32 %v1727, 0.0
  %v1744 = vadd.f32 %v1728, 0.0
  %v1745 = vadd.f32 %v1729, 0.0
  %v1746 = vadd.f32 %v1730, 0.0
  %v1747 = vadd.f32 %v1731, 0.0
  %v1748 = vadd.f32 %v1732, 0.0
  %v1749 = vadd.f32 %v1733, 0.0
  %v1750 = vadd.f32 %v1734, 0.0
  %v1751 = vadd.f32 %v1735, 0.0
  %v1752 = vadd.f32 %v1736, 0.0
  %v1753 = vadd.f32 %v1737, 0.0
  %v1754 = vadd.f32 %v1738, 0.0
  %v1755 = vadd.f32 %v1739, 0.0
  %v1756 = vadd.f32 %v1740, 0.0
  %v1757 = vld [vmem:[%s5 + $0x20] sm:$0xff]
  %v1758 = vld [vmem:[%s5 + $0x28] sm:$0xff]
  %v1759 = vld [vmem:[%s5 + $0x30] sm:$0xff]
  %v1760 = vld [vmem:[%s5 + $0x38] sm:$0xff]
  %v1761 = vadd.f32 %v1308, %v1757
  %v1762 = vadd.f32 %v1314, %v1758
  %v1763 = vadd.f32 %v1320, %v1759
  %v1764 = vadd.f32 %v1326, %v1760
  %v1765 = vadd.f32 %v1332, %v1757
  %v1766 = vadd.f32 %v1338, %v1758
  %v1767 = vadd.f32 %v1344, %v1759
  %v1768 = vadd.f32 %v1350, %v1760
  %v1769 = vadd.f32 %v1356, %v1757
  %v1770 = vadd.f32 %v1362, %v1758
  %v1771 = vadd.f32 %v1368, %v1759
  %v1772 = vadd.f32 %v1374, %v1760
  %v1773 = vadd.f32 %v1380, %v1757
  %v1774 = vadd.f32 %v1386, %v1758
  %v1775 = vadd.f32 %v1392, %v1759
  %v1776 = vadd.f32 %v1398, %v1760
  %v1777 = vadd.f32 %v1761, %v1030
  %v1778 = vadd.f32 %v1762, %v1031
  %v1779 = vadd.f32 %v1763, %v1032
  %v1780 = vadd.f32 %v1764, %v1033
  %v1781 = vadd.f32 %v1765, %v1034
  %v1782 = vadd.f32 %v1766, %v1035
  %v1783 = vadd.f32 %v1767, %v1036
  %v1784 = vadd.f32 %v1768, %v1037
  %v1785 = vadd.f32 %v1769, %v1038
  %v1786 = vadd.f32 %v1770, %v1039
  %v1787 = vadd.f32 %v1771, %v1040
  %v1788 = vadd.f32 %v1772, %v1041
  %v1789 = vadd.f32 %v1773, %v1042
  %v1790 = vadd.f32 %v1774, %v1043
  %v1791 = vadd.f32 %v1775, %v1044
  %v1792 = vadd.f32 %v1776, %v1045
  %1793 = vmax.xlane.f32.xlu0 %v1777
  %v1794 = vpop.xlane.xlu0 %1793
  %1795 = vmax.xlane.f32.xlu0 %v1778
  %v1796 = vpop.xlane.xlu0 %1795
  %1797 = vmax.xlane.f32.xlu0 %v1779
  %v1798 = vpop.xlane.xlu0 %1797
  %1799 = vmax.xlane.f32.xlu0 %v1780
  %v1800 = vpop.xlane.xlu0 %1799
  %1801 = vmax.xlane.f32.xlu0 %v1781
  %v1802 = vpop.xlane.xlu0 %1801
  %1803 = vmax.xlane.f32.xlu0 %v1782
  %v1804 = vpop.xlane.xlu0 %1803
  %1805 = vmax.xlane.f32.xlu0 %v1783
  %v1806 = vpop.xlane.xlu0 %1805
  %1807 = vmax.xlane.f32.xlu0 %v1784
  %v1808 = vpop.xlane.xlu0 %1807
  %1809 = vmax.xlane.f32.xlu0 %v1785
  %v1810 = vpop.xlane.xlu0 %1809
  %1811 = vmax.xlane.f32.xlu0 %v1786
  %v1812 = vpop.xlane.xlu0 %1811
  %1813 = vmax.xlane.f32.xlu0 %v1787
  %v1814 = vpop.xlane.xlu0 %1813
  %1815 = vmax.xlane.f32.xlu0 %v1788
  %v1816 = vpop.xlane.xlu0 %1815
  %1817 = vmax.xlane.f32.xlu0 %v1789
  %v1818 = vpop.xlane.xlu0 %1817
  %1819 = vmax.xlane.f32.xlu0 %v1790
  %v1820 = vpop.xlane.xlu0 %1819
  %1821 = vmax.xlane.f32.xlu0 %v1791
  %v1822 = vpop.xlane.xlu0 %1821
  %1823 = vmax.xlane.f32.xlu0 %v1792
  %v1824 = vpop.xlane.xlu0 %1823
  %v1825 = vsub.f32 %v1777, %v1794
  %v1826 = vsub.f32 %v1778, %v1796
  %v1827 = vsub.f32 %v1779, %v1798
  %v1828 = vsub.f32 %v1780, %v1800
  %v1829 = vsub.f32 %v1781, %v1802
  %v1830 = vsub.f32 %v1782, %v1804
  %v1831 = vsub.f32 %v1783, %v1806
  %v1832 = vsub.f32 %v1784, %v1808
  %v1833 = vsub.f32 %v1785, %v1810
  %v1834 = vsub.f32 %v1786, %v1812
  %v1835 = vsub.f32 %v1787, %v1814
  %v1836 = vsub.f32 %v1788, %v1816
  %v1837 = vsub.f32 %v1789, %v1818
  %v1838 = vsub.f32 %v1790, %v1820
  %v1839 = vsub.f32 %v1791, %v1822
  %v1840 = vsub.f32 %v1792, %v1824
  %v1841 = vmul.f32 %v1825, 1.442695
  %v1842 = vpow.pop %v1841
  %v1843 = vmul.f32 %v1826, 1.442695
  %v1844 = vpow.pop %v1843
  %v1845 = vmul.f32 %v1827, 1.442695
  %v1846 = vpow.pop %v1845
  %v1847 = vmul.f32 %v1828, 1.442695
  %v1848 = vpow.pop %v1847
  %v1849 = vmul.f32 %v1829, 1.442695
  %v1850 = vpow.pop %v1849
  %v1851 = vmul.f32 %v1830, 1.442695
  %v1852 = vpow.pop %v1851
  %v1853 = vmul.f32 %v1831, 1.442695
  %v1854 = vpow.pop %v1853
  %v1855 = vmul.f32 %v1832, 1.442695
  %v1856 = vpow.pop %v1855
  %v1857 = vmul.f32 %v1833, 1.442695
  %v1858 = vpow.pop %v1857
  %v1859 = vmul.f32 %v1834, 1.442695
  %v1860 = vpow.pop %v1859
  %v1861 = vmul.f32 %v1835, 1.442695
  %v1862 = vpow.pop %v1861
  %v1863 = vmul.f32 %v1836, 1.442695
  %v1864 = vpow.pop %v1863
  %v1865 = vmul.f32 %v1837, 1.442695
  %v1866 = vpow.pop %v1865
  %v1867 = vmul.f32 %v1838, 1.442695
  %v1868 = vpow.pop %v1867
  %v1869 = vmul.f32 %v1839, 1.442695
  %v1870 = vpow.pop %v1869
  %v1871 = vmul.f32 %v1840, 1.442695
  %v1872 = vpow.pop %v1871
  %1873 = vadd.xlane.f32.xlu0 %v1842
  %v1874 = vpop.xlane.xlu0 %1873
  %1875 = vadd.xlane.f32.xlu0 %v1844
  %v1876 = vpop.xlane.xlu0 %1875
  %1877 = vadd.xlane.f32.xlu0 %v1846
  %v1878 = vpop.xlane.xlu0 %1877
  %1879 = vadd.xlane.f32.xlu0 %v1848
  %v1880 = vpop.xlane.xlu0 %1879
  %1881 = vadd.xlane.f32.xlu0 %v1850
  %v1882 = vpop.xlane.xlu0 %1881
  %1883 = vadd.xlane.f32.xlu0 %v1852
  %v1884 = vpop.xlane.xlu0 %1883
  %1885 = vadd.xlane.f32.xlu0 %v1854
  %v1886 = vpop.xlane.xlu0 %1885
  %1887 = vadd.xlane.f32.xlu0 %v1856
  %v1888 = vpop.xlane.xlu0 %1887
  %1889 = vadd.xlane.f32.xlu0 %v1858
  %v1890 = vpop.xlane.xlu0 %1889
  %1891 = vadd.xlane.f32.xlu0 %v1860
  %v1892 = vpop.xlane.xlu0 %1891
  %1893 = vadd.xlane.f32.xlu0 %v1862
  %v1894 = vpop.xlane.xlu0 %1893
  %1895 = vadd.xlane.f32.xlu0 %v1864
  %v1896 = vpop.xlane.xlu0 %1895
  %1897 = vadd.xlane.f32.xlu0 %v1866
  %v1898 = vpop.xlane.xlu0 %1897
  %1899 = vadd.xlane.f32.xlu0 %v1868
  %v1900 = vpop.xlane.xlu0 %1899
  %1901 = vadd.xlane.f32.xlu0 %v1870
  %v1902 = vpop.xlane.xlu0 %1901
  %1903 = vadd.xlane.f32.xlu0 %v1872
  %v1904 = vpop.xlane.xlu0 %1903
  %v1905 = vrcp.pop %v1874
  %v1906 = vrcp.pop %v1876
  %v1907 = vrcp.pop %v1878
  %v1908 = vrcp.pop %v1880
  %v1909 = vrcp.pop %v1882
  %v1910 = vrcp.pop %v1884
  %v1911 = vrcp.pop %v1886
  %v1912 = vrcp.pop %v1888
  %v1913 = vrcp.pop %v1890
  %v1914 = vrcp.pop %v1892
  %v1915 = vrcp.pop %v1894
  %v1916 = vrcp.pop %v1896
  %v1917 = vrcp.pop %v1898
  %v1918 = vrcp.pop %v1900
  %v1919 = vrcp.pop %v1902
  %v1920 = vrcp.pop %v1904
  %v1921 = vmul.f32 %v1905, %v1056
  %v1922 = vmul.f32 %v1906, %v1056
  %v1923 = vmul.f32 %v1907, %v1056
  %v1924 = vmul.f32 %v1908, %v1056
  %v1925 = vmul.f32 %v1909, %v1056
  %v1926 = vmul.f32 %v1910, %v1056
  %v1927 = vmul.f32 %v1911, %v1056
  %v1928 = vmul.f32 %v1912, %v1056
  %v1929 = vmul.f32 %v1913, %v1056
  %v1930 = vmul.f32 %v1914, %v1056
  %v1931 = vmul.f32 %v1915, %v1056
  %v1932 = vmul.f32 %v1916, %v1056
  %v1933 = vmul.f32 %v1917, %v1056
  %v1934 = vmul.f32 %v1918, %v1056
  %v1935 = vmul.f32 %v1919, %v1056
  %v1936 = vmul.f32 %v1920, %v1056
  %v1937 = vadd.f32 %v1741, %v1921
  %v1938 = vadd.f32 %v1742, %v1922
  %v1939 = vadd.f32 %v1743, %v1923
  %v1940 = vadd.f32 %v1744, %v1924
  %v1941 = vadd.f32 %v1745, %v1925
  %v1942 = vadd.f32 %v1746, %v1926
  %v1943 = vadd.f32 %v1747, %v1927
  %v1944 = vadd.f32 %v1748, %v1928
  %v1945 = vadd.f32 %v1749, %v1929
  %v1946 = vadd.f32 %v1750, %v1930
  %v1947 = vadd.f32 %v1751, %v1931
  %v1948 = vadd.f32 %v1752, %v1932
  %v1949 = vadd.f32 %v1753, %v1933
  %v1950 = vadd.f32 %v1754, %v1934
  %v1951 = vadd.f32 %v1755, %v1935
  %v1952 = vadd.f32 %v1756, %v1936
  %v1953 = vld [vmem:[%s5 + $0x40] sm:$0xff]
  %v1954 = vld [vmem:[%s5 + $0x48] sm:$0xff]
  %v1955 = vld [vmem:[%s5 + $0x50] sm:$0xff]
  %v1956 = vld [vmem:[%s5 + $0x58] sm:$0xff]
  %v1957 = vadd.f32 %v1467, %v1953
  %v1958 = vadd.f32 %v1473, %v1954
  %v1959 = vadd.f32 %v1479, %v1955
  %v1960 = vadd.f32 %v1485, %v1956
  %v1961 = vadd.f32 %v1491, %v1953
  %v1962 = vadd.f32 %v1497, %v1954
  %v1963 = vadd.f32 %v1503, %v1955
  %v1964 = vadd.f32 %v1509, %v1956
  %v1965 = vadd.f32 %v1515, %v1953
  %v1966 = vadd.f32 %v1521, %v1954
  %v1967 = vadd.f32 %v1527, %v1955
  %v1968 = vadd.f32 %v1533, %v1956
  %v1969 = vadd.f32 %v1539, %v1953
  %v1970 = vadd.f32 %v1545, %v1954
  %v1971 = vadd.f32 %v1551, %v1955
  %v1972 = vadd.f32 %v1557, %v1956
  %v1973 = vadd.f32 %v1957, %v1030
  %v1974 = vadd.f32 %v1958, %v1031
  %v1975 = vadd.f32 %v1959, %v1032
  %v1976 = vadd.f32 %v1960, %v1033
  %v1977 = vadd.f32 %v1961, %v1034
  %v1978 = vadd.f32 %v1962, %v1035
  %v1979 = vadd.f32 %v1963, %v1036
  %v1980 = vadd.f32 %v1964, %v1037
  %v1981 = vadd.f32 %v1965, %v1038
  %v1982 = vadd.f32 %v1966, %v1039
  %v1983 = vadd.f32 %v1967, %v1040
  %v1984 = vadd.f32 %v1968, %v1041
  %v1985 = vadd.f32 %v1969, %v1042
  %v1986 = vadd.f32 %v1970, %v1043
  %v1987 = vadd.f32 %v1971, %v1044
  %v1988 = vadd.f32 %v1972, %v1045
  %1989 = vmax.xlane.f32.xlu0 %v1973
  %v1990 = vpop.xlane.xlu0 %1989
  %1991 = vmax.xlane.f32.xlu0 %v1974
  %v1992 = vpop.xlane.xlu0 %1991
  %1993 = vmax.xlane.f32.xlu0 %v1975
  %v1994 = vpop.xlane.xlu0 %1993
  %1995 = vmax.xlane.f32.xlu0 %v1976
  %v1996 = vpop.xlane.xlu0 %1995
  %1997 = vmax.xlane.f32.xlu0 %v1977
  %v1998 = vpop.xlane.xlu0 %1997
  %1999 = vmax.xlane.f32.xlu0 %v1978
  %v2000 = vpop.xlane.xlu0 %1999
  %2001 = vmax.xlane.f32.xlu0 %v1979
  %v2002 = vpop.xlane.xlu0 %2001
  %2003 = vmax.xlane.f32.xlu0 %v1980
  %v2004 = vpop.xlane.xlu0 %2003
  %2005 = vmax.xlane.f32.xlu0 %v1981
  %v2006 = vpop.xlane.xlu0 %2005
  %2007 = vmax.xlane.f32.xlu0 %v1982
  %v2008 = vpop.xlane.xlu0 %2007
  %2009 = vmax.xlane.f32.xlu0 %v1983
  %v2010 = vpop.xlane.xlu0 %2009
  %2011 = vmax.xlane.f32.xlu0 %v1984
  %v2012 = vpop.xlane.xlu0 %2011
  %2013 = vmax.xlane.f32.xlu0 %v1985
  %v2014 = vpop.xlane.xlu0 %2013
  %2015 = vmax.xlane.f32.xlu0 %v1986
  %v2016 = vpop.xlane.xlu0 %2015
  %2017 = vmax.xlane.f32.xlu0 %v1987
  %v2018 = vpop.xlane.xlu0 %2017
  %2019 = vmax.xlane.f32.xlu0 %v1988
  %v2020 = vpop.xlane.xlu0 %2019
  %v2021 = vsub.f32 %v1973, %v1990
  %v2022 = vsub.f32 %v1974, %v1992
  %v2023 = vsub.f32 %v1975, %v1994
  %v2024 = vsub.f32 %v1976, %v1996
  %v2025 = vsub.f32 %v1977, %v1998
  %v2026 = vsub.f32 %v1978, %v2000
  %v2027 = vsub.f32 %v1979, %v2002
  %v2028 = vsub.f32 %v1980, %v2004
  %v2029 = vsub.f32 %v1981, %v2006
  %v2030 = vsub.f32 %v1982, %v2008
  %v2031 = vsub.f32 %v1983, %v2010
  %v2032 = vsub.f32 %v1984, %v2012
  %v2033 = vsub.f32 %v1985, %v2014
  %v2034 = vsub.f32 %v1986, %v2016
  %v2035 = vsub.f32 %v1987, %v2018
  %v2036 = vsub.f32 %v1988, %v2020
  %v2037 = vmul.f32 %v2021, 1.442695
  %v2038 = vpow.pop %v2037
  %v2039 = vmul.f32 %v2022, 1.442695
  %v2040 = vpow.pop %v2039
  %v2041 = vmul.f32 %v2023, 1.442695
  %v2042 = vpow.pop %v2041
  %v2043 = vmul.f32 %v2024, 1.442695
  %v2044 = vpow.pop %v2043
  %v2045 = vmul.f32 %v2025, 1.442695
  %v2046 = vpow.pop %v2045
  %v2047 = vmul.f32 %v2026, 1.442695
  %v2048 = vpow.pop %v2047
  %v2049 = vmul.f32 %v2027, 1.442695
  %v2050 = vpow.pop %v2049
  %v2051 = vmul.f32 %v2028, 1.442695
  %v2052 = vpow.pop %v2051
  %v2053 = vmul.f32 %v2029, 1.442695
  %v2054 = vpow.pop %v2053
  %v2055 = vmul.f32 %v2030, 1.442695
  %v2056 = vpow.pop %v2055
  %v2057 = vmul.f32 %v2031, 1.442695
  %v2058 = vpow.pop %v2057
  %v2059 = vmul.f32 %v2032, 1.442695
  %v2060 = vpow.pop %v2059
  %v2061 = vmul.f32 %v2033, 1.442695
  %v2062 = vpow.pop %v2061
  %v2063 = vmul.f32 %v2034, 1.442695
  %v2064 = vpow.pop %v2063
  %v2065 = vmul.f32 %v2035, 1.442695
  %v2066 = vpow.pop %v2065
  %v2067 = vmul.f32 %v2036, 1.442695
  %v2068 = vpow.pop %v2067
  %2069 = vadd.xlane.f32.xlu0 %v2038
  %v2070 = vpop.xlane.xlu0 %2069
  %2071 = vadd.xlane.f32.xlu0 %v2040
  %v2072 = vpop.xlane.xlu0 %2071
  %2073 = vadd.xlane.f32.xlu0 %v2042
  %v2074 = vpop.xlane.xlu0 %2073
  %2075 = vadd.xlane.f32.xlu0 %v2044
  %v2076 = vpop.xlane.xlu0 %2075
  %2077 = vadd.xlane.f32.xlu0 %v2046
  %v2078 = vpop.xlane.xlu0 %2077
  %2079 = vadd.xlane.f32.xlu0 %v2048
  %v2080 = vpop.xlane.xlu0 %2079
  %2081 = vadd.xlane.f32.xlu0 %v2050
  %v2082 = vpop.xlane.xlu0 %2081
  %2083 = vadd.xlane.f32.xlu0 %v2052
  %v2084 = vpop.xlane.xlu0 %2083
  %2085 = vadd.xlane.f32.xlu0 %v2054
  %v2086 = vpop.xlane.xlu0 %2085
  %2087 = vadd.xlane.f32.xlu0 %v2056
  %v2088 = vpop.xlane.xlu0 %2087
  %2089 = vadd.xlane.f32.xlu0 %v2058
  %v2090 = vpop.xlane.xlu0 %2089
  %2091 = vadd.xlane.f32.xlu0 %v2060
  %v2092 = vpop.xlane.xlu0 %2091
  %2093 = vadd.xlane.f32.xlu0 %v2062
  %v2094 = vpop.xlane.xlu0 %2093
  %2095 = vadd.xlane.f32.xlu0 %v2064
  %v2096 = vpop.xlane.xlu0 %2095
  %2097 = vadd.xlane.f32.xlu0 %v2066
  %v2098 = vpop.xlane.xlu0 %2097
  %2099 = vadd.xlane.f32.xlu0 %v2068
  %v2100 = vpop.xlane.xlu0 %2099
  %v2101 = vrcp.pop %v2070
  %v2102 = vrcp.pop %v2072
  %v2103 = vrcp.pop %v2074
  %v2104 = vrcp.pop %v2076
  %v2105 = vrcp.pop %v2078
  %v2106 = vrcp.pop %v2080
  %v2107 = vrcp.pop %v2082
  %v2108 = vrcp.pop %v2084
  %v2109 = vrcp.pop %v2086
  %v2110 = vrcp.pop %v2088
  %v2111 = vrcp.pop %v2090
  %v2112 = vrcp.pop %v2092
  %v2113 = vrcp.pop %v2094
  %v2114 = vrcp.pop %v2096
  %v2115 = vrcp.pop %v2098
  %v2116 = vrcp.pop %v2100
  %v2117 = vmul.f32 %v2101, %v1059
  %v2118 = vmul.f32 %v2102, %v1059
  %v2119 = vmul.f32 %v2103, %v1059
  %v2120 = vmul.f32 %v2104, %v1059
  %v2121 = vmul.f32 %v2105, %v1059
  %v2122 = vmul.f32 %v2106, %v1059
  %v2123 = vmul.f32 %v2107, %v1059
  %v2124 = vmul.f32 %v2108, %v1059
  %v2125 = vmul.f32 %v2109, %v1059
  %v2126 = vmul.f32 %v2110, %v1059
  %v2127 = vmul.f32 %v2111, %v1059
  %v2128 = vmul.f32 %v2112, %v1059
  %v2129 = vmul.f32 %v2113, %v1059
  %v2130 = vmul.f32 %v2114, %v1059
  %v2131 = vmul.f32 %v2115, %v1059
  %v2132 = vmul.f32 %v2116, %v1059
  %v2133 = vadd.f32 %v1937, %v2117
  %v2134 = vadd.f32 %v1938, %v2118
  %v2135 = vadd.f32 %v1939, %v2119
  %v2136 = vadd.f32 %v1940, %v2120
  %v2137 = vadd.f32 %v1941, %v2121
  %v2138 = vadd.f32 %v1942, %v2122
  %v2139 = vadd.f32 %v1943, %v2123
  %v2140 = vadd.f32 %v1944, %v2124
  %v2141 = vadd.f32 %v1945, %v2125
  %v2142 = vadd.f32 %v1946, %v2126
  %v2143 = vadd.f32 %v1947, %v2127
  %v2144 = vadd.f32 %v1948, %v2128
  %v2145 = vadd.f32 %v1949, %v2129
  %v2146 = vadd.f32 %v1950, %v2130
  %v2147 = vadd.f32 %v1951, %v2131
  %v2148 = vadd.f32 %v1952, %v2132
  %v2149 = vld [vmem:[%s5 + $0x60] sm:$0xff]
  %v2150 = vld [vmem:[%s5 + $0x68] sm:$0xff]
  %v2151 = vld [vmem:[%s5 + $0x70] sm:$0xff]
  %v2152 = vld [vmem:[%s5 + $0x78] sm:$0xff]
  %v2153 = vadd.f32 %v1469, %v2149
  %v2154 = vadd.f32 %v1475, %v2150
  %v2155 = vadd.f32 %v1481, %v2151
  %v2156 = vadd.f32 %v1487, %v2152
  %v2157 = vadd.f32 %v1493, %v2149
  %v2158 = vadd.f32 %v1499, %v2150
  %v2159 = vadd.f32 %v1505, %v2151
  %v2160 = vadd.f32 %v1511, %v2152
  %v2161 = vadd.f32 %v1517, %v2149
  %v2162 = vadd.f32 %v1523, %v2150
  %v2163 = vadd.f32 %v1529, %v2151
  %v2164 = vadd.f32 %v1535, %v2152
  %v2165 = vadd.f32 %v1541, %v2149
  %v2166 = vadd.f32 %v1547, %v2150
  %v2167 = vadd.f32 %v1553, %v2151
  %v2168 = vadd.f32 %v1559, %v2152
  %v2169 = vadd.f32 %v2153, %v1030
  %v2170 = vadd.f32 %v2154, %v1031
  %v2171 = vadd.f32 %v2155, %v1032
  %v2172 = vadd.f32 %v2156, %v1033
  %v2173 = vadd.f32 %v2157, %v1034
  %v2174 = vadd.f32 %v2158, %v1035
  %v2175 = vadd.f32 %v2159, %v1036
  %v2176 = vadd.f32 %v2160, %v1037
  %v2177 = vadd.f32 %v2161, %v1038
  %v2178 = vadd.f32 %v2162, %v1039
  %v2179 = vadd.f32 %v2163, %v1040
  %v2180 = vadd.f32 %v2164, %v1041
  %v2181 = vadd.f32 %v2165, %v1042
  %v2182 = vadd.f32 %v2166, %v1043
  %v2183 = vadd.f32 %v2167, %v1044
  %v2184 = vadd.f32 %v2168, %v1045
  %2185 = vmax.xlane.f32.xlu0 %v2169
  %v2186 = vpop.xlane.xlu0 %2185
  %2187 = vmax.xlane.f32.xlu0 %v2170
  %v2188 = vpop.xlane.xlu0 %2187
  %2189 = vmax.xlane.f32.xlu0 %v2171
  %v2190 = vpop.xlane.xlu0 %2189
  %2191 = vmax.xlane.f32.xlu0 %v2172
  %v2192 = vpop.xlane.xlu0 %2191
  %2193 = vmax.xlane.f32.xlu0 %v2173
  %v2194 = vpop.xlane.xlu0 %2193
  %2195 = vmax.xlane.f32.xlu0 %v2174
  %v2196 = vpop.xlane.xlu0 %2195
  %2197 = vmax.xlane.f32.xlu0 %v2175
  %v2198 = vpop.xlane.xlu0 %2197
  %2199 = vmax.xlane.f32.xlu0 %v2176
  %v2200 = vpop.xlane.xlu0 %2199
  %2201 = vmax.xlane.f32.xlu0 %v2177
  %v2202 = vpop.xlane.xlu0 %2201
  %2203 = vmax.xlane.f32.xlu0 %v2178
  %v2204 = vpop.xlane.xlu0 %2203
  %2205 = vmax.xlane.f32.xlu0 %v2179
  %v2206 = vpop.xlane.xlu0 %2205
  %2207 = vmax.xlane.f32.xlu0 %v2180
  %v2208 = vpop.xlane.xlu0 %2207
  %2209 = vmax.xlane.f32.xlu0 %v2181
  %v2210 = vpop.xlane.xlu0 %2209
  %2211 = vmax.xlane.f32.xlu0 %v2182
  %v2212 = vpop.xlane.xlu0 %2211
  %2213 = vmax.xlane.f32.xlu0 %v2183
  %v2214 = vpop.xlane.xlu0 %2213
  %2215 = vmax.xlane.f32.xlu0 %v2184
  %v2216 = vpop.xlane.xlu0 %2215
  %v2217 = vsub.f32 %v2169, %v2186
  %v2218 = vsub.f32 %v2170, %v2188
  %v2219 = vsub.f32 %v2171, %v2190
  %v2220 = vsub.f32 %v2172, %v2192
  %v2221 = vsub.f32 %v2173, %v2194
  %v2222 = vsub.f32 %v2174, %v2196
  %v2223 = vsub.f32 %v2175, %v2198
  %v2224 = vsub.f32 %v2176, %v2200
  %v2225 = vsub.f32 %v2177, %v2202
  %v2226 = vsub.f32 %v2178, %v2204
  %v2227 = vsub.f32 %v2179, %v2206
  %v2228 = vsub.f32 %v2180, %v2208
  %v2229 = vsub.f32 %v2181, %v2210
  %v2230 = vsub.f32 %v2182, %v2212
  %v2231 = vsub.f32 %v2183, %v2214
  %v2232 = vsub.f32 %v2184, %v2216
  %v2233 = vmul.f32 %v2217, 1.442695
  %v2234 = vpow.pop %v2233
  %v2235 = vmul.f32 %v2218, 1.442695
  %v2236 = vpow.pop %v2235
  %v2237 = vmul.f32 %v2219, 1.442695
  %v2238 = vpow.pop %v2237
  %v2239 = vmul.f32 %v2220, 1.442695
  %v2240 = vpow.pop %v2239
  %v2241 = vmul.f32 %v2221, 1.442695
  %v2242 = vpow.pop %v2241
  %v2243 = vmul.f32 %v2222, 1.442695
  %v2244 = vpow.pop %v2243
  %v2245 = vmul.f32 %v2223, 1.442695
  %v2246 = vpow.pop %v2245
  %v2247 = vmul.f32 %v2224, 1.442695
  %v2248 = vpow.pop %v2247
  %v2249 = vmul.f32 %v2225, 1.442695
  %v2250 = vpow.pop %v2249
  %v2251 = vmul.f32 %v2226, 1.442695
  %v2252 = vpow.pop %v2251
  %v2253 = vmul.f32 %v2227, 1.442695
  %v2254 = vpow.pop %v2253
  %v2255 = vmul.f32 %v2228, 1.442695
  %v2256 = vpow.pop %v2255
  %v2257 = vmul.f32 %v2229, 1.442695
  %v2258 = vpow.pop %v2257
  %v2259 = vmul.f32 %v2230, 1.442695
  %v2260 = vpow.pop %v2259
  %v2261 = vmul.f32 %v2231, 1.442695
  %v2262 = vpow.pop %v2261
  %v2263 = vmul.f32 %v2232, 1.442695
  %v2264 = vpow.pop %v2263
  %2265 = vadd.xlane.f32.xlu0 %v2234
  %v2266 = vpop.xlane.xlu0 %2265
  %2267 = vadd.xlane.f32.xlu0 %v2236
  %v2268 = vpop.xlane.xlu0 %2267
  %2269 = vadd.xlane.f32.xlu0 %v2238
  %v2270 = vpop.xlane.xlu0 %2269
  %2271 = vadd.xlane.f32.xlu0 %v2240
  %v2272 = vpop.xlane.xlu0 %2271
  %2273 = vadd.xlane.f32.xlu0 %v2242
  %v2274 = vpop.xlane.xlu0 %2273
  %2275 = vadd.xlane.f32.xlu0 %v2244
  %v2276 = vpop.xlane.xlu0 %2275
  %2277 = vadd.xlane.f32.xlu0 %v2246
  %v2278 = vpop.xlane.xlu0 %2277
  %2279 = vadd.xlane.f32.xlu0 %v2248
  %v2280 = vpop.xlane.xlu0 %2279
  %2281 = vadd.xlane.f32.xlu0 %v2250
  %v2282 = vpop.xlane.xlu0 %2281
  %2283 = vadd.xlane.f32.xlu0 %v2252
  %v2284 = vpop.xlane.xlu0 %2283
  %2285 = vadd.xlane.f32.xlu0 %v2254
  %v2286 = vpop.xlane.xlu0 %2285
  %2287 = vadd.xlane.f32.xlu0 %v2256
  %v2288 = vpop.xlane.xlu0 %2287
  %2289 = vadd.xlane.f32.xlu0 %v2258
  %v2290 = vpop.xlane.xlu0 %2289
  %2291 = vadd.xlane.f32.xlu0 %v2260
  %v2292 = vpop.xlane.xlu0 %2291
  %2293 = vadd.xlane.f32.xlu0 %v2262
  %v2294 = vpop.xlane.xlu0 %2293
  %2295 = vadd.xlane.f32.xlu0 %v2264
  %v2296 = vpop.xlane.xlu0 %2295
  %v2297 = vrcp.pop %v2266
  %v2298 = vrcp.pop %v2268
  %v2299 = vrcp.pop %v2270
  %v2300 = vrcp.pop %v2272
  %v2301 = vrcp.pop %v2274
  %v2302 = vrcp.pop %v2276
  %v2303 = vrcp.pop %v2278
  %v2304 = vrcp.pop %v2280
  %v2305 = vrcp.pop %v2282
  %v2306 = vrcp.pop %v2284
  %v2307 = vrcp.pop %v2286
  %v2308 = vrcp.pop %v2288
  %v2309 = vrcp.pop %v2290
  %v2310 = vrcp.pop %v2292
  %v2311 = vrcp.pop %v2294
  %v2312 = vrcp.pop %v2296
  %v2313 = vmul.f32 %v2297, %v1062
  %v2314 = vmul.f32 %v2298, %v1062
  %v2315 = vmul.f32 %v2299, %v1062
  %v2316 = vmul.f32 %v2300, %v1062
  %v2317 = vmul.f32 %v2301, %v1062
  %v2318 = vmul.f32 %v2302, %v1062
  %v2319 = vmul.f32 %v2303, %v1062
  %v2320 = vmul.f32 %v2304, %v1062
  %v2321 = vmul.f32 %v2305, %v1062
  %v2322 = vmul.f32 %v2306, %v1062
  %v2323 = vmul.f32 %v2307, %v1062
  %v2324 = vmul.f32 %v2308, %v1062
  %v2325 = vmul.f32 %v2309, %v1062
  %v2326 = vmul.f32 %v2310, %v1062
  %v2327 = vmul.f32 %v2311, %v1062
  %v2328 = vmul.f32 %v2312, %v1062
  %v2329 = vadd.f32 %v2133, %v2313
  %v2330 = vadd.f32 %v2134, %v2314
  %v2331 = vadd.f32 %v2135, %v2315
  %v2332 = vadd.f32 %v2136, %v2316
  %v2333 = vadd.f32 %v2137, %v2317
  %v2334 = vadd.f32 %v2138, %v2318
  %v2335 = vadd.f32 %v2139, %v2319
  %v2336 = vadd.f32 %v2140, %v2320
  %v2337 = vadd.f32 %v2141, %v2321
  %v2338 = vadd.f32 %v2142, %v2322
  %v2339 = vadd.f32 %v2143, %v2323
  %v2340 = vadd.f32 %v2144, %v2324
  %v2341 = vadd.f32 %v2145, %v2325
  %v2342 = vadd.f32 %v2146, %v2326
  %v2343 = vadd.f32 %v2147, %v2327
  %v2344 = vadd.f32 %v2148, %v2328
  %2345 = vmatprep.subr.mxu0 0.0
  %2346 = vmatpush1.msra.mxu0 %v1142
  %2347 = vmatprep.subr.mxu0 0.0
  %2348 = vmatpush1.msra.mxu0 %v1141
  %2349 = vmatprep.subr.mxu0 0.0
  %2350 = vmatpush1.msra.mxu0 %v1140
  %2351 = vmatprep.subr.mxu0 0.0
  %2352 = vmatpush1.msra.mxu0 %v1139
  %2353 = vmatprep.subr.mxu0 0.0
  %2354 = vmatpush1.msra.mxu0 %v1138
  %2355 = vmatprep.subr.mxu0 0.0
  %2356 = vmatpush1.msra.mxu0 %v1137
  %2357 = vmatprep.subr.mxu0 0.0
  %2358 = vmatpush1.msra.mxu0 %v1136
  %2359 = vmatprep.subr.mxu0 0.0
  %2360 = vmatpush1.msra.mxu0 %v1135
  %2361 = vmatprep.subr.mxu0 0.0
  %2362 = vmatpush1.msra.mxu0 %v1134
  %2363 = vmatprep.subr.mxu0 0.0
  %2364 = vmatpush1.msra.mxu0 %v1133
  %2365 = vmatprep.subr.mxu0 0.0
  %2366 = vmatpush1.msra.mxu0 %v1132
  %2367 = vmatprep.subr.mxu0 0.0
  %2368 = vmatpush1.msra.mxu0 %v1131
  %2369 = vmatprep.subr.mxu0 0.0
  %2370 = vmatpush1.msra.mxu0 %v1130
  %2371 = vmatprep.subr.mxu0 0.0
  %2372 = vmatpush1.msra.mxu0 %v1129
  %2373 = vmatprep.subr.mxu0 0.0
  %2374 = vmatpush1.msra.mxu0 %v1128
  %2375 = vmatprep.subr.mxu0 0.0
  %2376 = vmatpush1.msra.mxu0 %v1127
  %2377 = vmatprep.subr.mxu0 0.0
  %2378 = vmatpush2.msra.mxu0 %v1158
  %2379 = vmatprep.subr.mxu0 0.0
  %2380 = vmatpush2.msra.mxu0 %v1157
  %2381 = vmatprep.subr.mxu0 0.0
  %2382 = vmatpush2.msra.mxu0 %v1156
  %2383 = vmatprep.subr.mxu0 0.0
  %2384 = vmatpush2.msra.mxu0 %v1155
  %2385 = vmatprep.subr.mxu0 0.0
  %2386 = vmatpush2.msra.mxu0 %v1154
  %2387 = vmatprep.subr.mxu0 0.0
  %2388 = vmatpush2.msra.mxu0 %v1153
  %2389 = vmatprep.subr.mxu0 0.0
  %2390 = vmatpush2.msra.mxu0 %v1152
  %2391 = vmatprep.subr.mxu0 0.0
  %2392 = vmatpush2.msra.mxu0 %v1151
  %2393 = vmatprep.subr.mxu0 0.0
  %2394 = vmatpush2.msra.mxu0 %v1150
  %2395 = vmatprep.subr.mxu0 0.0
  %2396 = vmatpush2.msra.mxu0 %v1149
  %2397 = vmatprep.subr.mxu0 0.0
  %2398 = vmatpush2.msra.mxu0 %v1148
  %2399 = vmatprep.subr.mxu0 0.0
  %2400 = vmatpush2.msra.mxu0 %v1147
  %2401 = vmatprep.subr.mxu0 0.0
  %2402 = vmatpush2.msra.mxu0 %v1146
  %2403 = vmatprep.subr.mxu0 0.0
  %2404 = vmatpush2.msra.mxu0 %v1145
  %2405 = vmatprep.subr.mxu0 0.0
  %2406 = vmatpush2.msra.mxu0 %v1144
  %2407 = vmatprep.subr.mxu0 0.0
  %2408 = vmatpush2.msra.mxu0 %v1143
  %2409 = vmatprep.mubr.f32.mxu0 %v1842
  %2410 = vmatmul.mubr.f32.gmra.mxu0 %v1646
  %v2411 = vpop.f32.mrf.mxu0
  %v2412 = vadd.f32 0.0, %v2411
  %v2413 = vpop.f32.mrf.mxu0
  %2414 = vmatprep.mubr.f32.mxu0 %v1844
  %2415 = vmatmul.mubr.f32.gmra.mxu0 %v1648
  %v2416 = vpop.f32.mrf.mxu0
  %v2417 = vadd.f32 0.0, %v2416
  %v2418 = vpop.f32.mrf.mxu0
  %2419 = vmatprep.mubr.f32.mxu0 %v1846
  %2420 = vmatmul.mubr.f32.gmra.mxu0 %v1650
  %v2421 = vpop.f32.mrf.mxu0
  %v2422 = vadd.f32 0.0, %v2421
  %v2423 = vpop.f32.mrf.mxu0
  %2424 = vmatprep.mubr.f32.mxu0 %v1848
  %2425 = vmatmul.mubr.f32.gmra.mxu0 %v1652
  %v2426 = vpop.f32.mrf.mxu0
  %v2427 = vadd.f32 0.0, %v2426
  %v2428 = vpop.f32.mrf.mxu0
  %2429 = vmatprep.mubr.f32.mxu0 %v1850
  %2430 = vmatmul.mubr.f32.gmra.mxu0 %v1654
  %v2431 = vpop.f32.mrf.mxu0
  %v2432 = vadd.f32 0.0, %v2431
  %v2433 = vpop.f32.mrf.mxu0
  %2434 = vmatprep.mubr.f32.mxu0 %v1852
  %2435 = vmatmul.mubr.f32.gmra.mxu0 %v1656
  %v2436 = vpop.f32.mrf.mxu0
  %v2437 = vadd.f32 0.0, %v2436
  %v2438 = vpop.f32.mrf.mxu0
  %2439 = vmatprep.mubr.f32.mxu0 %v1854
  %2440 = vmatmul.mubr.f32.gmra.mxu0 %v1658
  %v2441 = vpop.f32.mrf.mxu0
  %v2442 = vadd.f32 0.0, %v2441
  %v2443 = vpop.f32.mrf.mxu0
  %2444 = vmatprep.mubr.f32.mxu0 %v1856
  %2445 = vmatmul.mubr.f32.gmra.mxu0 %v1660
  %v2446 = vpop.f32.mrf.mxu0
  %v2447 = vadd.f32 0.0, %v2446
  %v2448 = vpop.f32.mrf.mxu0
  %2449 = vmatprep.mubr.f32.mxu0 %v1858
  %2450 = vmatmul.mubr.f32.gmra.mxu0 %v1662
  %v2451 = vpop.f32.mrf.mxu0
  %v2452 = vadd.f32 0.0, %v2451
  %v2453 = vpop.f32.mrf.mxu0
  %2454 = vmatprep.mubr.f32.mxu0 %v1860
  %2455 = vmatmul.mubr.f32.gmra.mxu0 %v1664
  %v2456 = vpop.f32.mrf.mxu0
  %v2457 = vadd.f32 0.0, %v2456
  %v2458 = vpop.f32.mrf.mxu0
  %2459 = vmatprep.mubr.f32.mxu0 %v1862
  %2460 = vmatmul.mubr.f32.gmra.mxu0 %v1666
  %v2461 = vpop.f32.mrf.mxu0
  %v2462 = vadd.f32 0.0, %v2461
  %v2463 = vpop.f32.mrf.mxu0
  %2464 = vmatprep.mubr.f32.mxu0 %v1864
  %2465 = vmatmul.mubr.f32.gmra.mxu0 %v1668
  %v2466 = vpop.f32.mrf.mxu0
  %v2467 = vadd.f32 0.0, %v2466
  %v2468 = vpop.f32.mrf.mxu0
  %2469 = vmatprep.mubr.f32.mxu0 %v1866
  %2470 = vmatmul.mubr.f32.gmra.mxu0 %v1670
  %v2471 = vpop.f32.mrf.mxu0
  %v2472 = vadd.f32 0.0, %v2471
  %v2473 = vpop.f32.mrf.mxu0
  %2474 = vmatprep.mubr.f32.mxu0 %v1868
  %2475 = vmatmul.mubr.f32.gmra.mxu0 %v1672
  %v2476 = vpop.f32.mrf.mxu0
  %v2477 = vadd.f32 0.0, %v2476
  %v2478 = vpop.f32.mrf.mxu0
  %2479 = vmatprep.mubr.f32.mxu0 %v1870
  %2480 = vmatmul.mubr.f32.gmra.mxu0 %v1674
  %v2481 = vpop.f32.mrf.mxu0
  %v2482 = vadd.f32 0.0, %v2481
  %v2483 = vpop.f32.mrf.mxu0
  %2484 = vmatprep.mubr.f32.mxu0 %v1872
  %2485 = vmatmul.mubr.f32.gmra.mxu0 %v1676
  %v2486 = vpop.f32.mrf.mxu0
  %v2487 = vadd.f32 0.0, %v2486
  %v2488 = vpop.f32.mrf.mxu0
  %2489 = vdwg.mxu0
  %2490 = vmatprep.subr.mxu0 0.0
  %2491 = vmatpush1.msra.mxu0 %v1174
  %2492 = vmatprep.subr.mxu0 0.0
  %2493 = vmatpush1.msra.mxu0 %v1173
  %2494 = vmatprep.subr.mxu0 0.0
  %2495 = vmatpush1.msra.mxu0 %v1172
  %2496 = vmatprep.subr.mxu0 0.0
  %2497 = vmatpush1.msra.mxu0 %v1171
  %2498 = vmatprep.subr.mxu0 0.0
  %2499 = vmatpush1.msra.mxu0 %v1170
  %2500 = vmatprep.subr.mxu0 0.0
  %2501 = vmatpush1.msra.mxu0 %v1169
  %2502 = vmatprep.subr.mxu0 0.0
  %2503 = vmatpush1.msra.mxu0 %v1168
  %2504 = vmatprep.subr.mxu0 0.0
  %2505 = vmatpush1.msra.mxu0 %v1167
  %2506 = vmatprep.subr.mxu0 0.0
  %2507 = vmatpush1.msra.mxu0 %v1166
  %2508 = vmatprep.subr.mxu0 0.0
  %2509 = vmatpush1.msra.mxu0 %v1165
  %2510 = vmatprep.subr.mxu0 0.0
  %2511 = vmatpush1.msra.mxu0 %v1164
  %2512 = vmatprep.subr.mxu0 0.0
  %2513 = vmatpush1.msra.mxu0 %v1163
  %2514 = vmatprep.subr.mxu0 0.0
  %2515 = vmatpush1.msra.mxu0 %v1162
  %2516 = vmatprep.subr.mxu0 0.0
  %2517 = vmatpush1.msra.mxu0 %v1161
  %2518 = vmatprep.subr.mxu0 0.0
  %2519 = vmatpush1.msra.mxu0 %v1160
  %2520 = vmatprep.subr.mxu0 0.0
  %2521 = vmatpush1.msra.mxu0 %v1159
  %2522 = vmatprep.subr.mxu0 0.0
  %2523 = vmatpush2.msra.mxu0 %v1190
  %2524 = vmatprep.subr.mxu0 0.0
  %2525 = vmatpush2.msra.mxu0 %v1189
  %2526 = vmatprep.subr.mxu0 0.0
  %2527 = vmatpush2.msra.mxu0 %v1188
  %2528 = vmatprep.subr.mxu0 0.0
  %2529 = vmatpush2.msra.mxu0 %v1187
  %2530 = vmatprep.subr.mxu0 0.0
  %2531 = vmatpush2.msra.mxu0 %v1186
  %2532 = vmatprep.subr.mxu0 0.0
  %2533 = vmatpush2.msra.mxu0 %v1185
  %2534 = vmatprep.subr.mxu0 0.0
  %2535 = vmatpush2.msra.mxu0 %v1184
  %2536 = vmatprep.subr.mxu0 0.0
  %2537 = vmatpush2.msra.mxu0 %v1183
  %2538 = vmatprep.subr.mxu0 0.0
  %2539 = vmatpush2.msra.mxu0 %v1182
  %2540 = vmatprep.subr.mxu0 0.0
  %2541 = vmatpush2.msra.mxu0 %v1181
  %2542 = vmatprep.subr.mxu0 0.0
  %2543 = vmatpush2.msra.mxu0 %v1180
  %2544 = vmatprep.subr.mxu0 0.0
  %2545 = vmatpush2.msra.mxu0 %v1179
  %2546 = vmatprep.subr.mxu0 0.0
  %2547 = vmatpush2.msra.mxu0 %v1178
  %2548 = vmatprep.subr.mxu0 0.0
  %2549 = vmatpush2.msra.mxu0 %v1177
  %2550 = vmatprep.subr.mxu0 0.0
  %2551 = vmatpush2.msra.mxu0 %v1176
  %2552 = vmatprep.subr.mxu0 0.0
  %2553 = vmatpush2.msra.mxu0 %v1175
  %2554 = vmatprep.mubr.f32.mxu0 %v2234
  %2555 = vmatmul.mubr.f32.gmra.mxu0 %v2038
  %v2556 = vpop.f32.mrf.mxu0
  %v2557 = vadd.f32 %v2412, %v2556
  %v2558 = vpop.f32.mrf.mxu0
  %2559 = vmatprep.mubr.f32.mxu0 %v2236
  %2560 = vmatmul.mubr.f32.gmra.mxu0 %v2040
  %v2561 = vpop.f32.mrf.mxu0
  %v2562 = vadd.f32 %v2417, %v2561
  %v2563 = vpop.f32.mrf.mxu0
  %2564 = vmatprep.mubr.f32.mxu0 %v2238
  %2565 = vmatmul.mubr.f32.gmra.mxu0 %v2042
  %v2566 = vpop.f32.mrf.mxu0
  %v2567 = vadd.f32 %v2422, %v2566
  %v2568 = vpop.f32.mrf.mxu0
  %2569 = vmatprep.mubr.f32.mxu0 %v2240
  %2570 = vmatmul.mubr.f32.gmra.mxu0 %v2044
  %v2571 = vpop.f32.mrf.mxu0
  %v2572 = vadd.f32 %v2427, %v2571
  %v2573 = vpop.f32.mrf.mxu0
  %2574 = vmatprep.mubr.f32.mxu0 %v2242
  %2575 = vmatmul.mubr.f32.gmra.mxu0 %v2046
  %v2576 = vpop.f32.mrf.mxu0
  %v2577 = vadd.f32 %v2432, %v2576
  %v2578 = vpop.f32.mrf.mxu0
  %2579 = vmatprep.mubr.f32.mxu0 %v2244
  %2580 = vmatmul.mubr.f32.gmra.mxu0 %v2048
  %v2581 = vpop.f32.mrf.mxu0
  %v2582 = vadd.f32 %v2437, %v2581
  %v2583 = vpop.f32.mrf.mxu0
  %2584 = vmatprep.mubr.f32.mxu0 %v2246
  %2585 = vmatmul.mubr.f32.gmra.mxu0 %v2050
  %v2586 = vpop.f32.mrf.mxu0
  %v2587 = vadd.f32 %v2442, %v2586
  %v2588 = vpop.f32.mrf.mxu0
  %2589 = vmatprep.mubr.f32.mxu0 %v2248
  %2590 = vmatmul.mubr.f32.gmra.mxu0 %v2052
  %v2591 = vpop.f32.mrf.mxu0
  %v2592 = vadd.f32 %v2447, %v2591
  %v2593 = vpop.f32.mrf.mxu0
  %2594 = vmatprep.mubr.f32.mxu0 %v2250
  %2595 = vmatmul.mubr.f32.gmra.mxu0 %v2054
  %v2596 = vpop.f32.mrf.mxu0
  %v2597 = vadd.f32 %v2452, %v2596
  %v2598 = vpop.f32.mrf.mxu0
  %2599 = vmatprep.mubr.f32.mxu0 %v2252
  %2600 = vmatmul.mubr.f32.gmra.mxu0 %v2056
  %v2601 = vpop.f32.mrf.mxu0
  %v2602 = vadd.f32 %v2457, %v2601
  %v2603 = vpop.f32.mrf.mxu0
  %2604 = vmatprep.mubr.f32.mxu0 %v2254
  %2605 = vmatmul.mubr.f32.gmra.mxu0 %v2058
  %v2606 = vpop.f32.mrf.mxu0
  %v2607 = vadd.f32 %v2462, %v2606
  %v2608 = vpop.f32.mrf.mxu0
  %2609 = vmatprep.mubr.f32.mxu0 %v2256
  %2610 = vmatmul.mubr.f32.gmra.mxu0 %v2060
  %v2611 = vpop.f32.mrf.mxu0
  %v2612 = vadd.f32 %v2467, %v2611
  %v2613 = vpop.f32.mrf.mxu0
  %2614 = vmatprep.mubr.f32.mxu0 %v2258
  %2615 = vmatmul.mubr.f32.gmra.mxu0 %v2062
  %v2616 = vpop.f32.mrf.mxu0
  %v2617 = vadd.f32 %v2472, %v2616
  %v2618 = vpop.f32.mrf.mxu0
  %2619 = vmatprep.mubr.f32.mxu0 %v2260
  %2620 = vmatmul.mubr.f32.gmra.mxu0 %v2064
  %v2621 = vpop.f32.mrf.mxu0
  %v2622 = vadd.f32 %v2477, %v2621
  %v2623 = vpop.f32.mrf.mxu0
  %2624 = vmatprep.mubr.f32.mxu0 %v2262
  %2625 = vmatmul.mubr.f32.gmra.mxu0 %v2066
  %v2626 = vpop.f32.mrf.mxu0
  %v2627 = vadd.f32 %v2482, %v2626
  %v2628 = vpop.f32.mrf.mxu0
  %2629 = vmatprep.mubr.f32.mxu0 %v2264
  %2630 = vmatmul.mubr.f32.gmra.mxu0 %v2068
  %v2631 = vpop.f32.mrf.mxu0
  %v2632 = vadd.f32 %v2487, %v2631
  %v2633 = vpop.f32.mrf.mxu0
  %2634 = vdwg.mxu0
  %v2635 = vmul.f32 %v2557, %v2329
  %v2636 = vmul.f32 %v2562, %v2330
  %v2637 = vmul.f32 %v2567, %v2331
  %v2638 = vmul.f32 %v2572, %v2332
  %v2639 = vmul.f32 %v2577, %v2333
  %v2640 = vmul.f32 %v2582, %v2334
  %v2641 = vmul.f32 %v2587, %v2335
  %v2642 = vmul.f32 %v2592, %v2336
  %v2643 = vmul.f32 %v2597, %v2337
  %v2644 = vmul.f32 %v2602, %v2338
  %v2645 = vmul.f32 %v2607, %v2339
  %v2646 = vmul.f32 %v2612, %v2340
  %v2647 = vmul.f32 %v2617, %v2341
  %v2648 = vmul.f32 %v2622, %v2342
  %v2649 = vmul.f32 %v2627, %v2343
  %v2650 = vmul.f32 %v2632, %v2344
  %v2652 = vsel %vm39, %v2635, 0
  %v2655 = vsel %vm39, %v2636, 0
  %v2658 = vsel %vm39, %v2637, 0
  %v2661 = vsel %vm39, %v2638, 0
  %v2664 = vsel %vm39, %v2639, 0
  %v2667 = vsel %vm39, %v2640, 0
  %v2670 = vsel %vm39, %v2641, 0
  %v2673 = vsel %vm39, %v2642, 0
  %v2676 = vsel %vm39, %v2643, 0
  %v2679 = vsel %vm39, %v2644, 0
  %v2682 = vsel %vm39, %v2645, 0
  %v2685 = vsel %vm39, %v2646, 0
  %v2688 = vsel %vm39, %v2647, 0
  %v2691 = vsel %vm39, %v2648, 0
  %v2694 = vsel %vm39, %v2649, 0
  %v2697 = vsel %vm39, %v2650, 0
  %2699 = vmatprep.subr.mxu0 0.0
  %2700 = vmatpush1.msra.mxu0 0.0
  %2701 = vmatprep.subr.mxu0 0.0
  %2702 = vmatpush1.msra.mxu0 0.0
  %2703 = vmatprep.subr.mxu0 0.0
  %2704 = vmatpush1.msra.mxu0 0.0
  %2705 = vmatprep.subr.mxu0 0.0
  %2706 = vmatpush1.msra.mxu0 0.0
  %2707 = vmatprep.subr.mxu0 0.0
  %2708 = vmatpush1.msra.mxu0 0.0
  %2709 = vmatprep.subr.mxu0 0.0
  %2710 = vmatpush1.msra.mxu0 0.0
  %2711 = vmatprep.subr.mxu0 0.0
  %2712 = vmatpush1.msra.mxu0 0.0
  %2713 = vmatprep.subr.mxu0 0.0
  %2714 = vmatpush1.msra.mxu0 0.0
  %2715 = vmatprep.subr.mxu0 0.0
  %2716 = vmatpush1.msra.mxu0 0.0
  %2717 = vmatprep.subr.mxu0 0.0
  %2718 = vmatpush1.msra.mxu0 0.0
  %2719 = vmatprep.subr.mxu0 0.0
  %2720 = vmatpush1.msra.mxu0 0.0
  %2721 = vmatprep.subr.mxu0 0.0
  %2722 = vmatpush1.msra.mxu0 0.0
  %2723 = vmatprep.subr.mxu0 0.0
  %2724 = vmatpush1.msra.mxu0 %v376
  %2725 = vmatprep.subr.mxu0 0.0
  %2726 = vmatpush1.msra.mxu0 %v375
  %2727 = vmatprep.subr.mxu0 0.0
  %2728 = vmatpush1.msra.mxu0 %v374
  %2729 = vmatprep.subr.mxu0 0.0
  %2730 = vmatpush1.msra.mxu0 %v373
  %2731 = vmatprep.subr.mxu0 0.0
  %2732 = vmatpush2.msra.mxu0 0.0
  %2733 = vmatprep.subr.mxu0 0.0
  %2734 = vmatpush2.msra.mxu0 0.0
  %2735 = vmatprep.subr.mxu0 0.0
  %2736 = vmatpush2.msra.mxu0 0.0
  %2737 = vmatprep.subr.mxu0 0.0
  %2738 = vmatpush2.msra.mxu0 0.0
  %2739 = vmatprep.subr.mxu0 0.0
  %2740 = vmatpush2.msra.mxu0 0.0
  %2741 = vmatprep.subr.mxu0 0.0
  %2742 = vmatpush2.msra.mxu0 0.0
  %2743 = vmatprep.subr.mxu0 0.0
  %2744 = vmatpush2.msra.mxu0 0.0
  %2745 = vmatprep.subr.mxu0 0.0
  %2746 = vmatpush2.msra.mxu0 0.0
  %2747 = vmatprep.subr.mxu0 0.0
  %2748 = vmatpush2.msra.mxu0 0.0
  %2749 = vmatprep.subr.mxu0 0.0
  %2750 = vmatpush2.msra.mxu0 0.0
  %2751 = vmatprep.subr.mxu0 0.0
  %2752 = vmatpush2.msra.mxu0 0.0
  %2753 = vmatprep.subr.mxu0 0.0
  %2754 = vmatpush2.msra.mxu0 0.0
  %2755 = vmatprep.subr.mxu0 0.0
  %2756 = vmatpush2.msra.mxu0 0.0
  %2757 = vmatprep.subr.mxu0 0.0
  %2758 = vmatpush2.msra.mxu0 0.0
  %2759 = vmatprep.subr.mxu0 0.0
  %2760 = vmatpush2.msra.mxu0 0.0
  %2761 = vmatprep.subr.mxu0 0.0
  %2762 = vmatpush2.msra.mxu0 0.0
  %2763 = vmatprep.mubr.f32.mxu0 0.0
  %2764 = vmatmul.mubr.f32.gmra.mxu0 %v2652
  %v2765 = vpop.f32.mrf.mxu0
  %v2766 = vadd.f32 0.0, %v2765
  %v2767 = vpop.f32.mrf.mxu0
  %2768 = vmatprep.mubr.f32.mxu0 0.0
  %2769 = vmatmul.mubr.f32.gmra.mxu0 %v2655
  %v2770 = vpop.f32.mrf.mxu0
  %v2771 = vadd.f32 0.0, %v2770
  %v2772 = vpop.f32.mrf.mxu0
  %2773 = vmatprep.mubr.f32.mxu0 0.0
  %2774 = vmatmul.mubr.f32.gmra.mxu0 %v2658
  %v2775 = vpop.f32.mrf.mxu0
  %v2776 = vadd.f32 0.0, %v2775
  %v2777 = vpop.f32.mrf.mxu0
  %2778 = vmatprep.mubr.f32.mxu0 0.0
  %2779 = vmatmul.mubr.f32.gmra.mxu0 %v2661
  %v2780 = vpop.f32.mrf.mxu0
  %v2781 = vadd.f32 0.0, %v2780
  %v2782 = vpop.f32.mrf.mxu0
  %2783 = vmatprep.mubr.f32.mxu0 0.0
  %2784 = vmatmul.mubr.f32.gmra.mxu0 %v2664
  %v2785 = vpop.f32.mrf.mxu0
  %v2786 = vadd.f32 0.0, %v2785
  %v2787 = vpop.f32.mrf.mxu0
  %2788 = vmatprep.mubr.f32.mxu0 0.0
  %2789 = vmatmul.mubr.f32.gmra.mxu0 %v2667
  %v2790 = vpop.f32.mrf.mxu0
  %v2791 = vadd.f32 0.0, %v2790
  %v2792 = vpop.f32.mrf.mxu0
  %2793 = vmatprep.mubr.f32.mxu0 0.0
  %2794 = vmatmul.mubr.f32.gmra.mxu0 %v2670
  %v2795 = vpop.f32.mrf.mxu0
  %v2796 = vadd.f32 0.0, %v2795
  %v2797 = vpop.f32.mrf.mxu0
  %2798 = vmatprep.mubr.f32.mxu0 0.0
  %2799 = vmatmul.mubr.f32.gmra.mxu0 %v2673
  %v2800 = vpop.f32.mrf.mxu0
  %v2801 = vadd.f32 0.0, %v2800
  %v2802 = vpop.f32.mrf.mxu0
  %2803 = vmatprep.mubr.f32.mxu0 0.0
  %2804 = vmatmul.mubr.f32.gmra.mxu0 %v2676
  %v2805 = vpop.f32.mrf.mxu0
  %v2806 = vadd.f32 0.0, %v2805
  %v2807 = vpop.f32.mrf.mxu0
  %2808 = vmatprep.mubr.f32.mxu0 0.0
  %2809 = vmatmul.mubr.f32.gmra.mxu0 %v2679
  %v2810 = vpop.f32.mrf.mxu0
  %v2811 = vadd.f32 0.0, %v2810
  %v2812 = vpop.f32.mrf.mxu0
  %2813 = vmatprep.mubr.f32.mxu0 0.0
  %2814 = vmatmul.mubr.f32.gmra.mxu0 %v2682
  %v2815 = vpop.f32.mrf.mxu0
  %v2816 = vadd.f32 0.0, %v2815
  %v2817 = vpop.f32.mrf.mxu0
  %2818 = vmatprep.mubr.f32.mxu0 0.0
  %2819 = vmatmul.mubr.f32.gmra.mxu0 %v2685
  %v2820 = vpop.f32.mrf.mxu0
  %v2821 = vadd.f32 0.0, %v2820
  %v2822 = vpop.f32.mrf.mxu0
  %2823 = vmatprep.mubr.f32.mxu0 0.0
  %2824 = vmatmul.mubr.f32.gmra.mxu0 %v2688
  %v2825 = vpop.f32.mrf.mxu0
  %v2826 = vadd.f32 0.0, %v2825
  %v2827 = vpop.f32.mrf.mxu0
  %2828 = vmatprep.mubr.f32.mxu0 0.0
  %2829 = vmatmul.mubr.f32.gmra.mxu0 %v2691
  %v2830 = vpop.f32.mrf.mxu0
  %v2831 = vadd.f32 0.0, %v2830
  %v2832 = vpop.f32.mrf.mxu0
  %2833 = vmatprep.mubr.f32.mxu0 0.0
  %2834 = vmatmul.mubr.f32.gmra.mxu0 %v2694
  %v2835 = vpop.f32.mrf.mxu0
  %v2836 = vadd.f32 0.0, %v2835
  %v2837 = vpop.f32.mrf.mxu0
  %2838 = vmatprep.mubr.f32.mxu0 0.0
  %2839 = vmatmul.mubr.f32.gmra.mxu0 %v2697
  %v2840 = vpop.f32.mrf.mxu0
  %v2841 = vadd.f32 0.0, %v2840
  %v2842 = vpop.f32.mrf.mxu0
  %2843 = vdwg.mxu0
  %v2844 = vadd.f32 %v23, %v2766
  %v2845 = vadd.f32 %v24, %v2771
  %v2846 = vadd.f32 %v25, %v2776
  %v2847 = vadd.f32 %v26, %v2781
  %v2848 = vadd.f32 %v27, %v2786
  %v2849 = vadd.f32 %v28, %v2791
  %v2850 = vadd.f32 %v29, %v2796
  %v2851 = vadd.f32 %v30, %v2801
  %v2852 = vadd.f32 %v31, %v2806
  %v2853 = vadd.f32 %v32, %v2811
  %v2854 = vadd.f32 %v33, %v2816
  %v2855 = vadd.f32 %v34, %v2821
  %v2856 = vadd.f32 %v35, %v2826
  %v2857 = vadd.f32 %v36, %v2831
  %v2858 = vadd.f32 %v37, %v2836
  %v2859 = vadd.f32 %v38, %v2841
  %v2860 = vlaneseq
  %v2861 = vshrl.u32 %v2860, 7
  %v2862 = vsub.s32 0, %v2861
  %v2863 = vrot.slane %v381, %v2862
  %v2864 = vadd.f32 %v2844, %v2863
  %v2865 = vadd.f32 %v2845, %v2863
  %v2866 = vadd.f32 %v2846, %v2863
  %v2867 = vadd.f32 %v2847, %v2863
  %v2868 = vadd.f32 %v2848, %v2863
  %v2869 = vadd.f32 %v2849, %v2863
  %v2870 = vadd.f32 %v2850, %v2863
  %v2871 = vadd.f32 %v2851, %v2863
  %v2872 = vadd.f32 %v2852, %v2863
  %v2873 = vadd.f32 %v2853, %v2863
  %v2874 = vadd.f32 %v2854, %v2863
  %v2875 = vadd.f32 %v2855, %v2863
  %v2876 = vadd.f32 %v2856, %v2863
  %v2877 = vadd.f32 %v2857, %v2863
  %v2878 = vadd.f32 %v2858, %v2863
  %v2879 = vadd.f32 %v2859, %v2863
  %v2880 = vsel %vm39, %v2864, 0.0
  %2881 = vadd.xlane.f32.xlu0 %v2880
  %v2882 = vpop.xlane.xlu0 %2881
  %v2883 = vsel %vm39, %v2865, 0.0
  %2884 = vadd.xlane.f32.xlu0 %v2883
  %v2885 = vpop.xlane.xlu0 %2884
  %v2886 = vsel %vm39, %v2866, 0.0
  %2887 = vadd.xlane.f32.xlu0 %v2886
  %v2888 = vpop.xlane.xlu0 %2887
  %v2889 = vsel %vm39, %v2867, 0.0
  %2890 = vadd.xlane.f32.xlu0 %v2889
  %v2891 = vpop.xlane.xlu0 %2890
  %v2892 = vsel %vm39, %v2868, 0.0
  %2893 = vadd.xlane.f32.xlu0 %v2892
  %v2894 = vpop.xlane.xlu0 %2893
  %v2895 = vsel %vm39, %v2869, 0.0
  %2896 = vadd.xlane.f32.xlu0 %v2895
  %v2897 = vpop.xlane.xlu0 %2896
  %v2898 = vsel %vm39, %v2870, 0.0
  %2899 = vadd.xlane.f32.xlu0 %v2898
  %v2900 = vpop.xlane.xlu0 %2899
  %v2901 = vsel %vm39, %v2871, 0.0
  %2902 = vadd.xlane.f32.xlu0 %v2901
  %v2903 = vpop.xlane.xlu0 %2902
  %v2904 = vsel %vm39, %v2872, 0.0
  %2905 = vadd.xlane.f32.xlu0 %v2904
  %v2906 = vpop.xlane.xlu0 %2905
  %v2907 = vsel %vm39, %v2873, 0.0
  %2908 = vadd.xlane.f32.xlu0 %v2907
  %v2909 = vpop.xlane.xlu0 %2908
  %v2910 = vsel %vm39, %v2874, 0.0
  %2911 = vadd.xlane.f32.xlu0 %v2910
  %v2912 = vpop.xlane.xlu0 %2911
  %v2913 = vsel %vm39, %v2875, 0.0
  %2914 = vadd.xlane.f32.xlu0 %v2913
  %v2915 = vpop.xlane.xlu0 %2914
  %v2916 = vsel %vm39, %v2876, 0.0
  %2917 = vadd.xlane.f32.xlu0 %v2916
  %v2918 = vpop.xlane.xlu0 %2917
  %v2919 = vsel %vm39, %v2877, 0.0
  %2920 = vadd.xlane.f32.xlu0 %v2919
  %v2921 = vpop.xlane.xlu0 %2920
  %v2922 = vsel %vm39, %v2878, 0.0
  %2923 = vadd.xlane.f32.xlu0 %v2922
  %v2924 = vpop.xlane.xlu0 %2923
  %v2925 = vsel %vm39, %v2879, 0.0
  %2926 = vadd.xlane.f32.xlu0 %v2925
  %v2927 = vpop.xlane.xlu0 %2926
  %v2928 = vmul.f32 %v2882, %v88
  %v2929 = vmul.f32 %v2885, %v88
  %v2930 = vmul.f32 %v2888, %v88
  %v2931 = vmul.f32 %v2891, %v88
  %v2932 = vmul.f32 %v2894, %v88
  %v2933 = vmul.f32 %v2897, %v88
  %v2934 = vmul.f32 %v2900, %v88
  %v2935 = vmul.f32 %v2903, %v88
  %v2936 = vmul.f32 %v2906, %v88
  %v2937 = vmul.f32 %v2909, %v88
  %v2938 = vmul.f32 %v2912, %v88
  %v2939 = vmul.f32 %v2915, %v88
  %v2940 = vmul.f32 %v2918, %v88
  %v2941 = vmul.f32 %v2921, %v88
  %v2942 = vmul.f32 %v2924, %v88
  %v2943 = vmul.f32 %v2927, %v88
  %v2944 = vsub.f32 %v2864, %v2928
  %v2945 = vsub.f32 %v2865, %v2929
  %v2946 = vsub.f32 %v2866, %v2930
  %v2947 = vsub.f32 %v2867, %v2931
  %v2948 = vsub.f32 %v2868, %v2932
  %v2949 = vsub.f32 %v2869, %v2933
  %v2950 = vsub.f32 %v2870, %v2934
  %v2951 = vsub.f32 %v2871, %v2935
  %v2952 = vsub.f32 %v2872, %v2936
  %v2953 = vsub.f32 %v2873, %v2937
  %v2954 = vsub.f32 %v2874, %v2938
  %v2955 = vsub.f32 %v2875, %v2939
  %v2956 = vsub.f32 %v2876, %v2940
  %v2957 = vsub.f32 %v2877, %v2941
  %v2958 = vsub.f32 %v2878, %v2942
  %v2959 = vsub.f32 %v2879, %v2943
  %v2960 = vmul.f32 %v2944, %v2944
  %v2961 = vmul.f32 %v2945, %v2945
  %v2962 = vmul.f32 %v2946, %v2946
  %v2963 = vmul.f32 %v2947, %v2947
  %v2964 = vmul.f32 %v2948, %v2948
  %v2965 = vmul.f32 %v2949, %v2949
  %v2966 = vmul.f32 %v2950, %v2950
  %v2967 = vmul.f32 %v2951, %v2951
  %v2968 = vmul.f32 %v2952, %v2952
  %v2969 = vmul.f32 %v2953, %v2953
  %v2970 = vmul.f32 %v2954, %v2954
  %v2971 = vmul.f32 %v2955, %v2955
  %v2972 = vmul.f32 %v2956, %v2956
  %v2973 = vmul.f32 %v2957, %v2957
  %v2974 = vmul.f32 %v2958, %v2958
  %v2975 = vmul.f32 %v2959, %v2959
  %v2976 = vsel %vm39, %v2960, 0.0
  %2977 = vadd.xlane.f32.xlu0 %v2976
  %v2978 = vpop.xlane.xlu0 %2977
  %v2979 = vsel %vm39, %v2961, 0.0
  %2980 = vadd.xlane.f32.xlu0 %v2979
  %v2981 = vpop.xlane.xlu0 %2980
  %v2982 = vsel %vm39, %v2962, 0.0
  %2983 = vadd.xlane.f32.xlu0 %v2982
  %v2984 = vpop.xlane.xlu0 %2983
  %v2985 = vsel %vm39, %v2963, 0.0
  %2986 = vadd.xlane.f32.xlu0 %v2985
  %v2987 = vpop.xlane.xlu0 %2986
  %v2988 = vsel %vm39, %v2964, 0.0
  %2989 = vadd.xlane.f32.xlu0 %v2988
  %v2990 = vpop.xlane.xlu0 %2989
  %v2991 = vsel %vm39, %v2965, 0.0
  %2992 = vadd.xlane.f32.xlu0 %v2991
  %v2993 = vpop.xlane.xlu0 %2992
  %v2994 = vsel %vm39, %v2966, 0.0
  %2995 = vadd.xlane.f32.xlu0 %v2994
  %v2996 = vpop.xlane.xlu0 %2995
  %v2997 = vsel %vm39, %v2967, 0.0
  %2998 = vadd.xlane.f32.xlu0 %v2997
  %v2999 = vpop.xlane.xlu0 %2998
  %v3000 = vsel %vm39, %v2968, 0.0
  %3001 = vadd.xlane.f32.xlu0 %v3000
  %v3002 = vpop.xlane.xlu0 %3001
  %v3003 = vsel %vm39, %v2969, 0.0
  %3004 = vadd.xlane.f32.xlu0 %v3003
  %v3005 = vpop.xlane.xlu0 %3004
  %v3006 = vsel %vm39, %v2970, 0.0
  %3007 = vadd.xlane.f32.xlu0 %v3006
  %v3008 = vpop.xlane.xlu0 %3007
  %v3009 = vsel %vm39, %v2971, 0.0
  %3010 = vadd.xlane.f32.xlu0 %v3009
  %v3011 = vpop.xlane.xlu0 %3010
  %v3012 = vsel %vm39, %v2972, 0.0
  %3013 = vadd.xlane.f32.xlu0 %v3012
  %v3014 = vpop.xlane.xlu0 %3013
  %v3015 = vsel %vm39, %v2973, 0.0
  %3016 = vadd.xlane.f32.xlu0 %v3015
  %v3017 = vpop.xlane.xlu0 %3016
  %v3018 = vsel %vm39, %v2974, 0.0
  %3019 = vadd.xlane.f32.xlu0 %v3018
  %v3020 = vpop.xlane.xlu0 %3019
  %v3021 = vsel %vm39, %v2975, 0.0
  %3022 = vadd.xlane.f32.xlu0 %v3021
  %v3023 = vpop.xlane.xlu0 %3022
  %v3024 = vmul.f32 %v2978, %v88
  %v3025 = vmul.f32 %v2981, %v88
  %v3026 = vmul.f32 %v2984, %v88
  %v3027 = vmul.f32 %v2987, %v88
  %v3028 = vmul.f32 %v2990, %v88
  %v3029 = vmul.f32 %v2993, %v88
  %v3030 = vmul.f32 %v2996, %v88
  %v3031 = vmul.f32 %v2999, %v88
  %v3032 = vmul.f32 %v3002, %v88
  %v3033 = vmul.f32 %v3005, %v88
  %v3034 = vmul.f32 %v3008, %v88
  %v3035 = vmul.f32 %v3011, %v88
  %v3036 = vmul.f32 %v3014, %v88
  %v3037 = vmul.f32 %v3017, %v88
  %v3038 = vmul.f32 %v3020, %v88
  %v3039 = vmul.f32 %v3023, %v88
  %v3040 = vadd.f32 %v3024, 1e-05
  %v3041 = vadd.f32 %v3025, 1e-05
  %v3042 = vadd.f32 %v3026, 1e-05
  %v3043 = vadd.f32 %v3027, 1e-05
  %v3044 = vadd.f32 %v3028, 1e-05
  %v3045 = vadd.f32 %v3029, 1e-05
  %v3046 = vadd.f32 %v3030, 1e-05
  %v3047 = vadd.f32 %v3031, 1e-05
  %v3048 = vadd.f32 %v3032, 1e-05
  %v3049 = vadd.f32 %v3033, 1e-05
  %v3050 = vadd.f32 %v3034, 1e-05
  %v3051 = vadd.f32 %v3035, 1e-05
  %v3052 = vadd.f32 %v3036, 1e-05
  %v3053 = vadd.f32 %v3037, 1e-05
  %v3054 = vadd.f32 %v3038, 1e-05
  %v3055 = vadd.f32 %v3039, 1e-05
  %v3056 = vrsqrt.pop %v3040
  %v3057 = vmul.f32 %v3040, %v3056
  %vm3058 = vcmp.eq.f32.partialorder %v3040, inf
  %v3059 = vsel %vm3058, %v3040, %v3057
  %vm3060 = vcmp.eq.f32.partialorder %v3040, 0.0
  %v3061 = vand.u32 %v3040, 2147483648
  %v3062 = vsel %vm3060, %v3061, %v3059
  %v3063 = vrsqrt.pop %v3041
  %v3064 = vmul.f32 %v3041, %v3063
  %vm3065 = vcmp.eq.f32.partialorder %v3041, inf
  %v3066 = vsel %vm3065, %v3041, %v3064
  %vm3067 = vcmp.eq.f32.partialorder %v3041, 0.0
  %v3068 = vand.u32 %v3041, 2147483648
  %v3069 = vsel %vm3067, %v3068, %v3066
  %v3070 = vrsqrt.pop %v3042
  %v3071 = vmul.f32 %v3042, %v3070
  %vm3072 = vcmp.eq.f32.partialorder %v3042, inf
  %v3073 = vsel %vm3072, %v3042, %v3071
  %vm3074 = vcmp.eq.f32.partialorder %v3042, 0.0
  %v3075 = vand.u32 %v3042, 2147483648
  %v3076 = vsel %vm3074, %v3075, %v3073
  %v3077 = vrsqrt.pop %v3043
  %v3078 = vmul.f32 %v3043, %v3077
  %vm3079 = vcmp.eq.f32.partialorder %v3043, inf
  %v3080 = vsel %vm3079, %v3043, %v3078
  %vm3081 = vcmp.eq.f32.partialorder %v3043, 0.0
  %v3082 = vand.u32 %v3043, 2147483648
  %v3083 = vsel %vm3081, %v3082, %v3080
  %v3084 = vrsqrt.pop %v3044
  %v3085 = vmul.f32 %v3044, %v3084
  %vm3086 = vcmp.eq.f32.partialorder %v3044, inf
  %v3087 = vsel %vm3086, %v3044, %v3085
  %vm3088 = vcmp.eq.f32.partialorder %v3044, 0.0
  %v3089 = vand.u32 %v3044, 2147483648
  %v3090 = vsel %vm3088, %v3089, %v3087
  %v3091 = vrsqrt.pop %v3045
  %v3092 = vmul.f32 %v3045, %v3091
  %vm3093 = vcmp.eq.f32.partialorder %v3045, inf
  %v3094 = vsel %vm3093, %v3045, %v3092
  %vm3095 = vcmp.eq.f32.partialorder %v3045, 0.0
  %v3096 = vand.u32 %v3045, 2147483648
  %v3097 = vsel %vm3095, %v3096, %v3094
  %v3098 = vrsqrt.pop %v3046
  %v3099 = vmul.f32 %v3046, %v3098
  %vm3100 = vcmp.eq.f32.partialorder %v3046, inf
  %v3101 = vsel %vm3100, %v3046, %v3099
  %vm3102 = vcmp.eq.f32.partialorder %v3046, 0.0
  %v3103 = vand.u32 %v3046, 2147483648
  %v3104 = vsel %vm3102, %v3103, %v3101
  %v3105 = vrsqrt.pop %v3047
  %v3106 = vmul.f32 %v3047, %v3105
  %vm3107 = vcmp.eq.f32.partialorder %v3047, inf
  %v3108 = vsel %vm3107, %v3047, %v3106
  %vm3109 = vcmp.eq.f32.partialorder %v3047, 0.0
  %v3110 = vand.u32 %v3047, 2147483648
  %v3111 = vsel %vm3109, %v3110, %v3108
  %v3112 = vrsqrt.pop %v3048
  %v3113 = vmul.f32 %v3048, %v3112
  %vm3114 = vcmp.eq.f32.partialorder %v3048, inf
  %v3115 = vsel %vm3114, %v3048, %v3113
  %vm3116 = vcmp.eq.f32.partialorder %v3048, 0.0
  %v3117 = vand.u32 %v3048, 2147483648
  %v3118 = vsel %vm3116, %v3117, %v3115
  %v3119 = vrsqrt.pop %v3049
  %v3120 = vmul.f32 %v3049, %v3119
  %vm3121 = vcmp.eq.f32.partialorder %v3049, inf
  %v3122 = vsel %vm3121, %v3049, %v3120
  %vm3123 = vcmp.eq.f32.partialorder %v3049, 0.0
  %v3124 = vand.u32 %v3049, 2147483648
  %v3125 = vsel %vm3123, %v3124, %v3122
  %v3126 = vrsqrt.pop %v3050
  %v3127 = vmul.f32 %v3050, %v3126
  %vm3128 = vcmp.eq.f32.partialorder %v3050, inf
  %v3129 = vsel %vm3128, %v3050, %v3127
  %vm3130 = vcmp.eq.f32.partialorder %v3050, 0.0
  %v3131 = vand.u32 %v3050, 2147483648
  %v3132 = vsel %vm3130, %v3131, %v3129
  %v3133 = vrsqrt.pop %v3051
  %v3134 = vmul.f32 %v3051, %v3133
  %vm3135 = vcmp.eq.f32.partialorder %v3051, inf
  %v3136 = vsel %vm3135, %v3051, %v3134
  %vm3137 = vcmp.eq.f32.partialorder %v3051, 0.0
  %v3138 = vand.u32 %v3051, 2147483648
  %v3139 = vsel %vm3137, %v3138, %v3136
  %v3140 = vrsqrt.pop %v3052
  %v3141 = vmul.f32 %v3052, %v3140
  %vm3142 = vcmp.eq.f32.partialorder %v3052, inf
  %v3143 = vsel %vm3142, %v3052, %v3141
  %vm3144 = vcmp.eq.f32.partialorder %v3052, 0.0
  %v3145 = vand.u32 %v3052, 2147483648
  %v3146 = vsel %vm3144, %v3145, %v3143
  %v3147 = vrsqrt.pop %v3053
  %v3148 = vmul.f32 %v3053, %v3147
  %vm3149 = vcmp.eq.f32.partialorder %v3053, inf
  %v3150 = vsel %vm3149, %v3053, %v3148
  %vm3151 = vcmp.eq.f32.partialorder %v3053, 0.0
  %v3152 = vand.u32 %v3053, 2147483648
  %v3153 = vsel %vm3151, %v3152, %v3150
  %v3154 = vrsqrt.pop %v3054
  %v3155 = vmul.f32 %v3054, %v3154
  %vm3156 = vcmp.eq.f32.partialorder %v3054, inf
  %v3157 = vsel %vm3156, %v3054, %v3155
  %vm3158 = vcmp.eq.f32.partialorder %v3054, 0.0
  %v3159 = vand.u32 %v3054, 2147483648
  %v3160 = vsel %vm3158, %v3159, %v3157
  %v3161 = vrsqrt.pop %v3055
  %v3162 = vmul.f32 %v3055, %v3161
  %vm3163 = vcmp.eq.f32.partialorder %v3055, inf
  %v3164 = vsel %vm3163, %v3055, %v3162
  %vm3165 = vcmp.eq.f32.partialorder %v3055, 0.0
  %v3166 = vand.u32 %v3055, 2147483648
  %v3167 = vsel %vm3165, %v3166, %v3164
  %v3168 = vrcp.pop %v3062
  %v3169 = vmul.f32 %v2944, %v3168
  %v3170 = vrcp.pop %v3069
  %v3171 = vmul.f32 %v2945, %v3170
  %v3172 = vrcp.pop %v3076
  %v3173 = vmul.f32 %v2946, %v3172
  %v3174 = vrcp.pop %v3083
  %v3175 = vmul.f32 %v2947, %v3174
  %v3176 = vrcp.pop %v3090
  %v3177 = vmul.f32 %v2948, %v3176
  %v3178 = vrcp.pop %v3097
  %v3179 = vmul.f32 %v2949, %v3178
  %v3180 = vrcp.pop %v3104
  %v3181 = vmul.f32 %v2950, %v3180
  %v3182 = vrcp.pop %v3111
  %v3183 = vmul.f32 %v2951, %v3182
  %v3184 = vrcp.pop %v3118
  %v3185 = vmul.f32 %v2952, %v3184
  %v3186 = vrcp.pop %v3125
  %v3187 = vmul.f32 %v2953, %v3186
  %v3188 = vrcp.pop %v3132
  %v3189 = vmul.f32 %v2954, %v3188
  %v3190 = vrcp.pop %v3139
  %v3191 = vmul.f32 %v2955, %v3190
  %v3192 = vrcp.pop %v3146
  %v3193 = vmul.f32 %v2956, %v3192
  %v3194 = vrcp.pop %v3153
  %v3195 = vmul.f32 %v2957, %v3194
  %v3196 = vrcp.pop %v3160
  %v3197 = vmul.f32 %v2958, %v3196
  %v3198 = vrcp.pop %v3167
  %v3199 = vmul.f32 %v2959, %v3198
  %v3200 = vld [vmem:[%s2] sm:$0xff]
  %v3201 = vld [vmem:[%s2 + $0x8] sm:$0xff]
  %v3202 = vld [vmem:[%s2 + $0x10] sm:$0xff]
  %v3203 = vld [vmem:[%s2 + $0x18] sm:$0xff]
  %v3204 = vlaneseq
  %v3205 = vshrl.u32 %v3204, 7
  %v3206 = vsub.s32 0, %v3205
  %v3207 = vrot.slane %v377, %v3206
  %v3209 = vsel %vm39, %v3169, 0
  %v3212 = vsel %vm39, %v3171, 0
  %v3215 = vsel %vm39, %v3173, 0
  %v3218 = vsel %vm39, %v3175, 0
  %v3221 = vsel %vm39, %v3177, 0
  %v3224 = vsel %vm39, %v3179, 0
  %v3227 = vsel %vm39, %v3181, 0
  %v3230 = vsel %vm39, %v3183, 0
  %v3233 = vsel %vm39, %v3185, 0
  %v3236 = vsel %vm39, %v3187, 0
  %v3239 = vsel %vm39, %v3189, 0
  %v3242 = vsel %vm39, %v3191, 0
  %v3245 = vsel %vm39, %v3193, 0
  %v3248 = vsel %vm39, %v3195, 0
  %v3251 = vsel %vm39, %v3197, 0
  %v3254 = vsel %vm39, %v3199, 0
  %3256 = vmatprep.subr.mxu0 0.0
  %3257 = vmatpush1.msra.mxu0 0.0
  %3258 = vmatprep.subr.mxu0 0.0
  %3259 = vmatpush1.msra.mxu0 0.0
  %3260 = vmatprep.subr.mxu0 0.0
  %3261 = vmatpush1.msra.mxu0 0.0
  %3262 = vmatprep.subr.mxu0 0.0
  %3263 = vmatpush1.msra.mxu0 0.0
  %3264 = vmatprep.subr.mxu0 0.0
  %3265 = vmatpush1.msra.mxu0 0.0
  %3266 = vmatprep.subr.mxu0 0.0
  %3267 = vmatpush1.msra.mxu0 0.0
  %3268 = vmatprep.subr.mxu0 0.0
  %3269 = vmatpush1.msra.mxu0 0.0
  %3270 = vmatprep.subr.mxu0 0.0
  %3271 = vmatpush1.msra.mxu0 0.0
  %3272 = vmatprep.subr.mxu0 0.0
  %3273 = vmatpush1.msra.mxu0 0.0
  %3274 = vmatprep.subr.mxu0 0.0
  %3275 = vmatpush1.msra.mxu0 0.0
  %3276 = vmatprep.subr.mxu0 0.0
  %3277 = vmatpush1.msra.mxu0 0.0
  %3278 = vmatprep.subr.mxu0 0.0
  %3279 = vmatpush1.msra.mxu0 0.0
  %3280 = vmatprep.subr.mxu0 0.0
  %3281 = vmatpush1.msra.mxu0 %v3203
  %3282 = vmatprep.subr.mxu0 0.0
  %3283 = vmatpush1.msra.mxu0 %v3202
  %3284 = vmatprep.subr.mxu0 0.0
  %3285 = vmatpush1.msra.mxu0 %v3201
  %3286 = vmatprep.subr.mxu0 0.0
  %3287 = vmatpush1.msra.mxu0 %v3200
  %3288 = vmatprep.subr.mxu0 0.0
  %3289 = vmatpush2.msra.mxu0 0.0
  %3290 = vmatprep.subr.mxu0 0.0
  %3291 = vmatpush2.msra.mxu0 0.0
  %3292 = vmatprep.subr.mxu0 0.0
  %3293 = vmatpush2.msra.mxu0 0.0
  %3294 = vmatprep.subr.mxu0 0.0
  %3295 = vmatpush2.msra.mxu0 0.0
  %3296 = vmatprep.subr.mxu0 0.0
  %3297 = vmatpush2.msra.mxu0 0.0
  %3298 = vmatprep.subr.mxu0 0.0
  %3299 = vmatpush2.msra.mxu0 0.0
  %3300 = vmatprep.subr.mxu0 0.0
  %3301 = vmatpush2.msra.mxu0 0.0
  %3302 = vmatprep.subr.mxu0 0.0
  %3303 = vmatpush2.msra.mxu0 0.0
  %3304 = vmatprep.subr.mxu0 0.0
  %3305 = vmatpush2.msra.mxu0 0.0
  %3306 = vmatprep.subr.mxu0 0.0
  %3307 = vmatpush2.msra.mxu0 0.0
  %3308 = vmatprep.subr.mxu0 0.0
  %3309 = vmatpush2.msra.mxu0 0.0
  %3310 = vmatprep.subr.mxu0 0.0
  %3311 = vmatpush2.msra.mxu0 0.0
  %3312 = vmatprep.subr.mxu0 0.0
  %3313 = vmatpush2.msra.mxu0 0.0
  %3314 = vmatprep.subr.mxu0 0.0
  %3315 = vmatpush2.msra.mxu0 0.0
  %3316 = vmatprep.subr.mxu0 0.0
  %3317 = vmatpush2.msra.mxu0 0.0
  %3318 = vmatprep.subr.mxu0 0.0
  %3319 = vmatpush2.msra.mxu0 0.0
  %3320 = vmatprep.mubr.f32.mxu0 0.0
  %3321 = vmatmul.mubr.f32.gmra.mxu0 %v3209
  %v3322 = vpop.f32.mrf.mxu0
  %v3323 = vadd.f32 %v3207, %v3322
  %v3324 = vpop.f32.mrf.mxu0
  %3325 = vmatprep.mubr.f32.mxu0 0.0
  %3326 = vmatmul.mubr.f32.gmra.mxu0 %v3212
  %v3327 = vpop.f32.mrf.mxu0
  %v3328 = vadd.f32 %v3207, %v3327
  %v3329 = vpop.f32.mrf.mxu0
  %3330 = vmatprep.mubr.f32.mxu0 0.0
  %3331 = vmatmul.mubr.f32.gmra.mxu0 %v3215
  %v3332 = vpop.f32.mrf.mxu0
  %v3333 = vadd.f32 %v3207, %v3332
  %v3334 = vpop.f32.mrf.mxu0
  %3335 = vmatprep.mubr.f32.mxu0 0.0
  %3336 = vmatmul.mubr.f32.gmra.mxu0 %v3218
  %v3337 = vpop.f32.mrf.mxu0
  %v3338 = vadd.f32 %v3207, %v3337
  %v3339 = vpop.f32.mrf.mxu0
  %3340 = vmatprep.mubr.f32.mxu0 0.0
  %3341 = vmatmul.mubr.f32.gmra.mxu0 %v3221
  %v3342 = vpop.f32.mrf.mxu0
  %v3343 = vadd.f32 %v3207, %v3342
  %v3344 = vpop.f32.mrf.mxu0
  %3345 = vmatprep.mubr.f32.mxu0 0.0
  %3346 = vmatmul.mubr.f32.gmra.mxu0 %v3224
  %v3347 = vpop.f32.mrf.mxu0
  %v3348 = vadd.f32 %v3207, %v3347
  %v3349 = vpop.f32.mrf.mxu0
  %3350 = vmatprep.mubr.f32.mxu0 0.0
  %3351 = vmatmul.mubr.f32.gmra.mxu0 %v3227
  %v3352 = vpop.f32.mrf.mxu0
  %v3353 = vadd.f32 %v3207, %v3352
  %v3354 = vpop.f32.mrf.mxu0
  %3355 = vmatprep.mubr.f32.mxu0 0.0
  %3356 = vmatmul.mubr.f32.gmra.mxu0 %v3230
  %v3357 = vpop.f32.mrf.mxu0
  %v3358 = vadd.f32 %v3207, %v3357
  %v3359 = vpop.f32.mrf.mxu0
  %3360 = vmatprep.mubr.f32.mxu0 0.0
  %3361 = vmatmul.mubr.f32.gmra.mxu0 %v3233
  %v3362 = vpop.f32.mrf.mxu0
  %v3363 = vadd.f32 %v3207, %v3362
  %v3364 = vpop.f32.mrf.mxu0
  %3365 = vmatprep.mubr.f32.mxu0 0.0
  %3366 = vmatmul.mubr.f32.gmra.mxu0 %v3236
  %v3367 = vpop.f32.mrf.mxu0
  %v3368 = vadd.f32 %v3207, %v3367
  %v3369 = vpop.f32.mrf.mxu0
  %3370 = vmatprep.mubr.f32.mxu0 0.0
  %3371 = vmatmul.mubr.f32.gmra.mxu0 %v3239
  %v3372 = vpop.f32.mrf.mxu0
  %v3373 = vadd.f32 %v3207, %v3372
  %v3374 = vpop.f32.mrf.mxu0
  %3375 = vmatprep.mubr.f32.mxu0 0.0
  %3376 = vmatmul.mubr.f32.gmra.mxu0 %v3242
  %v3377 = vpop.f32.mrf.mxu0
  %v3378 = vadd.f32 %v3207, %v3377
  %v3379 = vpop.f32.mrf.mxu0
  %3380 = vmatprep.mubr.f32.mxu0 0.0
  %3381 = vmatmul.mubr.f32.gmra.mxu0 %v3245
  %v3382 = vpop.f32.mrf.mxu0
  %v3383 = vadd.f32 %v3207, %v3382
  %v3384 = vpop.f32.mrf.mxu0
  %3385 = vmatprep.mubr.f32.mxu0 0.0
  %3386 = vmatmul.mubr.f32.gmra.mxu0 %v3248
  %v3387 = vpop.f32.mrf.mxu0
  %v3388 = vadd.f32 %v3207, %v3387
  %v3389 = vpop.f32.mrf.mxu0
  %3390 = vmatprep.mubr.f32.mxu0 0.0
  %3391 = vmatmul.mubr.f32.gmra.mxu0 %v3251
  %v3392 = vpop.f32.mrf.mxu0
  %v3393 = vadd.f32 %v3207, %v3392
  %v3394 = vpop.f32.mrf.mxu0
  %3395 = vmatprep.mubr.f32.mxu0 0.0
  %3396 = vmatmul.mubr.f32.gmra.mxu0 %v3254
  %v3397 = vpop.f32.mrf.mxu0
  %v3398 = vadd.f32 %v3207, %v3397
  %v3399 = vpop.f32.mrf.mxu0
  %3400 = vdwg.mxu0
  %v3401 = vmul.f32 %v3323, 0.5
  %v3402 = vmul.f32 %v3328, 0.5
  %v3403 = vmul.f32 %v3333, 0.5
  %v3404 = vmul.f32 %v3338, 0.5
  %v3405 = vmul.f32 %v3343, 0.5
  %v3406 = vmul.f32 %v3348, 0.5
  %v3407 = vmul.f32 %v3353, 0.5
  %v3408 = vmul.f32 %v3358, 0.5
  %v3409 = vmul.f32 %v3363, 0.5
  %v3410 = vmul.f32 %v3368, 0.5
  %v3411 = vmul.f32 %v3373, 0.5
  %v3412 = vmul.f32 %v3378, 0.5
  %v3413 = vmul.f32 %v3383, 0.5
  %v3414 = vmul.f32 %v3388, 0.5
  %v3415 = vmul.f32 %v3393, 0.5
  %v3416 = vmul.f32 %v3398, 0.5
  %v3417 = vrcp.pop 1.4142135
  %v3418 = vmul.f32 %v3323, %v3417
  %v3419 = vmul.f32 %v3328, %v3417
  %v3420 = vmul.f32 %v3333, %v3417
  %v3421 = vmul.f32 %v3338, %v3417
  %v3422 = vmul.f32 %v3343, %v3417
  %v3423 = vmul.f32 %v3348, %v3417
  %v3424 = vmul.f32 %v3353, %v3417
  %v3425 = vmul.f32 %v3358, %v3417
  %v3426 = vmul.f32 %v3363, %v3417
  %v3427 = vmul.f32 %v3368, %v3417
  %v3428 = vmul.f32 %v3373, %v3417
  %v3429 = vmul.f32 %v3378, %v3417
  %v3430 = vmul.f32 %v3383, %v3417
  %v3431 = vmul.f32 %v3388, %v3417
  %v3432 = vmul.f32 %v3393, %v3417
  %v3433 = vmul.f32 %v3398, %v3417
  %v3434 = verf.f32.pop %v3418
  %v3435 = verf.f32.pop %v3419
  %v3436 = verf.f32.pop %v3420
  %v3437 = verf.f32.pop %v3421
  %v3438 = verf.f32.pop %v3422
  %v3439 = verf.f32.pop %v3423
  %v3440 = verf.f32.pop %v3424
  %v3441 = verf.f32.pop %v3425
  %v3442 = verf.f32.pop %v3426
  %v3443 = verf.f32.pop %v3427
  %v3444 = verf.f32.pop %v3428
  %v3445 = verf.f32.pop %v3429
  %v3446 = verf.f32.pop %v3430
  %v3447 = verf.f32.pop %v3431
  %v3448 = verf.f32.pop %v3432
  %v3449 = verf.f32.pop %v3433
  %v3450 = vadd.f32 %v3434, 1.0
  %v3451 = vadd.f32 %v3435, 1.0
  %v3452 = vadd.f32 %v3436, 1.0
  %v3453 = vadd.f32 %v3437, 1.0
  %v3454 = vadd.f32 %v3438, 1.0
  %v3455 = vadd.f32 %v3439, 1.0
  %v3456 = vadd.f32 %v3440, 1.0
  %v3457 = vadd.f32 %v3441, 1.0
  %v3458 = vadd.f32 %v3442, 1.0
  %v3459 = vadd.f32 %v3443, 1.0
  %v3460 = vadd.f32 %v3444, 1.0
  %v3461 = vadd.f32 %v3445, 1.0
  %v3462 = vadd.f32 %v3446, 1.0
  %v3463 = vadd.f32 %v3447, 1.0
  %v3464 = vadd.f32 %v3448, 1.0
  %v3465 = vadd.f32 %v3449, 1.0
  %v3466 = vmul.f32 %v3401, %v3450
  %v3467 = vmul.f32 %v3402, %v3451
  %v3468 = vmul.f32 %v3403, %v3452
  %v3469 = vmul.f32 %v3404, %v3453
  %v3470 = vmul.f32 %v3405, %v3454
  %v3471 = vmul.f32 %v3406, %v3455
  %v3472 = vmul.f32 %v3407, %v3456
  %v3473 = vmul.f32 %v3408, %v3457
  %v3474 = vmul.f32 %v3409, %v3458
  %v3475 = vmul.f32 %v3410, %v3459
  %v3476 = vmul.f32 %v3411, %v3460
  %v3477 = vmul.f32 %v3412, %v3461
  %v3478 = vmul.f32 %v3413, %v3462
  %v3479 = vmul.f32 %v3414, %v3463
  %v3480 = vmul.f32 %v3415, %v3464
  %v3481 = vmul.f32 %v3416, %v3465
  %v3482 = vld [vmem:[%s3] sm:$0xff]
  %v3483 = vld [vmem:[%s3 + $0x8] sm:$0xff]
  %v3484 = vld [vmem:[%s3 + $0x10] sm:$0xff]
  %v3485 = vld [vmem:[%s3 + $0x18] sm:$0xff]
  %v3486 = vld [vmem:[%s3 + $0x20] sm:$0xff]
  %v3487 = vld [vmem:[%s3 + $0x28] sm:$0xff]
  %v3488 = vld [vmem:[%s3 + $0x30] sm:$0xff]
  %v3489 = vld [vmem:[%s3 + $0x38] sm:$0xff]
  %v3490 = vld [vmem:[%s3 + $0x40] sm:$0xff]
  %v3491 = vld [vmem:[%s3 + $0x48] sm:$0xff]
  %v3492 = vld [vmem:[%s3 + $0x50] sm:$0xff]
  %v3493 = vld [vmem:[%s3 + $0x58] sm:$0xff]
  %v3494 = vld [vmem:[%s3 + $0x60] sm:$0xff]
  %v3495 = vld [vmem:[%s3 + $0x68] sm:$0xff]
  %v3496 = vld [vmem:[%s3 + $0x70] sm:$0xff]
  %v3497 = vld [vmem:[%s3 + $0x78] sm:$0xff]
  %3498 = vmatprep.subr.mxu0 0.0
  %3499 = vmatpush1.msra.mxu0 %v3497
  %3500 = vmatprep.subr.mxu0 0.0
  %3501 = vmatpush1.msra.mxu0 %v3496
  %3502 = vmatprep.subr.mxu0 0.0
  %3503 = vmatpush1.msra.mxu0 %v3495
  %3504 = vmatprep.subr.mxu0 0.0
  %3505 = vmatpush1.msra.mxu0 %v3494
  %3506 = vmatprep.subr.mxu0 0.0
  %3507 = vmatpush1.msra.mxu0 %v3493
  %3508 = vmatprep.subr.mxu0 0.0
  %3509 = vmatpush1.msra.mxu0 %v3492
  %3510 = vmatprep.subr.mxu0 0.0
  %3511 = vmatpush1.msra.mxu0 %v3491
  %3512 = vmatprep.subr.mxu0 0.0
  %3513 = vmatpush1.msra.mxu0 %v3490
  %3514 = vmatprep.subr.mxu0 0.0
  %3515 = vmatpush1.msra.mxu0 %v3489
  %3516 = vmatprep.subr.mxu0 0.0
  %3517 = vmatpush1.msra.mxu0 %v3488
  %3518 = vmatprep.subr.mxu0 0.0
  %3519 = vmatpush1.msra.mxu0 %v3487
  %3520 = vmatprep.subr.mxu0 0.0
  %3521 = vmatpush1.msra.mxu0 %v3486
  %3522 = vmatprep.subr.mxu0 0.0
  %3523 = vmatpush1.msra.mxu0 %v3485
  %3524 = vmatprep.subr.mxu0 0.0
  %3525 = vmatpush1.msra.mxu0 %v3484
  %3526 = vmatprep.subr.mxu0 0.0
  %3527 = vmatpush1.msra.mxu0 %v3483
  %3528 = vmatprep.subr.mxu0 0.0
  %3529 = vmatpush1.msra.mxu0 %v3482
  %3530 = vmatprep.subr.mxu0 0.0
  %3531 = vmatpush2.msra.mxu0 0.0
  %3532 = vmatprep.subr.mxu0 0.0
  %3533 = vmatpush2.msra.mxu0 0.0
  %3534 = vmatprep.subr.mxu0 0.0
  %3535 = vmatpush2.msra.mxu0 0.0
  %3536 = vmatprep.subr.mxu0 0.0
  %3537 = vmatpush2.msra.mxu0 0.0
  %3538 = vmatprep.subr.mxu0 0.0
  %3539 = vmatpush2.msra.mxu0 0.0
  %3540 = vmatprep.subr.mxu0 0.0
  %3541 = vmatpush2.msra.mxu0 0.0
  %3542 = vmatprep.subr.mxu0 0.0
  %3543 = vmatpush2.msra.mxu0 0.0
  %3544 = vmatprep.subr.mxu0 0.0
  %3545 = vmatpush2.msra.mxu0 0.0
  %3546 = vmatprep.subr.mxu0 0.0
  %3547 = vmatpush2.msra.mxu0 0.0
  %3548 = vmatprep.subr.mxu0 0.0
  %3549 = vmatpush2.msra.mxu0 0.0
  %3550 = vmatprep.subr.mxu0 0.0
  %3551 = vmatpush2.msra.mxu0 0.0
  %3552 = vmatprep.subr.mxu0 0.0
  %3553 = vmatpush2.msra.mxu0 0.0
  %3554 = vmatprep.subr.mxu0 0.0
  %3555 = vmatpush2.msra.mxu0 0.0
  %3556 = vmatprep.subr.mxu0 0.0
  %3557 = vmatpush2.msra.mxu0 0.0
  %3558 = vmatprep.subr.mxu0 0.0
  %3559 = vmatpush2.msra.mxu0 0.0
  %3560 = vmatprep.subr.mxu0 0.0
  %3561 = vmatpush2.msra.mxu0 0.0
  %3562 = vmatprep.mubr.f32.mxu0 0.0
  %3563 = vmatmul.mubr.f32.gmra.mxu0 %v3466
  %v3564 = vpop.f32.mrf.mxu0
  %v3565 = vadd.f32 0.0, %v3564
  %v3566 = vpop.f32.mrf.mxu0
  %3567 = vmatprep.mubr.f32.mxu0 0.0
  %3568 = vmatmul.mubr.f32.gmra.mxu0 %v3467
  %v3569 = vpop.f32.mrf.mxu0
  %v3570 = vadd.f32 0.0, %v3569
  %v3571 = vpop.f32.mrf.mxu0
  %3572 = vmatprep.mubr.f32.mxu0 0.0
  %3573 = vmatmul.mubr.f32.gmra.mxu0 %v3468
  %v3574 = vpop.f32.mrf.mxu0
  %v3575 = vadd.f32 0.0, %v3574
  %v3576 = vpop.f32.mrf.mxu0
  %3577 = vmatprep.mubr.f32.mxu0 0.0
  %3578 = vmatmul.mubr.f32.gmra.mxu0 %v3469
  %v3579 = vpop.f32.mrf.mxu0
  %v3580 = vadd.f32 0.0, %v3579
  %v3581 = vpop.f32.mrf.mxu0
  %3582 = vmatprep.mubr.f32.mxu0 0.0
  %3583 = vmatmul.mubr.f32.gmra.mxu0 %v3470
  %v3584 = vpop.f32.mrf.mxu0
  %v3585 = vadd.f32 0.0, %v3584
  %v3586 = vpop.f32.mrf.mxu0
  %3587 = vmatprep.mubr.f32.mxu0 0.0
  %3588 = vmatmul.mubr.f32.gmra.mxu0 %v3471
  %v3589 = vpop.f32.mrf.mxu0
  %v3590 = vadd.f32 0.0, %v3589
  %v3591 = vpop.f32.mrf.mxu0
  %3592 = vmatprep.mubr.f32.mxu0 0.0
  %3593 = vmatmul.mubr.f32.gmra.mxu0 %v3472
  %v3594 = vpop.f32.mrf.mxu0
  %v3595 = vadd.f32 0.0, %v3594
  %v3596 = vpop.f32.mrf.mxu0
  %3597 = vmatprep.mubr.f32.mxu0 0.0
  %3598 = vmatmul.mubr.f32.gmra.mxu0 %v3473
  %v3599 = vpop.f32.mrf.mxu0
  %v3600 = vadd.f32 0.0, %v3599
  %v3601 = vpop.f32.mrf.mxu0
  %3602 = vmatprep.mubr.f32.mxu0 0.0
  %3603 = vmatmul.mubr.f32.gmra.mxu0 %v3474
  %v3604 = vpop.f32.mrf.mxu0
  %v3605 = vadd.f32 0.0, %v3604
  %v3606 = vpop.f32.mrf.mxu0
  %3607 = vmatprep.mubr.f32.mxu0 0.0
  %3608 = vmatmul.mubr.f32.gmra.mxu0 %v3475
  %v3609 = vpop.f32.mrf.mxu0
  %v3610 = vadd.f32 0.0, %v3609
  %v3611 = vpop.f32.mrf.mxu0
  %3612 = vmatprep.mubr.f32.mxu0 0.0
  %3613 = vmatmul.mubr.f32.gmra.mxu0 %v3476
  %v3614 = vpop.f32.mrf.mxu0
  %v3615 = vadd.f32 0.0, %v3614
  %v3616 = vpop.f32.mrf.mxu0
  %3617 = vmatprep.mubr.f32.mxu0 0.0
  %3618 = vmatmul.mubr.f32.gmra.mxu0 %v3477
  %v3619 = vpop.f32.mrf.mxu0
  %v3620 = vadd.f32 0.0, %v3619
  %v3621 = vpop.f32.mrf.mxu0
  %3622 = vmatprep.mubr.f32.mxu0 0.0
  %3623 = vmatmul.mubr.f32.gmra.mxu0 %v3478
  %v3624 = vpop.f32.mrf.mxu0
  %v3625 = vadd.f32 0.0, %v3624
  %v3626 = vpop.f32.mrf.mxu0
  %3627 = vmatprep.mubr.f32.mxu0 0.0
  %3628 = vmatmul.mubr.f32.gmra.mxu0 %v3479
  %v3629 = vpop.f32.mrf.mxu0
  %v3630 = vadd.f32 0.0, %v3629
  %v3631 = vpop.f32.mrf.mxu0
  %3632 = vmatprep.mubr.f32.mxu0 0.0
  %3633 = vmatmul.mubr.f32.gmra.mxu0 %v3480
  %v3634 = vpop.f32.mrf.mxu0
  %v3635 = vadd.f32 0.0, %v3634
  %v3636 = vpop.f32.mrf.mxu0
  %3637 = vmatprep.mubr.f32.mxu0 0.0
  %3638 = vmatmul.mubr.f32.gmra.mxu0 %v3481
  %v3639 = vpop.f32.mrf.mxu0
  %v3640 = vadd.f32 0.0, %v3639
  %v3641 = vpop.f32.mrf.mxu0
  %3642 = vdwg.mxu0
  %v3643 = vadd.f32 %v2864, %v3565
  %v3644 = vadd.f32 %v2865, %v3570
  %v3645 = vadd.f32 %v2866, %v3575
  %v3646 = vadd.f32 %v2867, %v3580
  %v3647 = vadd.f32 %v2868, %v3585
  %v3648 = vadd.f32 %v2869, %v3590
  %v3649 = vadd.f32 %v2870, %v3595
  %v3650 = vadd.f32 %v2871, %v3600
  %v3651 = vadd.f32 %v2872, %v3605
  %v3652 = vadd.f32 %v2873, %v3610
  %v3653 = vadd.f32 %v2874, %v3615
  %v3654 = vadd.f32 %v2875, %v3620
  %v3655 = vadd.f32 %v2876, %v3625
  %v3656 = vadd.f32 %v2877, %v3630
  %v3657 = vadd.f32 %v2878, %v3635
  %v3658 = vadd.f32 %v2879, %v3640
  %v3659 = vlaneseq
  %v3660 = vshrl.u32 %v3659, 7
  %v3661 = vsub.s32 0, %v3660
  %v3662 = vrot.slane %v382, %v3661
  %v3663 = vadd.f32 %v3643, %v3662
  %v3664 = vadd.f32 %v3644, %v3662
  %v3665 = vadd.f32 %v3645, %v3662
  %v3666 = vadd.f32 %v3646, %v3662
  %v3667 = vadd.f32 %v3647, %v3662
  %v3668 = vadd.f32 %v3648, %v3662
  %v3669 = vadd.f32 %v3649, %v3662
  %v3670 = vadd.f32 %v3650, %v3662
  %v3671 = vadd.f32 %v3651, %v3662
  %v3672 = vadd.f32 %v3652, %v3662
  %v3673 = vadd.f32 %v3653, %v3662
  %v3674 = vadd.f32 %v3654, %v3662
  %v3675 = vadd.f32 %v3655, %v3662
  %v3676 = vadd.f32 %v3656, %v3662
  %v3677 = vadd.f32 %v3657, %v3662
  %v3678 = vadd.f32 %v3658, %v3662
  %3679 = vst.msk [vmem:[%s6] sm:$0xff] %vm39, %v3663
  %3680 = vst.msk [vmem:[%s6 + $0x8] sm:$0xff] %vm39, %v3664
  %3681 = vst.msk [vmem:[%s6 + $0x10] sm:$0xff] %vm39, %v3665
  %3682 = vst.msk [vmem:[%s6 + $0x18] sm:$0xff] %vm39, %v3666
  %3683 = vst.msk [vmem:[%s6 + $0x20] sm:$0xff] %vm39, %v3667
  %3684 = vst.msk [vmem:[%s6 + $0x28] sm:$0xff] %vm39, %v3668
  %3685 = vst.msk [vmem:[%s6 + $0x30] sm:$0xff] %vm39, %v3669
  %3686 = vst.msk [vmem:[%s6 + $0x38] sm:$0xff] %vm39, %v3670
  %3687 = vst.msk [vmem:[%s6 + $0x40] sm:$0xff] %vm39, %v3671
  %3688 = vst.msk [vmem:[%s6 + $0x48] sm:$0xff] %vm39, %v3672
  %3689 = vst.msk [vmem:[%s6 + $0x50] sm:$0xff] %vm39, %v3673
  %3690 = vst.msk [vmem:[%s6 + $0x58] sm:$0xff] %vm39, %v3674
  %3691 = vst.msk [vmem:[%s6 + $0x60] sm:$0xff] %vm39, %v3675
  %3692 = vst.msk [vmem:[%s6 + $0x68] sm:$0xff] %vm39, %v3676
  %3693 = vst.msk [vmem:[%s6 + $0x70] sm:$0xff] %vm39, %v3677
  %3694 = vst.msk [vmem:[%s6 + $0x78] sm:$0xff] %vm39, %v3678
  // Predicated region
  $region26: #{basic_layer_up_forward.1} parent=0 // pred_check
    _
  $region27: #{basic_layer_up_forward.1} parent=0 // pred_check_branch
    %3696 = sbr.rel (0) target = $region29
  $region28: #{basic_layer_up_forward.1} parent=0 // pred_region
    _
  $region29: #{basic_layer_up_forward.1} parent=0 // pred_fallthru
    _
  // Predicated region
  $region30: #{basic_layer_up_forward.1} parent=0 // pred_check
    _
  $region31: #{basic_layer_up_forward.1} parent=0 // pred_check_branch
    %3698 = sbr.rel (0) target = $region33
  $region32: #{basic_layer_up_forward.1} parent=0 // pred_region
    _
  $region33: #{basic_layer_up_forward.1} parent=0 // pred_fallthru
    _

</llo_original>
